<compile_context>
chip_gen: v7x
topology: tpu7x:2x2x1
jax: 0.10.0
libtpu: 0.0.40
codegen_flags: <defaults>
</compile_context>

<pallas_src>
import math
import functools

import jax
import jax.numpy as jnp
import numpy as np
from jax import lax
from jax.experimental import pallas as pl
from jax.experimental.pallas import tpu as pltpu


# ---------------------------------------------------------------------------
# Fused kernel: one (batch, query-tile) pair per grid step.
#   q_ref : (1, Tq, D_in) bf16     k_ref/v_ref : (1, S, D_in) bf16
#   wq/wk : (D_in, H*D_k) bf16     wv : (D_in, H*D_v) bf16    wo : (H*D_v, D_in) bf16
#   biases: (1, H*D_k)/(1, H*D_v)/(1, D_in) f32
#   o_ref : (1, Tq, D_in) f32
#   scratch: kp_ref (S, H*D_k) bf16, vp_ref (S, H*D_v) bf16, oall_ref (Tq, H*D_v) bf16
# ---------------------------------------------------------------------------
def _mha_fused_kernel(q_ref, k_ref, v_ref,
                      wq_ref, bq_ref, wk_ref, bk_ref, wv_ref, bv_ref,
                      wo_ref, bo_ref,
                      o_ref,
                      kp_ref, vp_ref, oall_ref,
                      *, num_heads, dim_k, dim_v, compute_dtype):
    f32 = jnp.float32
    cdt = compute_dtype

    # --- K/V projections: once per batch (first q tile), cached across q tiles ---
    @pl.when(pl.program_id(1) == 0)
    def _():
        k = k_ref[0]                                              # (S, D_in)
        v = v_ref[0]
        kp = jnp.dot(k, wk_ref[...], preferred_element_type=f32) + bk_ref[...]
        vp = jnp.dot(v, wv_ref[...], preferred_element_type=f32) + bv_ref[...]
        kp_ref[...] = kp.astype(cdt)                              # (S, H*Dk)
        vp_ref[...] = vp.astype(cdt)                              # (S, H*Dv)

    inv_scale = 1.0 / math.sqrt(dim_k)

    # Q projection for this tile (scale folded in: softmax((q*s)k^T) == softmax((qk^T)*s)).
    q = q_ref[0]                                                  # (Tq, D_in)
    qp = (jnp.dot(q, wq_ref[...], preferred_element_type=f32)
          + bq_ref[...]) * inv_scale                              # (Tq, H*Dk) f32
    qp = qp.astype(cdt)

    kp = kp_ref[...]                                              # (S, H*Dk) bf16
    vp = vp_ref[...]                                              # (S, H*Dv) bf16

    # --- per-head attention; normalized head outputs staged lane-contiguously ---
    for h in range(num_heads):
        qh = qp[:, h * dim_k:(h + 1) * dim_k]                     # (Tq, Dk)
        kh = kp[:, h * dim_k:(h + 1) * dim_k]                     # (S,  Dk)
        vh = vp[:, h * dim_v:(h + 1) * dim_v]                     # (S,  Dv)

        # Q K^T without materializing a transpose: contract last dims of both.
        scores = lax.dot_general(qh, kh, (((1,), (1,)), ((), ())),
                                 preferred_element_type=f32)      # (Tq, S)

        # Softmax (f32). Normalize AFTER the PV matmul (O(Tq*Dv) instead of O(Tq*S)).
        m = jnp.max(scores, axis=-1, keepdims=True)
        p = jnp.exp(scores - m)
        denom = jnp.sum(p, axis=-1, keepdims=True)

        oh = jnp.dot(p.astype(cdt), vh, preferred_element_type=f32)   # (Tq, Dv)
        oh = oh * pl.reciprocal(denom, approx=True)

        oall_ref[:, h * dim_v:(h + 1) * dim_v] = oh.astype(cdt)

    # --- single wide output projection (K = H*Dv), == cat(heads) @ wo + bo ---
    out = jnp.dot(oall_ref[...], wo_ref[...], preferred_element_type=f32) + bo_ref[...]
    o_ref[0] = out.astype(o_ref.dtype)


# ---------------------------------------------------------------------------
# Wrapper: packs per-head weights, casts inputs to bf16, launches the kernel.
# ---------------------------------------------------------------------------
def multi_head_attention(query, key, value, params, *, block_q=256,
                         compute_dtype=jnp.bfloat16):
    B, S, D_in = query.shape
    H, _, D_k = params["wq"].shape
    D_v = params["wv"].shape[-1]

    # Pack per-head weights: columns [h*D_k:(h+1)*D_k] of wq_all == head h's weight.
    wq = jnp.transpose(params["wq"], (1, 0, 2)).reshape(D_in, H * D_k).astype(compute_dtype)
    wk = jnp.transpose(params["wk"], (1, 0, 2)).reshape(D_in, H * D_k).astype(compute_dtype)
    wv = jnp.transpose(params["wv"], (1, 0, 2)).reshape(D_in, H * D_v).astype(compute_dtype)
    bq = params["bq"].reshape(1, H * D_k).astype(jnp.float32)
    bk = params["bk"].reshape(1, H * D_k).astype(jnp.float32)
    bv = params["bv"].reshape(1, H * D_v).astype(jnp.float32)
    wo = params["wo"].astype(compute_dtype)                 # (H*D_v, D_in), head-major rows
    bo = params["bo"].reshape(1, D_in).astype(jnp.float32)

    # Inputs go through bf16 on the MXU anyway; cast in the wrapper to halve DMA bytes.
    q_in = query.astype(compute_dtype)
    k_in = key.astype(compute_dtype)
    v_in = value.astype(compute_dtype)

    block_q = min(block_q, S)
    grid = (B, pl.cdiv(S, block_q))

    kernel = functools.partial(_mha_fused_kernel, num_heads=H, dim_k=D_k,
                               dim_v=D_v, compute_dtype=compute_dtype)

    q_spec = pl.BlockSpec((1, block_q, D_in), lambda b, qi: (b, qi, 0))
    kv_spec = pl.BlockSpec((1, S, D_in), lambda b, qi: (b, 0, 0))

    # Constant (grid-invariant) operands. NOTE: their index_map never changes, so they are
    # DMA'd once; a pipeline_mode=pl.Buffered(1) would also free the duplicate buffer.
    def const_spec(a):
        nd = a.ndim
        return pl.BlockSpec(a.shape, lambda b, qi, _nd=nd: (0,) * _nd)

    # Advisory cost estimate (K/V projections counted once per batch token, not per q tile).
    flops = int(2 * B * S * D_in * H * (2 * D_k + D_v)      # q/k/v projections
                + 2 * B * H * S * S * (D_k + D_v)           # QK^T + PV
                + 2 * B * S * H * D_v * D_in)               # output projection
    transcendentals = int(B * H * S * S)                    # exp
    w_bytes = 2 * (2 * D_in * H * D_k + 2 * D_in * H * D_v + H * D_v * D_in)   # bf16 weights
    b_bytes = 4 * (2 * H * D_k + H * D_v + D_in)
    bytes_accessed = int(3 * B * S * D_in * 2               # q,k,v in (bf16)
                         + B * S * D_in * 4                 # out (f32)
                         + w_bytes + b_bytes)

    # Explicit VMEM budget: double-buffered blocks + weights + scratch + f32 transients.
    est = 0
    est += 2 * block_q * D_in * 2                           # q blocks (bf16)
    est += 2 * 2 * S * D_in * 2                             # k, v blocks (bf16)
    est += 2 * block_q * D_in * 4                           # out blocks (f32)
    est += 2 * (w_bytes + b_bytes)                          # weight/bias double buffers
    est += (S * H * D_k + S * H * D_v + block_q * H * D_v) * 2   # scratch (bf16)
    est += 3 * block_q * S * 4                              # scores / p transients (f32)
    est += (block_q + 2 * S) * max(H * D_k, H * D_v) * 4    # qp/kp/vp f32 transients
    vmem_limit = min(max(32 << 20, int(1.5 * est) + (4 << 20)), 64 << 20)

    return pl.pallas_call(
        kernel,
        out_shape=jax.ShapeDtypeStruct((B, S, D_in), query.dtype),
        grid=grid,
        in_specs=[q_spec, kv_spec, kv_spec,
                  const_spec(wq), const_spec(bq),
                  const_spec(wk), const_spec(bk),
                  const_spec(wv), const_spec(bv),
                  const_spec(wo), const_spec(bo)],
        out_specs=pl.BlockSpec((1, block_q, D_in), lambda b, qi: (b, qi, 0)),
        scratch_shapes=[pltpu.VMEM((S, H * D_k), compute_dtype),       # cached K proj
                        pltpu.VMEM((S, H * D_v), compute_dtype),       # cached V proj
                        pltpu.VMEM((block_q, H * D_v), compute_dtype)],  # head-output staging
        compiler_params=pltpu.CompilerParams(
            dimension_semantics=("parallel", "arbitrary"),
            vmem_limit_bytes=vmem_limit),
        cost_estimate=pl.CostEstimate(flops=flops,
                                      transcendentals=transcendentals,
                                      bytes_accessed=bytes_accessed),
    )(q_in, k_in, v_in, wq, bq, wk, bk, wv, bv, wo, bo)


# ---------------------------------------------------------------------------
# Pure-JAX reference mirroring the PyTorch module semantics (f32 throughout).
# ---------------------------------------------------------------------------
def reference_mha(query, key, value, params):
    H = params["wq"].shape[0]
    outs = []
    for h in range(H):
        qp = query @ params["wq"][h] + params["bq"][h]
        kp = key @ params["wk"][h] + params["bk"][h]
        vp = value @ params["wv"][h] + params["bv"][h]
        scale = qp.shape[-1] ** 0.5
        scores = jnp.einsum("bqd,bkd->bqk", qp, kp) / scale
        attn = jax.nn.softmax(scores, axis=-1)
        outs.append(jnp.einsum("bqk,bkd->bqd", attn, vp))
    concat = jnp.concatenate(outs, axis=-1)
    return concat @ params["wo"] + params["bo"]


if __name__ == "__main__":
    # Small shapes, but lane-dense (D_in = H*D_k = H*D_v = 128).
    B, S = 2, 128
    DIM_IN, DIM_K, DIM_V, NUM_HEADS = 128, 32, 32, 4

    root = jax.random.PRNGKey(0)
    ks = jax.random.split(root, 10)

    query = jax.random.uniform(ks[0], (B, S, DIM_IN), dtype=jnp.float32)
    key = jax.random.normal(ks[1], (B, S, DIM_IN), dtype=jnp.float32)
    value = jax.random.uniform(ks[2], (B, S, DIM_IN), dtype=jnp.float32)

    # Deterministic parameter init (weights stored as [in, out] per head).
    def init(k, shape, fan_in):
        bound = 1.0 / math.sqrt(fan_in)
        return jax.random.uniform(k, shape, jnp.float32, -bound, bound)

    params = {
        "wq": init(ks[3], (NUM_HEADS, DIM_IN, DIM_K), DIM_IN),
        "bq": init(ks[4], (NUM_HEADS, DIM_K), DIM_IN),
        "wk": init(ks[5], (NUM_HEADS, DIM_IN, DIM_K), DIM_IN),
        "bk": init(ks[6], (NUM_HEADS, DIM_K), DIM_IN),
        "wv": init(ks[7], (NUM_HEADS, DIM_IN, DIM_V), DIM_IN),
        "bv": init(ks[8], (NUM_HEADS, DIM_V), DIM_IN),
        "wo": init(ks[9], (NUM_HEADS * DIM_V, DIM_IN), NUM_HEADS * DIM_V),
        "bo": init(jax.random.fold_in(root, 99), (DIM_IN,), NUM_HEADS * DIM_V),
    }

    out = multi_head_attention(query, key, value, params)
    out = jax.block_until_ready(out)

    ref = reference_mha(query, key, value, params)
    # bf16 inputs/MXU operands + approx reciprocal => compare with a loose tolerance.
    np.testing.assert_allclose(np.asarray(out), np.asarray(ref),
                               rtol=2e-2, atol=2e-2)

    print("KERNEL_OK")
</pallas_src>

<mosaic_0001>
module attributes {stable_mosaic.version = 11 : i64} {
  func.func @_mha_fused_kernel(%arg0: i32, %arg1: i32, %arg2: memref<1x128x128xbf16, #tpu.memory_space<vmem>>, %arg3: memref<1x128x128xbf16, #tpu.memory_space<vmem>>, %arg4: memref<1x128x128xbf16, #tpu.memory_space<vmem>>, %arg5: memref<128x128xbf16, #tpu.memory_space<vmem>>, %arg6: memref<1x128xf32, #tpu.memory_space<vmem>>, %arg7: memref<128x128xbf16, #tpu.memory_space<vmem>>, %arg8: memref<1x128xf32, #tpu.memory_space<vmem>>, %arg9: memref<128x128xbf16, #tpu.memory_space<vmem>>, %arg10: memref<1x128xf32, #tpu.memory_space<vmem>>, %arg11: memref<128x128xbf16, #tpu.memory_space<vmem>>, %arg12: memref<1x128xf32, #tpu.memory_space<vmem>>, %arg13: memref<1x128x128xf32, #tpu.memory_space<vmem>>, %arg14: memref<128x128xbf16, #tpu.memory_space<vmem>>, %arg15: memref<128x128xbf16, #tpu.memory_space<vmem>>, %arg16: memref<128x128xbf16, #tpu.memory_space<vmem>>) attributes {dimension_semantics = [#tpu.dimension_semantics<parallel>, #tpu.dimension_semantics<arbitrary>], iteration_bounds = array<i64: 2, 1>, scalar_prefetch = 0 : i64, scratch_operands = 3 : i64, tpu.core_type = #tpu.core_type<tc>, window_params = [{transform_indices = @transform_0, window_bounds = array<i64: 1, 128, 128>}, {transform_indices = @transform_1, window_bounds = array<i64: 1, 128, 128>}, {transform_indices = @transform_2, window_bounds = array<i64: 1, 128, 128>}, {pipeline_mode = #tpu.pipeline_mode<synchronous>, transform_indices = @transform_3, window_bounds = array<i64: 128, 128>}, {pipeline_mode = #tpu.pipeline_mode<synchronous>, transform_indices = @transform_4, window_bounds = array<i64: 1, 128>}, {pipeline_mode = #tpu.pipeline_mode<synchronous>, transform_indices = @transform_5, window_bounds = array<i64: 128, 128>}, {pipeline_mode = #tpu.pipeline_mode<synchronous>, transform_indices = @transform_6, window_bounds = array<i64: 1, 128>}, {pipeline_mode = #tpu.pipeline_mode<synchronous>, transform_indices = @transform_7, window_bounds = array<i64: 128, 128>}, {pipeline_mode = #tpu.pipeline_mode<synchronous>, transform_indices = @transform_8, window_bounds = array<i64: 1, 128>}, {pipeline_mode = #tpu.pipeline_mode<synchronous>, transform_indices = @transform_9, window_bounds = array<i64: 128, 128>}, {pipeline_mode = #tpu.pipeline_mode<synchronous>, transform_indices = @transform_10, window_bounds = array<i64: 1, 128>}, {transform_indices = @transform_11, window_bounds = array<i64: 1, 128, 128>}]} {
    %c0_i32 = arith.constant 0 : i32
    %0 = arith.cmpi eq, %arg1, %c0_i32 : i32
    %1 = arith.extui %0 : i1 to i32
    %c0_i32_0 = arith.constant 0 : i32
    %2 = arith.cmpi ne, %1, %c0_i32_0 : i32
    scf.if %2 {
      %c0_43 = arith.constant 0 : index
      %c0_44 = arith.constant 0 : index
      %c0_45 = arith.constant 0 : index
      %96 = vector.load %arg3[%c0_43, %c0_44, %c0_45] : memref<1x128x128xbf16, #tpu.memory_space<vmem>>, vector<1x128x128xbf16>
      %97 = vector.shape_cast %96 : vector<1x128x128xbf16> to vector<128x128xbf16>
      %c0_46 = arith.constant 0 : index
      %c0_47 = arith.constant 0 : index
      %c0_48 = arith.constant 0 : index
      %98 = vector.load %arg4[%c0_46, %c0_47, %c0_48] : memref<1x128x128xbf16, #tpu.memory_space<vmem>>, vector<1x128x128xbf16>
      %99 = vector.shape_cast %98 : vector<1x128x128xbf16> to vector<128x128xbf16>
      %c0_49 = arith.constant 0 : index
      %c0_50 = arith.constant 0 : index
      %100 = vector.load %arg7[%c0_49, %c0_50] : memref<128x128xbf16, #tpu.memory_space<vmem>>, vector<128x128xbf16>
      %cst_51 = arith.constant dense<0.000000e+00> : vector<128x128xf32>
      %101 = tpu.matmul %97, %100, %cst_51 {dimension_numbers = #tpu.dot_dimension_numbers<[1], [0], [0], [1], [0, 0, 1, 1], [], []>} : vector<128x128xbf16>, vector<128x128xbf16>, vector<128x128xf32> -> vector<128x128xf32>
      %c0_52 = arith.constant 0 : index
      %c0_53 = arith.constant 0 : index
      %102 = vector.load %arg8[%c0_52, %c0_53] : memref<1x128xf32, #tpu.memory_space<vmem>>, vector<1x128xf32>
      %103 = vector.broadcast %102 : vector<1x128xf32> to vector<128x128xf32>
      %104 = arith.addf %101, %103 : vector<128x128xf32>
      %c0_54 = arith.constant 0 : index
      %c0_55 = arith.constant 0 : index
      %105 = vector.load %arg9[%c0_54, %c0_55] : memref<128x128xbf16, #tpu.memory_space<vmem>>, vector<128x128xbf16>
      %cst_56 = arith.constant dense<0.000000e+00> : vector<128x128xf32>
      %106 = tpu.matmul %99, %105, %cst_56 {dimension_numbers = #tpu.dot_dimension_numbers<[1], [0], [0], [1], [0, 0, 1, 1], [], []>} : vector<128x128xbf16>, vector<128x128xbf16>, vector<128x128xf32> -> vector<128x128xf32>
      %c0_57 = arith.constant 0 : index
      %c0_58 = arith.constant 0 : index
      %107 = vector.load %arg10[%c0_57, %c0_58] : memref<1x128xf32, #tpu.memory_space<vmem>>, vector<1x128xf32>
      %108 = vector.broadcast %107 : vector<1x128xf32> to vector<128x128xf32>
      %109 = arith.addf %106, %108 : vector<128x128xf32>
      %110 = arith.truncf %104 : vector<128x128xf32> to vector<128x128xbf16>
      %c0_59 = arith.constant 0 : index
      %c0_60 = arith.constant 0 : index
      %111 = vector.load %arg14[%c0_59, %c0_60] : memref<128x128xbf16, #tpu.memory_space<vmem>>, vector<128x128xbf16>
      tpu.vector_store %arg14[%c0_59, %c0_60], %110 {strides = array<i32>} : memref<128x128xbf16, #tpu.memory_space<vmem>>, vector<128x128xbf16>,
      %112 = arith.truncf %109 : vector<128x128xf32> to vector<128x128xbf16>
      %c0_61 = arith.constant 0 : index
      %c0_62 = arith.constant 0 : index
      %113 = vector.load %arg15[%c0_61, %c0_62] : memref<128x128xbf16, #tpu.memory_space<vmem>>, vector<128x128xbf16>
      tpu.vector_store %arg15[%c0_61, %c0_62], %112 {strides = array<i32>} : memref<128x128xbf16, #tpu.memory_space<vmem>>, vector<128x128xbf16>,
    } else {
    }
    %c0 = arith.constant 0 : index
    %c0_1 = arith.constant 0 : index
    %c0_2 = arith.constant 0 : index
    %3 = vector.load %arg2[%c0, %c0_1, %c0_2] : memref<1x128x128xbf16, #tpu.memory_space<vmem>>, vector<1x128x128xbf16>
    %4 = vector.shape_cast %3 : vector<1x128x128xbf16> to vector<128x128xbf16>
    %c0_3 = arith.constant 0 : index
    %c0_4 = arith.constant 0 : index
    %5 = vector.load %arg5[%c0_3, %c0_4] : memref<128x128xbf16, #tpu.memory_space<vmem>>, vector<128x128xbf16>
    %cst = arith.constant dense<0.000000e+00> : vector<128x128xf32>
    %6 = tpu.matmul %4, %5, %cst {dimension_numbers = #tpu.dot_dimension_numbers<[1], [0], [0], [1], [0, 0, 1, 1], [], []>} : vector<128x128xbf16>, vector<128x128xbf16>, vector<128x128xf32> -> vector<128x128xf32>
    %c0_5 = arith.constant 0 : index
    %c0_6 = arith.constant 0 : index
    %7 = vector.load %arg6[%c0_5, %c0_6] : memref<1x128xf32, #tpu.memory_space<vmem>>, vector<1x128xf32>
    %8 = vector.broadcast %7 : vector<1x128xf32> to vector<128x128xf32>
    %9 = arith.addf %6, %8 : vector<128x128xf32>
    %cst_7 = arith.constant 0.176776692 : f32
    %10 = vector.broadcast %cst_7 : f32 to vector<128x128xf32>
    %11 = arith.mulf %9, %10 : vector<128x128xf32>
    %12 = arith.truncf %11 : vector<128x128xf32> to vector<128x128xbf16>
    %c0_8 = arith.constant 0 : index
    %c0_9 = arith.constant 0 : index
    %13 = vector.load %arg14[%c0_8, %c0_9] : memref<128x128xbf16, #tpu.memory_space<vmem>>, vector<128x128xbf16>
    %c0_10 = arith.constant 0 : index
    %c0_11 = arith.constant 0 : index
    %14 = vector.load %arg15[%c0_10, %c0_11] : memref<128x128xbf16, #tpu.memory_space<vmem>>, vector<128x128xbf16>
    %15 = vector.extract_strided_slice %12 {offsets = [0, 0], sizes = [128, 32], strides = [1, 1]} : vector<128x128xbf16> to vector<128x32xbf16>
    %16 = vector.extract_strided_slice %13 {offsets = [0, 0], sizes = [128, 32], strides = [1, 1]} : vector<128x128xbf16> to vector<128x32xbf16>
    %17 = vector.extract_strided_slice %14 {offsets = [0, 0], sizes = [128, 32], strides = [1, 1]} : vector<128x128xbf16> to vector<128x32xbf16>
    %cst_12 = arith.constant dense<0.000000e+00> : vector<128x128xf32>
    %18 = tpu.matmul %15, %16, %cst_12 {dimension_numbers = #tpu.dot_dimension_numbers<[1], [1], [0], [0], [0, 0, 1, 0], [], []>} : vector<128x32xbf16>, vector<128x32xbf16>, vector<128x128xf32> -> vector<128x128xf32>
    %cst_13 = arith.constant dense<0xFF800000> : vector<128xf32>
    %19 = vector.multi_reduction <maximumf>, %18, %cst_13 [1] : vector<128x128xf32> to vector<128xf32>
    %20 = vector.shape_cast %19 : vector<128xf32> to vector<128x1xf32>
    %21 = vector.broadcast %20 : vector<128x1xf32> to vector<128x128xf32>
    %22 = arith.subf %18, %21 : vector<128x128xf32>
    %23 = math.exp %22 : vector<128x128xf32>
    %cst_14 = arith.constant dense<0.000000e+00> : vector<128xf32>
    %24 = vector.multi_reduction <add>, %23, %cst_14 [1] : vector<128x128xf32> to vector<128xf32>
    %25 = vector.shape_cast %24 : vector<128xf32> to vector<128x1xf32>
    %26 = arith.truncf %23 : vector<128x128xf32> to vector<128x128xbf16>
    %cst_15 = arith.constant dense<0.000000e+00> : vector<128x32xf32>
    %27 = tpu.matmul %26, %17, %cst_15 {dimension_numbers = #tpu.dot_dimension_numbers<[1], [0], [0], [1], [0, 0, 1, 1], [], []>} : vector<128x128xbf16>, vector<128x32xbf16>, vector<128x32xf32> -> vector<128x32xf32>
    %28 = tpu.reciprocal %25 {approx = true} : vector<128x1xf32> -> vector<128x1xf32>
    %29 = vector.broadcast %28 : vector<128x1xf32> to vector<128x32xf32>
    %30 = arith.mulf %27, %29 : vector<128x32xf32>
    %31 = arith.truncf %30 : vector<128x32xf32> to vector<128x32xbf16>
    %c0_16 = arith.constant 0 : index
    %c0_17 = arith.constant 0 : index
    %32 = vector.load %arg16[%c0_16, %c0_17] : memref<128x128xbf16, #tpu.memory_space<vmem>>, vector<128x32xbf16>
    tpu.vector_store %arg16[%c0_16, %c0_17], %31 {strides = array<i32>} : memref<128x128xbf16, #tpu.memory_space<vmem>>, vector<128x32xbf16>,
    %33 = vector.extract_strided_slice %12 {offsets = [0, 32], sizes = [128, 32], strides = [1, 1]} : vector<128x128xbf16> to vector<128x32xbf16>
    %34 = vector.extract_strided_slice %13 {offsets = [0, 32], sizes = [128, 32], strides = [1, 1]} : vector<128x128xbf16> to vector<128x32xbf16>
    %35 = vector.extract_strided_slice %14 {offsets = [0, 32], sizes = [128, 32], strides = [1, 1]} : vector<128x128xbf16> to vector<128x32xbf16>
    %cst_18 = arith.constant dense<0.000000e+00> : vector<128x128xf32>
    %36 = tpu.matmul %33, %34, %cst_18 {dimension_numbers = #tpu.dot_dimension_numbers<[1], [1], [0], [0], [0, 0, 1, 0], [], []>} : vector<128x32xbf16>, vector<128x32xbf16>, vector<128x128xf32> -> vector<128x128xf32>
    %cst_19 = arith.constant dense<0xFF800000> : vector<128xf32>
    %37 = vector.multi_reduction <maximumf>, %36, %cst_19 [1] : vector<128x128xf32> to vector<128xf32>
    %38 = vector.shape_cast %37 : vector<128xf32> to vector<128x1xf32>
    %39 = vector.broadcast %38 : vector<128x1xf32> to vector<128x128xf32>
    %40 = arith.subf %36, %39 : vector<128x128xf32>
    %41 = math.exp %40 : vector<128x128xf32>
    %cst_20 = arith.constant dense<0.000000e+00> : vector<128xf32>
    %42 = vector.multi_reduction <add>, %41, %cst_20 [1] : vector<128x128xf32> to vector<128xf32>
    %43 = vector.shape_cast %42 : vector<128xf32> to vector<128x1xf32>
    %44 = arith.truncf %41 : vector<128x128xf32> to vector<128x128xbf16>
    %cst_21 = arith.constant dense<0.000000e+00> : vector<128x32xf32>
    %45 = tpu.matmul %44, %35, %cst_21 {dimension_numbers = #tpu.dot_dimension_numbers<[1], [0], [0], [1], [0, 0, 1, 1], [], []>} : vector<128x128xbf16>, vector<128x32xbf16>, vector<128x32xf32> -> vector<128x32xf32>
    %46 = tpu.reciprocal %43 {approx = true} : vector<128x1xf32> -> vector<128x1xf32>
    %47 = vector.broadcast %46 : vector<128x1xf32> to vector<128x32xf32>
    %48 = arith.mulf %45, %47 : vector<128x32xf32>
    %49 = arith.truncf %48 : vector<128x32xf32> to vector<128x32xbf16>
    %c0_22 = arith.constant 0 : index
    %c32 = arith.constant 32 : index
    %50 = vector.load %arg16[%c0_22, %c32] : memref<128x128xbf16, #tpu.memory_space<vmem>>, vector<128x32xbf16>
    tpu.vector_store %arg16[%c0_22, %c32], %49 {strides = array<i32>} : memref<128x128xbf16, #tpu.memory_space<vmem>>, vector<128x32xbf16>,
    %51 = vector.extract_strided_slice %12 {offsets = [0, 64], sizes = [128, 32], strides = [1, 1]} : vector<128x128xbf16> to vector<128x32xbf16>
    %52 = vector.extract_strided_slice %13 {offsets = [0, 64], sizes = [128, 32], strides = [1, 1]} : vector<128x128xbf16> to vector<128x32xbf16>
    %53 = vector.extract_strided_slice %14 {offsets = [0, 64], sizes = [128, 32], strides = [1, 1]} : vector<128x128xbf16> to vector<128x32xbf16>
    %cst_23 = arith.constant dense<0.000000e+00> : vector<128x128xf32>
    %54 = tpu.matmul %51, %52, %cst_23 {dimension_numbers = #tpu.dot_dimension_numbers<[1], [1], [0], [0], [0, 0, 1, 0], [], []>} : vector<128x32xbf16>, vector<128x32xbf16>, vector<128x128xf32> -> vector<128x128xf32>
    %cst_24 = arith.constant dense<0xFF800000> : vector<128xf32>
    %55 = vector.multi_reduction <maximumf>, %54, %cst_24 [1] : vector<128x128xf32> to vector<128xf32>
    %56 = vector.shape_cast %55 : vector<128xf32> to vector<128x1xf32>
    %57 = vector.broadcast %56 : vector<128x1xf32> to vector<128x128xf32>
    %58 = arith.subf %54, %57 : vector<128x128xf32>
    %59 = math.exp %58 : vector<128x128xf32>
    %cst_25 = arith.constant dense<0.000000e+00> : vector<128xf32>
    %60 = vector.multi_reduction <add>, %59, %cst_25 [1] : vector<128x128xf32> to vector<128xf32>
    %61 = vector.shape_cast %60 : vector<128xf32> to vector<128x1xf32>
    %62 = arith.truncf %59 : vector<128x128xf32> to vector<128x128xbf16>
    %cst_26 = arith.constant dense<0.000000e+00> : vector<128x32xf32>
    %63 = tpu.matmul %62, %53, %cst_26 {dimension_numbers = #tpu.dot_dimension_numbers<[1], [0], [0], [1], [0, 0, 1, 1], [], []>} : vector<128x128xbf16>, vector<128x32xbf16>, vector<128x32xf32> -> vector<128x32xf32>
    %64 = tpu.reciprocal %61 {approx = true} : vector<128x1xf32> -> vector<128x1xf32>
    %65 = vector.broadcast %64 : vector<128x1xf32> to vector<128x32xf32>
    %66 = arith.mulf %63, %65 : vector<128x32xf32>
    %67 = arith.truncf %66 : vector<128x32xf32> to vector<128x32xbf16>
    %c0_27 = arith.constant 0 : index
    %c64 = arith.constant 64 : index
    %68 = vector.load %arg16[%c0_27, %c64] : memref<128x128xbf16, #tpu.memory_space<vmem>>, vector<128x32xbf16>
    tpu.vector_store %arg16[%c0_27, %c64], %67 {strides = array<i32>} : memref<128x128xbf16, #tpu.memory_space<vmem>>, vector<128x32xbf16>,
    %69 = vector.extract_strided_slice %12 {offsets = [0, 96], sizes = [128, 32], strides = [1, 1]} : vector<128x128xbf16> to vector<128x32xbf16>
    %70 = vector.extract_strided_slice %13 {offsets = [0, 96], sizes = [128, 32], strides = [1, 1]} : vector<128x128xbf16> to vector<128x32xbf16>
    %71 = vector.extract_strided_slice %14 {offsets = [0, 96], sizes = [128, 32], strides = [1, 1]} : vector<128x128xbf16> to vector<128x32xbf16>
    %cst_28 = arith.constant dense<0.000000e+00> : vector<128x128xf32>
    %72 = tpu.matmul %69, %70, %cst_28 {dimension_numbers = #tpu.dot_dimension_numbers<[1], [1], [0], [0], [0, 0, 1, 0], [], []>} : vector<128x32xbf16>, vector<128x32xbf16>, vector<128x128xf32> -> vector<128x128xf32>
    %cst_29 = arith.constant dense<0xFF800000> : vector<128xf32>
    %73 = vector.multi_reduction <maximumf>, %72, %cst_29 [1] : vector<128x128xf32> to vector<128xf32>
    %74 = vector.shape_cast %73 : vector<128xf32> to vector<128x1xf32>
    %75 = vector.broadcast %74 : vector<128x1xf32> to vector<128x128xf32>
    %76 = arith.subf %72, %75 : vector<128x128xf32>
    %77 = math.exp %76 : vector<128x128xf32>
    %cst_30 = arith.constant dense<0.000000e+00> : vector<128xf32>
    %78 = vector.multi_reduction <add>, %77, %cst_30 [1] : vector<128x128xf32> to vector<128xf32>
    %79 = vector.shape_cast %78 : vector<128xf32> to vector<128x1xf32>
    %80 = arith.truncf %77 : vector<128x128xf32> to vector<128x128xbf16>
    %cst_31 = arith.constant dense<0.000000e+00> : vector<128x32xf32>
    %81 = tpu.matmul %80, %71, %cst_31 {dimension_numbers = #tpu.dot_dimension_numbers<[1], [0], [0], [1], [0, 0, 1, 1], [], []>} : vector<128x128xbf16>, vector<128x32xbf16>, vector<128x32xf32> -> vector<128x32xf32>
    %82 = tpu.reciprocal %79 {approx = true} : vector<128x1xf32> -> vector<128x1xf32>
    %83 = vector.broadcast %82 : vector<128x1xf32> to vector<128x32xf32>
    %84 = arith.mulf %81, %83 : vector<128x32xf32>
    %85 = arith.truncf %84 : vector<128x32xf32> to vector<128x32xbf16>
    %c0_32 = arith.constant 0 : index
    %c96 = arith.constant 96 : index
    %86 = vector.load %arg16[%c0_32, %c96] : memref<128x128xbf16, #tpu.memory_space<vmem>>, vector<128x32xbf16>
    tpu.vector_store %arg16[%c0_32, %c96], %85 {strides = array<i32>} : memref<128x128xbf16, #tpu.memory_space<vmem>>, vector<128x32xbf16>,
    %c0_33 = arith.constant 0 : index
    %c0_34 = arith.constant 0 : index
    %87 = vector.load %arg16[%c0_33, %c0_34] : memref<128x128xbf16, #tpu.memory_space<vmem>>, vector<128x128xbf16>
    %c0_35 = arith.constant 0 : index
    %c0_36 = arith.constant 0 : index
    %88 = vector.load %arg11[%c0_35, %c0_36] : memref<128x128xbf16, #tpu.memory_space<vmem>>, vector<128x128xbf16>
    %cst_37 = arith.constant dense<0.000000e+00> : vector<128x128xf32>
    %89 = tpu.matmul %87, %88, %cst_37 {dimension_numbers = #tpu.dot_dimension_numbers<[1], [0], [0], [1], [0, 0, 1, 1], [], []>} : vector<128x128xbf16>, vector<128x128xbf16>, vector<128x128xf32> -> vector<128x128xf32>
    %c0_38 = arith.constant 0 : index
    %c0_39 = arith.constant 0 : index
    %90 = vector.load %arg12[%c0_38, %c0_39] : memref<1x128xf32, #tpu.memory_space<vmem>>, vector<1x128xf32>
    %91 = vector.broadcast %90 : vector<1x128xf32> to vector<128x128xf32>
    %92 = arith.addf %89, %91 : vector<128x128xf32>
    %c0_40 = arith.constant 0 : index
    %c0_41 = arith.constant 0 : index
    %c0_42 = arith.constant 0 : index
    %93 = vector.load %arg13[%c0_40, %c0_41, %c0_42] : memref<1x128x128xf32, #tpu.memory_space<vmem>>, vector<1x128x128xf32>
    %94 = vector.shape_cast %93 : vector<1x128x128xf32> to vector<128x128xf32>
    %95 = vector.shape_cast %92 : vector<128x128xf32> to vector<1x128x128xf32>
    tpu.vector_store %arg13[%c0_40, %c0_41, %c0_42], %95 {strides = array<i32>} : memref<1x128x128xf32, #tpu.memory_space<vmem>>, vector<1x128x128xf32>,
    return
  }
  func.func @transform_0(%arg0: i32, %arg1: i32) -> (i32, i32, i32) {
    %c0_i32 = arith.constant 0 : i32
    %c0_i32_0 = arith.constant 0 : i32
    return %arg0, %arg1, %c0_i32 : i32, i32, i32
  }
  func.func @transform_1(%arg0: i32, %arg1: i32) -> (i32, i32, i32) {
    %c0_i32 = arith.constant 0 : i32
    %c0_i32_0 = arith.constant 0 : i32
    %c0_i32_1 = arith.constant 0 : i32
    return %arg0, %c0_i32, %c0_i32_0 : i32, i32, i32
  }
  func.func @transform_2(%arg0: i32, %arg1: i32) -> (i32, i32, i32) {
    %c0_i32 = arith.constant 0 : i32
    %c0_i32_0 = arith.constant 0 : i32
    %c0_i32_1 = arith.constant 0 : i32
    return %arg0, %c0_i32, %c0_i32_0 : i32, i32, i32
  }
  func.func @transform_3(%arg0: i32, %arg1: i32) -> (i32, i32) {
    %c0_i32 = arith.constant 0 : i32
    %c0_i32_0 = arith.constant 0 : i32
    %c0_i32_1 = arith.constant 0 : i32
    return %c0_i32, %c0_i32_0 : i32, i32
  }
  func.func @transform_4(%arg0: i32, %arg1: i32) -> (i32, i32) {
    %c0_i32 = arith.constant 0 : i32
    %c0_i32_0 = arith.constant 0 : i32
    %c0_i32_1 = arith.constant 0 : i32
    return %c0_i32, %c0_i32_0 : i32, i32
  }
  func.func @transform_5(%arg0: i32, %arg1: i32) -> (i32, i32) {
    %c0_i32 = arith.constant 0 : i32
    %c0_i32_0 = arith.constant 0 : i32
    %c0_i32_1 = arith.constant 0 : i32
    return %c0_i32, %c0_i32_0 : i32, i32
  }
  func.func @transform_6(%arg0: i32, %arg1: i32) -> (i32, i32) {
    %c0_i32 = arith.constant 0 : i32
    %c0_i32_0 = arith.constant 0 : i32
    %c0_i32_1 = arith.constant 0 : i32
    return %c0_i32, %c0_i32_0 : i32, i32
  }
  func.func @transform_7(%arg0: i32, %arg1: i32) -> (i32, i32) {
    %c0_i32 = arith.constant 0 : i32
    %c0_i32_0 = arith.constant 0 : i32
    %c0_i32_1 = arith.constant 0 : i32
    return %c0_i32, %c0_i32_0 : i32, i32
  }
  func.func @transform_8(%arg0: i32, %arg1: i32) -> (i32, i32) {
    %c0_i32 = arith.constant 0 : i32
    %c0_i32_0 = arith.constant 0 : i32
    %c0_i32_1 = arith.constant 0 : i32
    return %c0_i32, %c0_i32_0 : i32, i32
  }
  func.func @transform_9(%arg0: i32, %arg1: i32) -> (i32, i32) {
    %c0_i32 = arith.constant 0 : i32
    %c0_i32_0 = arith.constant 0 : i32
    %c0_i32_1 = arith.constant 0 : i32
    return %c0_i32, %c0_i32_0 : i32, i32
  }
  func.func @transform_10(%arg0: i32, %arg1: i32) -> (i32, i32) {
    %c0_i32 = arith.constant 0 : i32
    %c0_i32_0 = arith.constant 0 : i32
    %c0_i32_1 = arith.constant 0 : i32
    return %c0_i32, %c0_i32_0 : i32, i32
  }
  func.func @transform_11(%arg0: i32, %arg1: i32) -> (i32, i32, i32) {
    %c0_i32 = arith.constant 0 : i32
    %c0_i32_0 = arith.constant 0 : i32
    return %arg0, %arg1, %c0_i32 : i32, i32, i32
  }
}

</mosaic_0001>

<llo_original>
// kernel: tpu_custom_call.1
$region0: #{tpu_custom_call.1}
  #allocation0 [shape = 'u32[]', space=smem, size = 0x4, offset = 0x4, fixed_abs, tag = 'smem constant byte address 0x4 - core index']
  #allocation1 [shape = 'u32[144,128]{1,0:T(1,128)}', space=vmem, size = 0x12000, scoped, tag = 'internal scratch']
  #allocation2 [shape = 'bf16[128,128]{1,0:T(16,128)(2,1)}', space=vmem, size = 0x8000, scoped, tag = 'scratch operand']
  #allocation3 [shape = 'bf16[128,128]{1,0:T(16,128)(2,1)}', space=vmem, size = 0x8000, scoped, tag = 'scratch operand']
  #allocation4 [shape = 'bf16[128,128]{1,0:T(16,128)(2,1)}', space=vmem, size = 0x8000, scoped, tag = 'scratch operand']
  %s0 = inlined_call_operand.hbm [shape: bf16[2,128,128], index: 0, kind: input, shape index: {}]
  %s1 = inlined_call_operand.hbm [shape: bf16[2,128,128], index: 1, kind: input, shape index: {}]
  %s2 = inlined_call_operand.hbm [shape: bf16[2,128,128], index: 2, kind: input, shape index: {}]
  %s3 = inlined_call_operand.hbm [shape: bf16[128,128], index: 3, kind: input, shape index: {}]
  %s4 = inlined_call_operand.vmem [shape: f32[1,128], index: 4, kind: input, shape index: {}]
  %s5 = inlined_call_operand.hbm [shape: bf16[128,128], index: 5, kind: input, shape index: {}]
  %s6 = inlined_call_operand.vmem [shape: f32[1,128], index: 6, kind: input, shape index: {}]
  %s7 = inlined_call_operand.hbm [shape: bf16[128,128], index: 7, kind: input, shape index: {}]
  %s8 = inlined_call_operand.vmem [shape: f32[1,128], index: 8, kind: input, shape index: {}]
  %s9 = inlined_call_operand.hbm [shape: bf16[128,128], index: 9, kind: input, shape index: {}]
  %s10 = inlined_call_operand.vmem [shape: f32[1,128], index: 10, kind: input, shape index: {}]
  %s11 = inlined_call_operand.hbm [shape: f32[2,128,128], index: 11, kind: output, shape index: {}]
  %s12 = sld [smem:[#allocation0]]
  $region109: #{tpu_custom_call.1} parent=0
    _
  %s14 = ssub.s32 1, %s12
  %s15 = scalar_select 0, %s14, %s12
  $region1: #{tpu_custom_call.1} parent=0
    #allocation5 [shape = 'u8[65536]{0}', space=vmem, size = 0x10000, scoped, tag = 'input window, operand 0']
    #allocation6 [shape = 's32[2]{0}', space=sflag, size = 0x8, scoped, tag = 'scoped memory for tpu_custom_call.1']
    #allocation7 [shape = 's32[2]{0}', space=sflag, size = 0x8, scoped, tag = 'scoped memory for tpu_custom_call.1']
    #allocation8 [shape = 'u8[65536]{0}', space=vmem, size = 0x10000, scoped, tag = 'input window, operand 1']
    #allocation9 [shape = 's32[2]{0}', space=sflag, size = 0x8, scoped, tag = 'scoped memory for tpu_custom_call.1']
    #allocation10 [shape = 'u8[65536]{0}', space=vmem, size = 0x10000, scoped, tag = 'input window, operand 2']
    #allocation11 [shape = 'u8[32768]{0}', space=vmem, size = 0x8000, scoped, tag = 'input window, operand 3, single buffered']
    #allocation12 [shape = 's32[1]{0}', space=sflag, size = 0x4, scoped, tag = 'scoped memory for tpu_custom_call.1']
    #allocation13 [shape = 'u8[32768]{0}', space=vmem, size = 0x8000, scoped, tag = 'input window, operand 5, single buffered']
    #allocation14 [shape = 'u8[32768]{0}', space=vmem, size = 0x8000, scoped, tag = 'input window, operand 7, single buffered']
    #allocation15 [shape = 's32[1]{0}', space=sflag, size = 0x4, scoped, tag = 'scoped memory for tpu_custom_call.1']
    #allocation16 [shape = 'u8[32768]{0}', space=vmem, size = 0x8000, scoped, tag = 'input window, operand 9, single buffered']
    #allocation17 [shape = 'u8[131072]{0}', space=vmem, size = 0x20000, scoped, tag = 'output window, operand 0']
    %16 = vsyncpa [#allocation6], 0
    %s17 = scalar_lea.sflag [#allocation6], 1
    %18 = vsyncpa %s17, 0
    %19 = vsyncpa [#allocation9], 0
    %s20 = scalar_lea.sflag [#allocation9], 1
    %21 = vsyncpa %s20, 0
    %22 = vsyncpa [#allocation12], 0
    %23 = vsyncpa [#allocation15], 0
    %24 = vsyncpa [#allocation7], 0
    %s25 = scalar_lea.sflag [#allocation7], 1
    %26 = vsyncpa %s25, 0
    loop: start=0, step=1, limit=4
    $region2: #{tpu_custom_call.1} parent=1 // loop_pre_header
      _
    $region3: #{tpu_custom_call.1} parent=1 // loop_header
      %s28 = sphi 0, %s32
      %p29 = scmp.ge.s32.totalorder %s28, 4
      %s35 = sphi 0, %s47
      %s36 = sphi 0, %s43
      %s37 = sphi 0, %s35
      %s38 = sphi 0, %s36
      %s39 = sphi 0, %s37
      %s40 = sphi 0, %s38
      %s52 = sphi 0, %s54
      %s55 = sphi 0, %s52
      %s56 = sphi 0, %s55
      %s72 = sphi 0, %s56
      %s78 = sphi 0, %s80
      %s81 = sphi 0, %s78
      %s82 = sphi 0, %s81
      %s98 = sphi 0, %s82
      %s104 = sphi 0, %s106
      %s107 = sphi 0, %s104
      %s108 = sphi 0, %s107
      %s124 = sphi 0, %s108
      %s128 = sphi 0, %s128
      %s130 = sphi 0, %s128
      %s131 = sphi 0, %s130
      %s145 = sphi 0, %s131
      %s149 = sphi 0, %s149
      %s151 = sphi 0, %s149
      %s152 = sphi 0, %s151
      %s166 = sphi 0, %s152
      %s170 = sphi 0, %s170
      %s172 = sphi 0, %s170
      %s173 = sphi 0, %s172
      %s187 = sphi 0, %s173
      %s191 = sphi 0, %s191
      %s193 = sphi 0, %s191
      %s194 = sphi 0, %s193
      %s208 = sphi 0, %s194
      %s212 = sphi 0, %s212
      %s214 = sphi 0, %s212
      %s215 = sphi 0, %s214
      %s229 = sphi 0, %s215
      %s233 = sphi 0, %s233
      %s235 = sphi 0, %s233
      %s236 = sphi 0, %s235
      %s250 = sphi 0, %s236
      %s254 = sphi 0, %s254
      %s256 = sphi 0, %s254
      %s257 = sphi 0, %s256
      %s271 = sphi 0, %s257
      %s275 = sphi 0, %s275
      %s277 = sphi 0, %s275
      %s278 = sphi 0, %s277
      %s292 = sphi 0, %s278
      %s300 = sphi 0, %s302
      %s303 = sphi 0, %s300
      %s304 = sphi 0, %s303
      %s320 = sphi 0, %s304
    $region4: #{tpu_custom_call.1} parent=1 // loop_header_branch
      %31 = sbr.rel (%p29) target = $region8
    $region5: #{tpu_custom_call.1} parent=1 // loop_body
      %s33 = ssub.s32 %s28, 1
      %s34 = ssub.s32 %s28, 2
      %s41 = sadd.s32 1, %s36
      %p42 = scmp.ge.s32.totalorder %s41, 1
      %s43 = scalar_select %p42, 0, %s41
      %s44 = sadd.s32 1, %s35
      %s45 = scalar_select %p42, %s44, %s35
      %p46 = scmp.ge.s32.totalorder %s45, 2
      %s47 = scalar_select %p46, 0, %s45
      %s48 = ssub.s32 %s35, %s47
      %s49 = ssub.s32 %s36, %s43
      %s50 = sor.u32 %s48, %s49
      %p51 = scmp.eq.s32.totalorder %s50, 0
      %s53 = sadd.s32 %s52, 1
      %s54 = scalar_select %p51, %s52, %s53
      %p57 = pneg %p51
      %p58 = scmp.eq.s32.totalorder %s28, 1
      %p59 = por %p57, %p58
      %p60 = scmp.ne.s32.totalorder %s52, %s55
      %p61 = scmp.eq.s32.totalorder %s28, 0
      %p62 = por %p60, %p61
      %p63 = scmp.ne.s32.totalorder %s52, %s55
      %p64 = scmp.eq.s32.totalorder %s33, 1
      %p65 = por %p63, %p64
      %p66 = scmp.ne.s32.totalorder %s55, %s56
      %p67 = scmp.eq.s32.totalorder %s33, 0
      %p68 = por %p66, %p67
      %p69 = scmp.ne.s32.totalorder %s55, %s56
      %p70 = scmp.eq.s32.totalorder %s34, 1
      %p71 = por %p69, %p70
      %p73 = scmp.ne.s32.totalorder %s56, %s72
      %p74 = scmp.eq.s32.totalorder %s34, 0
      %p75 = por %p73, %p74
      %s76 = ssub.s32 %s35, %s47
      %p77 = scmp.eq.s32.totalorder %s76, 0
      %s79 = sadd.s32 %s78, 1
      %s80 = scalar_select %p77, %s78, %s79
      %p83 = pneg %p77
      %p84 = scmp.eq.s32.totalorder %s28, 1
      %p85 = por %p83, %p84
      %p86 = scmp.ne.s32.totalorder %s78, %s81
      %p87 = scmp.eq.s32.totalorder %s28, 0
      %p88 = por %p86, %p87
      %p89 = scmp.ne.s32.totalorder %s78, %s81
      %p90 = scmp.eq.s32.totalorder %s33, 1
      %p91 = por %p89, %p90
      %p92 = scmp.ne.s32.totalorder %s81, %s82
      %p93 = scmp.eq.s32.totalorder %s33, 0
      %p94 = por %p92, %p93
      %p95 = scmp.ne.s32.totalorder %s81, %s82
      %p96 = scmp.eq.s32.totalorder %s34, 1
      %p97 = por %p95, %p96
      %p99 = scmp.ne.s32.totalorder %s82, %s98
      %p100 = scmp.eq.s32.totalorder %s34, 0
      %p101 = por %p99, %p100
      %s102 = ssub.s32 %s35, %s47
      %p103 = scmp.eq.s32.totalorder %s102, 0
      %s105 = sadd.s32 %s104, 1
      %s106 = scalar_select %p103, %s104, %s105
      %p109 = pneg %p103
      %p110 = scmp.eq.s32.totalorder %s28, 1
      %p111 = por %p109, %p110
      %p112 = scmp.ne.s32.totalorder %s104, %s107
      %p113 = scmp.eq.s32.totalorder %s28, 0
      %p114 = por %p112, %p113
      %p115 = scmp.ne.s32.totalorder %s104, %s107
      %p116 = scmp.eq.s32.totalorder %s33, 1
      %p117 = por %p115, %p116
      %p118 = scmp.ne.s32.totalorder %s107, %s108
      %p119 = scmp.eq.s32.totalorder %s33, 0
      %p120 = por %p118, %p119
      %p121 = scmp.ne.s32.totalorder %s107, %s108
      %p122 = scmp.eq.s32.totalorder %s34, 1
      %p123 = por %p121, %p122
      %p125 = scmp.ne.s32.totalorder %s108, %s124
      %p126 = scmp.eq.s32.totalorder %s34, 0
      %p127 = por %p125, %p126
      %s129 = sadd.s32 %s128, 1
      %p132 = scmp.eq.s32.totalorder %s28, 1
      %p133 = scmp.ne.s32.totalorder %s128, %s130
      %p134 = scmp.eq.s32.totalorder %s28, 0
      %p135 = por %p133, %p134
      %p136 = scmp.ne.s32.totalorder %s128, %s130
      %p137 = scmp.eq.s32.totalorder %s33, 1
      %p138 = por %p136, %p137
      %p139 = scmp.ne.s32.totalorder %s130, %s131
      %p140 = scmp.eq.s32.totalorder %s33, 0
      %p141 = por %p139, %p140
      %p142 = scmp.ne.s32.totalorder %s130, %s131
      %p143 = scmp.eq.s32.totalorder %s34, 1
      %p144 = por %p142, %p143
      %p146 = scmp.ne.s32.totalorder %s131, %s145
      %p147 = scmp.eq.s32.totalorder %s34, 0
      %p148 = por %p146, %p147
      %s150 = sadd.s32 %s149, 1
      %p153 = scmp.eq.s32.totalorder %s28, 1
      %p154 = scmp.ne.s32.totalorder %s149, %s151
      %p155 = scmp.eq.s32.totalorder %s28, 0
      %p156 = por %p154, %p155
      %p157 = scmp.ne.s32.totalorder %s149, %s151
      %p158 = scmp.eq.s32.totalorder %s33, 1
      %p159 = por %p157, %p158
      %p160 = scmp.ne.s32.totalorder %s151, %s152
      %p161 = scmp.eq.s32.totalorder %s33, 0
      %p162 = por %p160, %p161
      %p163 = scmp.ne.s32.totalorder %s151, %s152
      %p164 = scmp.eq.s32.totalorder %s34, 1
      %p165 = por %p163, %p164
      %p167 = scmp.ne.s32.totalorder %s152, %s166
      %p168 = scmp.eq.s32.totalorder %s34, 0
      %p169 = por %p167, %p168
      %s171 = sadd.s32 %s170, 1
      %p174 = scmp.eq.s32.totalorder %s28, 1
      %p175 = scmp.ne.s32.totalorder %s170, %s172
      %p176 = scmp.eq.s32.totalorder %s28, 0
      %p177 = por %p175, %p176
      %p178 = scmp.ne.s32.totalorder %s170, %s172
      %p179 = scmp.eq.s32.totalorder %s33, 1
      %p180 = por %p178, %p179
      %p181 = scmp.ne.s32.totalorder %s172, %s173
      %p182 = scmp.eq.s32.totalorder %s33, 0
      %p183 = por %p181, %p182
      %p184 = scmp.ne.s32.totalorder %s172, %s173
      %p185 = scmp.eq.s32.totalorder %s34, 1
      %p186 = por %p184, %p185
      %p188 = scmp.ne.s32.totalorder %s173, %s187
      %p189 = scmp.eq.s32.totalorder %s34, 0
      %p190 = por %p188, %p189
      %s192 = sadd.s32 %s191, 1
      %p195 = scmp.eq.s32.totalorder %s28, 1
      %p196 = scmp.ne.s32.totalorder %s191, %s193
      %p197 = scmp.eq.s32.totalorder %s28, 0
      %p198 = por %p196, %p197
      %p199 = scmp.ne.s32.totalorder %s191, %s193
      %p200 = scmp.eq.s32.totalorder %s33, 1
      %p201 = por %p199, %p200
      %p202 = scmp.ne.s32.totalorder %s193, %s194
      %p203 = scmp.eq.s32.totalorder %s33, 0
      %p204 = por %p202, %p203
      %p205 = scmp.ne.s32.totalorder %s193, %s194
      %p206 = scmp.eq.s32.totalorder %s34, 1
      %p207 = por %p205, %p206
      %p209 = scmp.ne.s32.totalorder %s194, %s208
      %p210 = scmp.eq.s32.totalorder %s34, 0
      %p211 = por %p209, %p210
      %s213 = sadd.s32 %s212, 1
      %p216 = scmp.eq.s32.totalorder %s28, 1
      %p217 = scmp.ne.s32.totalorder %s212, %s214
      %p218 = scmp.eq.s32.totalorder %s28, 0
      %p219 = por %p217, %p218
      %p220 = scmp.ne.s32.totalorder %s212, %s214
      %p221 = scmp.eq.s32.totalorder %s33, 1
      %p222 = por %p220, %p221
      %p223 = scmp.ne.s32.totalorder %s214, %s215
      %p224 = scmp.eq.s32.totalorder %s33, 0
      %p225 = por %p223, %p224
      %p226 = scmp.ne.s32.totalorder %s214, %s215
      %p227 = scmp.eq.s32.totalorder %s34, 1
      %p228 = por %p226, %p227
      %p230 = scmp.ne.s32.totalorder %s215, %s229
      %p231 = scmp.eq.s32.totalorder %s34, 0
      %p232 = por %p230, %p231
      %s234 = sadd.s32 %s233, 1
      %p237 = scmp.eq.s32.totalorder %s28, 1
      %p238 = scmp.ne.s32.totalorder %s233, %s235
      %p239 = scmp.eq.s32.totalorder %s28, 0
      %p240 = por %p238, %p239
      %p241 = scmp.ne.s32.totalorder %s233, %s235
      %p242 = scmp.eq.s32.totalorder %s33, 1
      %p243 = por %p241, %p242
      %p244 = scmp.ne.s32.totalorder %s235, %s236
      %p245 = scmp.eq.s32.totalorder %s33, 0
      %p246 = por %p244, %p245
      %p247 = scmp.ne.s32.totalorder %s235, %s236
      %p248 = scmp.eq.s32.totalorder %s34, 1
      %p249 = por %p247, %p248
      %p251 = scmp.ne.s32.totalorder %s236, %s250
      %p252 = scmp.eq.s32.totalorder %s34, 0
      %p253 = por %p251, %p252
      %s255 = sadd.s32 %s254, 1
      %p258 = scmp.eq.s32.totalorder %s28, 1
      %p259 = scmp.ne.s32.totalorder %s254, %s256
      %p260 = scmp.eq.s32.totalorder %s28, 0
      %p261 = por %p259, %p260
      %p262 = scmp.ne.s32.totalorder %s254, %s256
      %p263 = scmp.eq.s32.totalorder %s33, 1
      %p264 = por %p262, %p263
      %p265 = scmp.ne.s32.totalorder %s256, %s257
      %p266 = scmp.eq.s32.totalorder %s33, 0
      %p267 = por %p265, %p266
      %p268 = scmp.ne.s32.totalorder %s256, %s257
      %p269 = scmp.eq.s32.totalorder %s34, 1
      %p270 = por %p268, %p269
      %p272 = scmp.ne.s32.totalorder %s257, %s271
      %p273 = scmp.eq.s32.totalorder %s34, 0
      %p274 = por %p272, %p273
      %s276 = sadd.s32 %s275, 1
      %p279 = scmp.eq.s32.totalorder %s28, 1
      %p280 = scmp.ne.s32.totalorder %s275, %s277
      %p281 = scmp.eq.s32.totalorder %s28, 0
      %p282 = por %p280, %p281
      %p283 = scmp.ne.s32.totalorder %s275, %s277
      %p284 = scmp.eq.s32.totalorder %s33, 1
      %p285 = por %p283, %p284
      %p286 = scmp.ne.s32.totalorder %s277, %s278
      %p287 = scmp.eq.s32.totalorder %s33, 0
      %p288 = por %p286, %p287
      %p289 = scmp.ne.s32.totalorder %s277, %s278
      %p290 = scmp.eq.s32.totalorder %s34, 1
      %p291 = por %p289, %p290
      %p293 = scmp.ne.s32.totalorder %s278, %s292
      %p294 = scmp.eq.s32.totalorder %s34, 0
      %p295 = por %p293, %p294
      %s296 = ssub.s32 %s35, %s47
      %s297 = ssub.s32 %s36, %s43
      %s298 = sor.u32 %s296, %s297
      %p299 = scmp.eq.s32.totalorder %s298, 0
      %s301 = sadd.s32 %s300, 1
      %s302 = scalar_select %p299, %s300, %s301
      %p305 = pneg %p299
      %p306 = scmp.eq.s32.totalorder %s28, 1
      %p307 = por %p305, %p306
      %p308 = scmp.ne.s32.totalorder %s300, %s303
      %p309 = scmp.eq.s32.totalorder %s28, 0
      %p310 = por %p308, %p309
      %p311 = scmp.ne.s32.totalorder %s300, %s303
      %p312 = scmp.eq.s32.totalorder %s33, 1
      %p313 = por %p311, %p312
      %p314 = scmp.ne.s32.totalorder %s303, %s304
      %p315 = scmp.eq.s32.totalorder %s33, 0
      %p316 = por %p314, %p315
      %p317 = scmp.ne.s32.totalorder %s303, %s304
      %p318 = scmp.eq.s32.totalorder %s34, 1
      %p319 = por %p317, %p318
      %p321 = scmp.ne.s32.totalorder %s304, %s320
      %p322 = scmp.eq.s32.totalorder %s34, 0
      %p323 = por %p321, %p322
      %p324 = scmp.le.s32.totalorder 1, %s28
      %p325 = scmp.lt.s32.totalorder %s28, 3
      %p326 = pnand %p324, %p325
      %p327 = pneg %p326
      // Predicated region
      $region9: #{tpu_custom_call.1} parent=5 // pred_check
        _
      $region10: #{tpu_custom_call.1} parent=5 // pred_check_branch
        %329 = sbr.rel (%p326) target = $region12
      $region11: #{tpu_custom_call.1} parent=5 // pred_region
        %s330 = ssub.s32 %s28, 1
        // Predicated region
        $region13: #{tpu_custom_call.1} parent=11 // pred_check
          %p331 = pneg %p141
        $region14: #{tpu_custom_call.1} parent=11 // pred_check_branch
          %333 = sbr.rel (%p331) target = $region16
        $region15: #{tpu_custom_call.1} parent=11 // pred_region
          %s335 = ssub.s32 1024, 1024
          %336 = vsyncadd [#allocation12], %s335
          %s337 = sshll.u32 [#allocation11], 4
          %s338 = int_to_ptr.vmem [resolvable:$true] %s337
          %343 = dma.hbm_to_vmem [thread:$0]  %s3, 1024, %s338, [#allocation12], 64, 64, 4
        $region16: #{tpu_custom_call.1} parent=11 // pred_fallthru
          _
        // Predicated region
        $region17: #{tpu_custom_call.1} parent=11 // pred_check
          %p344 = pneg %p162
        $region18: #{tpu_custom_call.1} parent=11 // pred_check_branch
          %346 = sbr.rel (%p344) target = $region20
        $region19: #{tpu_custom_call.1} parent=11 // pred_region
          _
        $region20: #{tpu_custom_call.1} parent=11 // pred_fallthru
          _
        // Predicated region
        $region21: #{tpu_custom_call.1} parent=11 // pred_check
          %p347 = pneg %p183
        $region22: #{tpu_custom_call.1} parent=11 // pred_check_branch
          %349 = sbr.rel (%p347) target = $region24
        $region23: #{tpu_custom_call.1} parent=11 // pred_region
          %s351 = ssub.s32 1024, 1024
          %352 = vsyncadd [#allocation12], %s351
          %s353 = sshll.u32 [#allocation13], 4
          %s354 = int_to_ptr.vmem [resolvable:$true] %s353
          %359 = dma.hbm_to_vmem [thread:$0]  %s5, 1024, %s354, [#allocation12], 64, 64, 4
        $region24: #{tpu_custom_call.1} parent=11 // pred_fallthru
          _
        // Predicated region
        $region25: #{tpu_custom_call.1} parent=11 // pred_check
          %p360 = pneg %p204
        $region26: #{tpu_custom_call.1} parent=11 // pred_check_branch
          %362 = sbr.rel (%p360) target = $region28
        $region27: #{tpu_custom_call.1} parent=11 // pred_region
          _
        $region28: #{tpu_custom_call.1} parent=11 // pred_fallthru
          _
        // Predicated region
        $region29: #{tpu_custom_call.1} parent=11 // pred_check
          %p363 = pneg %p225
        $region30: #{tpu_custom_call.1} parent=11 // pred_check_branch
          %365 = sbr.rel (%p363) target = $region32
        $region31: #{tpu_custom_call.1} parent=11 // pred_region
          %s367 = ssub.s32 1024, 1024
          %368 = vsyncadd [#allocation15], %s367
          %s369 = sshll.u32 [#allocation14], 4
          %s370 = int_to_ptr.vmem [resolvable:$true] %s369
          %375 = dma.hbm_to_vmem [thread:$0]  %s7, 1024, %s370, [#allocation15], 64, 64, 4
        $region32: #{tpu_custom_call.1} parent=11 // pred_fallthru
          _
        // Predicated region
        $region33: #{tpu_custom_call.1} parent=11 // pred_check
          %p376 = pneg %p246
        $region34: #{tpu_custom_call.1} parent=11 // pred_check_branch
          %378 = sbr.rel (%p376) target = $region36
        $region35: #{tpu_custom_call.1} parent=11 // pred_region
          _
        $region36: #{tpu_custom_call.1} parent=11 // pred_fallthru
          _
        // Predicated region
        $region37: #{tpu_custom_call.1} parent=11 // pred_check
          %p379 = pneg %p267
        $region38: #{tpu_custom_call.1} parent=11 // pred_check_branch
          %381 = sbr.rel (%p379) target = $region40
        $region39: #{tpu_custom_call.1} parent=11 // pred_region
          %s383 = ssub.s32 1024, 1024
          %384 = vsyncadd [#allocation15], %s383
          %s385 = sshll.u32 [#allocation16], 4
          %s386 = int_to_ptr.vmem [resolvable:$true] %s385
          %391 = dma.hbm_to_vmem [thread:$0]  %s9, 1024, %s386, [#allocation15], 64, 64, 4
        $region40: #{tpu_custom_call.1} parent=11 // pred_fallthru
          _
        // Predicated region
        $region41: #{tpu_custom_call.1} parent=11 // pred_check
          %p392 = pneg %p288
        $region42: #{tpu_custom_call.1} parent=11 // pred_check_branch
          %394 = sbr.rel (%p392) target = $region44
        $region43: #{tpu_custom_call.1} parent=11 // pred_region
          _
        $region44: #{tpu_custom_call.1} parent=11 // pred_fallthru
          _
      $region12: #{tpu_custom_call.1} parent=5 // pred_fallthru
        _
      %p395 = scmp.lt.s32.totalorder %s28, 2
      // Predicated region
      $region45: #{tpu_custom_call.1} parent=5 // pred_check
        %p396 = pneg %p395
      $region46: #{tpu_custom_call.1} parent=5 // pred_check_branch
        %398 = sbr.rel (%p396) target = $region48
      $region47: #{tpu_custom_call.1} parent=5 // pred_region
        // Predicated region
        $region49: #{tpu_custom_call.1} parent=47 // pred_check
          %p399 = pneg %p62
        $region50: #{tpu_custom_call.1} parent=47 // pred_check_branch
          %401 = sbr.rel (%p399) target = $region52
        $region51: #{tpu_custom_call.1} parent=47 // pred_region
          %s402 = sand.u32 %s52, 1
          %s403 = scalar_lea.sflag [#allocation6], %s402
          %s404 = sand.u32 %s52, 1
          %s405 = smul.addr %s404, 64
          %s406 = scalar_lea.vmem [#allocation5], %s405
          %s407 = smul.u32 16, %s36
          %s409 = ssub.s32 1024, 1024
          %410 = vsyncadd %s403, %s409
          %s411 = smul.addr %s35, 16
          %s412 = sadd.s32 %s407, %s411
          %s413 = smul.addr %s412, 64
          %s414 = scalar_lea.hbm %s0, %s413
          %s415 = sshll.u32 %s406, 4
          %s416 = int_to_ptr.vmem [resolvable:$true] %s415
          %421 = dma.hbm_to_vmem [thread:$0]  %s414, 1024, %s416, %s403, 64, 64, 4
        $region52: #{tpu_custom_call.1} parent=47 // pred_fallthru
          _
        // Predicated region
        $region53: #{tpu_custom_call.1} parent=47 // pred_check
          %p422 = pneg %p88
        $region54: #{tpu_custom_call.1} parent=47 // pred_check_branch
          %424 = sbr.rel (%p422) target = $region56
        $region55: #{tpu_custom_call.1} parent=47 // pred_region
          %s425 = sand.u32 %s28, 1
          %s426 = scalar_lea.sflag [#allocation9], %s425
          %s427 = sand.u32 %s78, 1
          %s428 = smul.addr %s427, 64
          %s429 = scalar_lea.vmem [#allocation8], %s428
          %s431 = ssub.s32 1024, 1024
          %432 = vsyncadd %s426, %s431
          %s433 = smul.addr %s35, 16
          %s434 = smul.addr %s433, 64
          %s435 = scalar_lea.hbm %s1, %s434
          %s436 = sshll.u32 %s429, 4
          %s437 = int_to_ptr.vmem [resolvable:$true] %s436
          %442 = dma.hbm_to_vmem [thread:$0]  %s435, 1024, %s437, %s426, 64, 64, 4
        $region56: #{tpu_custom_call.1} parent=47 // pred_fallthru
          _
        // Predicated region
        $region57: #{tpu_custom_call.1} parent=47 // pred_check
          %p443 = pneg %p114
        $region58: #{tpu_custom_call.1} parent=47 // pred_check_branch
          %445 = sbr.rel (%p443) target = $region60
        $region59: #{tpu_custom_call.1} parent=47 // pred_region
          %s446 = sand.u32 %s28, 1
          %s447 = scalar_lea.sflag [#allocation9], %s446
          %s448 = sand.u32 %s104, 1
          %s449 = smul.addr %s448, 64
          %s450 = scalar_lea.vmem [#allocation10], %s449
          %s452 = ssub.s32 1024, 1024
          %453 = vsyncadd %s447, %s452
          %s454 = smul.addr %s35, 16
          %s455 = smul.addr %s454, 64
          %s456 = scalar_lea.hbm %s2, %s455
          %s457 = sshll.u32 %s450, 4
          %s458 = int_to_ptr.vmem [resolvable:$true] %s457
          %463 = dma.hbm_to_vmem [thread:$0]  %s456, 1024, %s458, %s447, 64, 64, 4
        $region60: #{tpu_custom_call.1} parent=47 // pred_fallthru
          _
      $region48: #{tpu_custom_call.1} parent=5 // pred_fallthru
        _
      %p464 = scmp.le.s32.totalorder 1, %s28
      %p465 = scmp.lt.s32.totalorder %s28, 3
      %p466 = pnand %p464, %p465
      %p467 = pneg %p466
      // Predicated region
      $region61: #{tpu_custom_call.1} parent=5 // pred_check
        _
      $region62: #{tpu_custom_call.1} parent=5 // pred_check_branch
        %469 = sbr.rel (%p466) target = $region64
      $region63: #{tpu_custom_call.1} parent=5 // pred_region
        %s470 = ssub.s32 %s28, 1
        %s471 = sand.u32 %s55, 1
        %s472 = scalar_lea.sflag [#allocation6], %s471
        %s473 = sand.u32 %s55, 1
        %s474 = smul.addr %s473, 64
        %s475 = scalar_lea.vmem [#allocation5], %s474
        // Predicated region
        $region65: #{tpu_custom_call.1} parent=63 // pred_check
          %p476 = pneg %p68
        $region66: #{tpu_custom_call.1} parent=63 // pred_check_branch
          %478 = sbr.rel (%p476) target = $region68
        $region67: #{tpu_custom_call.1} parent=63 // pred_region
          %479 = dma.done %s472, 1024
        $region68: #{tpu_custom_call.1} parent=63 // pred_fallthru
          _
        %s480 = sand.u32 %s33, 1
        %s481 = scalar_lea.sflag [#allocation9], %s480
        %s482 = sand.u32 %s81, 1
        %s483 = smul.addr %s482, 64
        %s484 = scalar_lea.vmem [#allocation8], %s483
        // Predicated region
        $region69: #{tpu_custom_call.1} parent=63 // pred_check
          %p485 = pneg %p94
        $region70: #{tpu_custom_call.1} parent=63 // pred_check_branch
          %487 = sbr.rel (%p485) target = $region72
        $region71: #{tpu_custom_call.1} parent=63 // pred_region
          %488 = dma.done %s481, 1024
        $region72: #{tpu_custom_call.1} parent=63 // pred_fallthru
          _
        %s489 = sand.u32 %s33, 1
        %s490 = scalar_lea.sflag [#allocation9], %s489
        %s491 = sand.u32 %s107, 1
        %s492 = smul.addr %s491, 64
        %s493 = scalar_lea.vmem [#allocation10], %s492
        // Predicated region
        $region73: #{tpu_custom_call.1} parent=63 // pred_check
          %p494 = pneg %p120
        $region74: #{tpu_custom_call.1} parent=63 // pred_check_branch
          %496 = sbr.rel (%p494) target = $region76
        $region75: #{tpu_custom_call.1} parent=63 // pred_region
          %497 = dma.done %s490, 1024
        $region76: #{tpu_custom_call.1} parent=63 // pred_fallthru
          _
        // Predicated region
        $region77: #{tpu_custom_call.1} parent=63 // pred_check
          %p498 = pneg %p141
        $region78: #{tpu_custom_call.1} parent=63 // pred_check_branch
          %500 = sbr.rel (%p498) target = $region80
        $region79: #{tpu_custom_call.1} parent=63 // pred_region
          %501 = dma.done [#allocation12], 1024
        $region80: #{tpu_custom_call.1} parent=63 // pred_fallthru
          _
        // Predicated region
        $region81: #{tpu_custom_call.1} parent=63 // pred_check
          %p502 = pneg %p183
        $region82: #{tpu_custom_call.1} parent=63 // pred_check_branch
          %504 = sbr.rel (%p502) target = $region84
        $region83: #{tpu_custom_call.1} parent=63 // pred_region
          %505 = dma.done [#allocation12], 1024
        $region84: #{tpu_custom_call.1} parent=63 // pred_fallthru
          _
        // Predicated region
        $region85: #{tpu_custom_call.1} parent=63 // pred_check
          %p506 = pneg %p225
        $region86: #{tpu_custom_call.1} parent=63 // pred_check_branch
          %508 = sbr.rel (%p506) target = $region88
        $region87: #{tpu_custom_call.1} parent=63 // pred_region
          %509 = dma.done [#allocation15], 1024
        $region88: #{tpu_custom_call.1} parent=63 // pred_fallthru
          _
        // Predicated region
        $region89: #{tpu_custom_call.1} parent=63 // pred_check
          %p510 = pneg %p267
        $region90: #{tpu_custom_call.1} parent=63 // pred_check_branch
          %512 = sbr.rel (%p510) target = $region92
        $region91: #{tpu_custom_call.1} parent=63 // pred_region
          %513 = dma.done [#allocation15], 1024
        $region92: #{tpu_custom_call.1} parent=63 // pred_fallthru
          _
        %s514 = sand.u32 %s55, 1
        %s515 = scalar_lea.sflag [#allocation6], %s514
        %s516 = sand.u32 %s55, 1
        %s517 = smul.addr %s516, 64
        %s518 = scalar_lea.vmem [#allocation5], %s517
        %p519 = pneg %p68
        %p520 = pneg %p65
        %s521 = sand.u32 %s33, 1
        %s522 = scalar_lea.sflag [#allocation9], %s521
        %s523 = sand.u32 %s81, 1
        %s524 = smul.addr %s523, 64
        %s525 = scalar_lea.vmem [#allocation8], %s524
        %p526 = pneg %p94
        %p527 = pneg %p91
        %s528 = sand.u32 %s33, 1
        %s529 = scalar_lea.sflag [#allocation9], %s528
        %s530 = sand.u32 %s107, 1
        %s531 = smul.addr %s530, 64
        %s532 = scalar_lea.vmem [#allocation10], %s531
        %p533 = pneg %p120
        %p534 = pneg %p117
        %p535 = pneg %p141
        %p536 = pneg %p138
        %p537 = pneg %p162
        %p538 = pneg %p159
        %p539 = pneg %p183
        %p540 = pneg %p180
        %p541 = pneg %p204
        %p542 = pneg %p201
        %p543 = pneg %p225
        %p544 = pneg %p222
        %p545 = pneg %p246
        %p546 = pneg %p243
        %p547 = pneg %p267
        %p548 = pneg %p264
        %p549 = pneg %p288
        %p550 = pneg %p285
        %p551 = pneg %p316
        %p552 = pneg %p313
        %s553 = sand.u32 %s303, 1
        %s554 = scalar_lea.sflag [#allocation7], %s553
        %s555 = sand.u32 %s303, 1
        %s556 = smul.addr %s555, 128
        %s557 = scalar_lea.vmem [#allocation17], %s556
        %s558 = smul.u32 16, %s38
        %s559 = smul.u32 16, %s38
        %p561 = scmp.eq.s32.totalorder %s38, 0
        // Predicated region
        $region93: #{tpu_custom_call.1} parent=63 // pred_check
          %p562 = pneg %p561
        $region94: #{tpu_custom_call.1} parent=63 // pred_check_branch
          %564 = sbr.rel (%p562) target = $region96
        $region95: #{tpu_custom_call.1} parent=63 // pred_region
          %v565 = vld [vmem:[%s484] sm:$0xf]
          %v566 = vld [vmem:[%s484 + $0x4] sm:$0xf]
          %v567 = vld [vmem:[%s484 + $0x8] sm:$0xf]
          %v568 = vld [vmem:[%s484 + $0xc] sm:$0xf]
          %v569 = vld [vmem:[%s484 + $0x10] sm:$0xf]
          %v570 = vld [vmem:[%s484 + $0x14] sm:$0xf]
          %v571 = vld [vmem:[%s484 + $0x18] sm:$0xf]
          %v572 = vld [vmem:[%s484 + $0x1c] sm:$0xf]
          %v573 = vld [vmem:[%s484 + $0x20] sm:$0xf]
          %v574 = vld [vmem:[%s484 + $0x24] sm:$0xf]
          %v575 = vld [vmem:[%s484 + $0x28] sm:$0xf]
          %v576 = vld [vmem:[%s484 + $0x2c] sm:$0xf]
          %v577 = vld [vmem:[%s484 + $0x30] sm:$0xf]
          %v578 = vld [vmem:[%s484 + $0x34] sm:$0xf]
          %v579 = vld [vmem:[%s484 + $0x38] sm:$0xf]
          %v580 = vld [vmem:[%s484 + $0x3c] sm:$0xf]
          %v581 = vld [vmem:[%s493] sm:$0xf]
          %v582 = vld [vmem:[%s493 + $0x4] sm:$0xf]
          %v583 = vld [vmem:[%s493 + $0x8] sm:$0xf]
          %v584 = vld [vmem:[%s493 + $0xc] sm:$0xf]
          %v585 = vld [vmem:[%s493 + $0x10] sm:$0xf]
          %v586 = vld [vmem:[%s493 + $0x14] sm:$0xf]
          %v587 = vld [vmem:[%s493 + $0x18] sm:$0xf]
          %v588 = vld [vmem:[%s493 + $0x1c] sm:$0xf]
          %v589 = vld [vmem:[%s493 + $0x20] sm:$0xf]
          %v590 = vld [vmem:[%s493 + $0x24] sm:$0xf]
          %v591 = vld [vmem:[%s493 + $0x28] sm:$0xf]
          %v592 = vld [vmem:[%s493 + $0x2c] sm:$0xf]
          %v593 = vld [vmem:[%s493 + $0x30] sm:$0xf]
          %v594 = vld [vmem:[%s493 + $0x34] sm:$0xf]
          %v595 = vld [vmem:[%s493 + $0x38] sm:$0xf]
          %v596 = vld [vmem:[%s493 + $0x3c] sm:$0xf]
          %v597 = vld [vmem:[#allocation13] sm:$0xf]
          %v598 = vld [vmem:[#allocation13 + $0x4] sm:$0xf]
          %v599 = vld [vmem:[#allocation13 + $0x8] sm:$0xf]
          %v600 = vld [vmem:[#allocation13 + $0xc] sm:$0xf]
          %v601 = vld [vmem:[#allocation13 + $0x10] sm:$0xf]
          %v602 = vld [vmem:[#allocation13 + $0x14] sm:$0xf]
          %v603 = vld [vmem:[#allocation13 + $0x18] sm:$0xf]
          %v604 = vld [vmem:[#allocation13 + $0x1c] sm:$0xf]
          %v605 = vld [vmem:[#allocation13 + $0x20] sm:$0xf]
          %v606 = vld [vmem:[#allocation13 + $0x24] sm:$0xf]
          %v607 = vld [vmem:[#allocation13 + $0x28] sm:$0xf]
          %v608 = vld [vmem:[#allocation13 + $0x2c] sm:$0xf]
          %v609 = vld [vmem:[#allocation13 + $0x30] sm:$0xf]
          %v610 = vld [vmem:[#allocation13 + $0x34] sm:$0xf]
          %v611 = vld [vmem:[#allocation13 + $0x38] sm:$0xf]
          %v612 = vld [vmem:[#allocation13 + $0x3c] sm:$0xf]
          %v613 = vld [vmem:[%s6] sm:$0x1]
          %v615 = vlaneseq
          %v616 = vshrl.u32 %v615, 7
          %v617 = vsub.s32 0, %v616
          %v618 = vrot.slane %v613, %v617
          %v636 = vunpack.c.l.b16 %v565
          %v637 = vunpack.c.l.b16 %v566
          %v638 = vunpack.c.l.b16 %v567
          %v639 = vunpack.c.l.b16 %v568
          %v640 = vunpack.c.l.b16 %v569
          %v641 = vunpack.c.l.b16 %v570
          %v642 = vunpack.c.l.b16 %v571
          %v643 = vunpack.c.l.b16 %v572
          %v644 = vunpack.c.l.b16 %v573
          %v645 = vunpack.c.l.b16 %v574
          %v646 = vunpack.c.l.b16 %v575
          %v647 = vunpack.c.l.b16 %v576
          %v648 = vunpack.c.l.b16 %v577
          %v649 = vunpack.c.l.b16 %v578
          %v650 = vunpack.c.l.b16 %v579
          %v651 = vunpack.c.l.b16 %v580
          %v652 = vpack.c.b16 %v637, %v636
          %v653 = vpack.c.b16 %v639, %v638
          %v654 = vpack.c.b16 %v641, %v640
          %v655 = vpack.c.b16 %v643, %v642
          %v656 = vpack.c.b16 %v645, %v644
          %v657 = vpack.c.b16 %v647, %v646
          %v658 = vpack.c.b16 %v649, %v648
          %v659 = vpack.c.b16 %v651, %v650
          %v684 = vunpack.c.l.b16 %v597
          %v685 = vunpack.c.l.b16 %v598
          %v686 = vunpack.c.l.b16 %v599
          %v687 = vunpack.c.l.b16 %v600
          %v688 = vunpack.c.l.b16 %v601
          %v689 = vunpack.c.l.b16 %v602
          %v690 = vunpack.c.l.b16 %v603
          %v691 = vunpack.c.l.b16 %v604
          %v692 = vunpack.c.l.b16 %v605
          %v693 = vunpack.c.l.b16 %v606
          %v694 = vunpack.c.l.b16 %v607
          %v695 = vunpack.c.l.b16 %v608
          %v696 = vunpack.c.l.b16 %v609
          %v697 = vunpack.c.l.b16 %v610
          %v698 = vunpack.c.l.b16 %v611
          %v699 = vunpack.c.l.b16 %v612
          %v700 = vpack.c.b16 %v685, %v684
          %v701 = vpack.c.b16 %v687, %v686
          %v702 = vpack.c.b16 %v689, %v688
          %v703 = vpack.c.b16 %v691, %v690
          %v704 = vpack.c.b16 %v693, %v692
          %v705 = vpack.c.b16 %v695, %v694
          %v706 = vpack.c.b16 %v697, %v696
          %v707 = vpack.c.b16 %v699, %v698
          %716 = vmatprep.subr.bf16.mxu0 0
          %717 = vmatpush1.bf16.msra.mxu0 %v700
          %718 = vmatprep.subr.bf16.mxu0 0
          %719 = vmatpush1.bf16.msra.mxu0 %v701
          %720 = vmatprep.subr.bf16.mxu0 0
          %721 = vmatpush1.bf16.msra.mxu0 %v702
          %722 = vmatprep.subr.bf16.mxu0 0
          %723 = vmatpush1.bf16.msra.mxu0 %v703
          %724 = vmatprep.subr.bf16.mxu0 0
          %725 = vmatpush1.bf16.msra.mxu0 %v704
          %726 = vmatprep.subr.bf16.mxu0 0
          %727 = vmatpush1.bf16.msra.mxu0 %v705
          %728 = vmatprep.subr.bf16.mxu0 0
          %729 = vmatpush1.bf16.msra.mxu0 %v706
          %730 = vmatprep.subr.bf16.mxu0 0
          %731 = vmatpush1.bf16.msra.mxu0 %v707
          %732 = vmatprep.subr.bf16.mxu0 0
          %733 = vmatpush1.bf16.msra.mxu0 0
          %734 = vmatprep.subr.bf16.mxu0 0
          %735 = vmatpush1.bf16.msra.mxu0 0
          %736 = vmatprep.subr.bf16.mxu0 0
          %737 = vmatpush1.bf16.msra.mxu0 0
          %738 = vmatprep.subr.bf16.mxu0 0
          %739 = vmatpush1.bf16.msra.mxu0 0
          %740 = vmatprep.subr.bf16.mxu0 0
          %741 = vmatpush1.bf16.msra.mxu0 0
          %742 = vmatprep.subr.bf16.mxu0 0
          %743 = vmatpush1.bf16.msra.mxu0 0
          %744 = vmatprep.subr.bf16.mxu0 0
          %745 = vmatpush1.bf16.msra.mxu0 0
          %746 = vmatprep.subr.bf16.mxu0 0
          %747 = vmatpush1.bf16.msra.mxu0 0
          %748 = vmatprep.mubr.bf16.mxu0 0
          %749 = vmatmul.mubr.bf16.gmra.mrb[0].mxu0 %v652
          %v750 = vpop.f32.mrb[0].mxu0
          %v751 = vadd.f32 %v618, %v750
          %v752 = vpop.f32.mrb[0].mxu0
          %v753 = vpop.f32.mrb[0].mxu0
          %v754 = vadd.f32 %v618, %v753
          %v755 = vpop.f32.mrb[0].mxu0
          %756 = vmatprep.mubr.bf16.mxu0 0
          %757 = vmatmul.mubr.bf16.gmra.mrb[0].mxu0 %v653
          %v758 = vpop.f32.mrb[0].mxu0
          %v759 = vadd.f32 %v618, %v758
          %v760 = vpop.f32.mrb[0].mxu0
          %v761 = vpop.f32.mrb[0].mxu0
          %v762 = vadd.f32 %v618, %v761
          %v763 = vpop.f32.mrb[0].mxu0
          %764 = vmatprep.mubr.bf16.mxu0 0
          %765 = vmatmul.mubr.bf16.gmra.mrb[0].mxu0 %v654
          %v766 = vpop.f32.mrb[0].mxu0
          %v767 = vadd.f32 %v618, %v766
          %v768 = vpop.f32.mrb[0].mxu0
          %v769 = vpop.f32.mrb[0].mxu0
          %v770 = vadd.f32 %v618, %v769
          %v771 = vpop.f32.mrb[0].mxu0
          %772 = vmatprep.mubr.bf16.mxu0 0
          %773 = vmatmul.mubr.bf16.gmra.mrb[0].mxu0 %v655
          %v774 = vpop.f32.mrb[0].mxu0
          %v775 = vadd.f32 %v618, %v774
          %v776 = vpop.f32.mrb[0].mxu0
          %v777 = vpop.f32.mrb[0].mxu0
          %v778 = vadd.f32 %v618, %v777
          %v779 = vpop.f32.mrb[0].mxu0
          %780 = vmatprep.mubr.bf16.mxu0 0
          %781 = vmatmul.mubr.bf16.gmra.mrb[0].mxu0 %v656
          %v782 = vpop.f32.mrb[0].mxu0
          %v783 = vadd.f32 %v618, %v782
          %v784 = vpop.f32.mrb[0].mxu0
          %v785 = vpop.f32.mrb[0].mxu0
          %v786 = vadd.f32 %v618, %v785
          %v787 = vpop.f32.mrb[0].mxu0
          %788 = vmatprep.mubr.bf16.mxu0 0
          %789 = vmatmul.mubr.bf16.gmra.mrb[0].mxu0 %v657
          %v790 = vpop.f32.mrb[0].mxu0
          %v791 = vadd.f32 %v618, %v790
          %v792 = vpop.f32.mrb[0].mxu0
          %v793 = vpop.f32.mrb[0].mxu0
          %v794 = vadd.f32 %v618, %v793
          %v795 = vpop.f32.mrb[0].mxu0
          %796 = vmatprep.mubr.bf16.mxu0 0
          %797 = vmatmul.mubr.bf16.gmra.mrb[0].mxu0 %v658
          %v798 = vpop.f32.mrb[0].mxu0
          %v799 = vadd.f32 %v618, %v798
          %v800 = vpop.f32.mrb[0].mxu0
          %v801 = vpop.f32.mrb[0].mxu0
          %v802 = vadd.f32 %v618, %v801
          %v803 = vpop.f32.mrb[0].mxu0
          %804 = vmatprep.mubr.bf16.mxu0 0
          %805 = vmatmul.mubr.bf16.gmra.mrb[0].mxu0 %v659
          %v806 = vpop.f32.mrb[0].mxu0
          %v807 = vadd.f32 %v618, %v806
          %v808 = vpop.f32.mrb[0].mxu0
          %v809 = vpop.f32.mrb[0].mxu0
          %v810 = vadd.f32 %v618, %v809
          %v811 = vpop.f32.mrb[0].mxu0
          %812 = vdwg.mxu0
          %v813 = vld [vmem:[#allocation14] sm:$0xf]
          %v814 = vld [vmem:[#allocation14 + $0x4] sm:$0xf]
          %v815 = vld [vmem:[#allocation14 + $0x8] sm:$0xf]
          %v816 = vld [vmem:[#allocation14 + $0xc] sm:$0xf]
          %v817 = vld [vmem:[#allocation14 + $0x10] sm:$0xf]
          %v818 = vld [vmem:[#allocation14 + $0x14] sm:$0xf]
          %v819 = vld [vmem:[#allocation14 + $0x18] sm:$0xf]
          %v820 = vld [vmem:[#allocation14 + $0x1c] sm:$0xf]
          %v821 = vld [vmem:[#allocation14 + $0x20] sm:$0xf]
          %v822 = vld [vmem:[#allocation14 + $0x24] sm:$0xf]
          %v823 = vld [vmem:[#allocation14 + $0x28] sm:$0xf]
          %v824 = vld [vmem:[#allocation14 + $0x2c] sm:$0xf]
          %v825 = vld [vmem:[#allocation14 + $0x30] sm:$0xf]
          %v826 = vld [vmem:[#allocation14 + $0x34] sm:$0xf]
          %v827 = vld [vmem:[#allocation14 + $0x38] sm:$0xf]
          %v828 = vld [vmem:[#allocation14 + $0x3c] sm:$0xf]
          %v829 = vld [vmem:[%s8] sm:$0x1]
          %v831 = vlaneseq
          %v832 = vshrl.u32 %v831, 7
          %v833 = vsub.s32 0, %v832
          %v834 = vrot.slane %v829, %v833
          %v852 = vunpack.c.l.b16 %v581
          %v853 = vunpack.c.l.b16 %v582
          %v854 = vunpack.c.l.b16 %v583
          %v855 = vunpack.c.l.b16 %v584
          %v856 = vunpack.c.l.b16 %v585
          %v857 = vunpack.c.l.b16 %v586
          %v858 = vunpack.c.l.b16 %v587
          %v859 = vunpack.c.l.b16 %v588
          %v860 = vunpack.c.l.b16 %v589
          %v861 = vunpack.c.l.b16 %v590
          %v862 = vunpack.c.l.b16 %v591
          %v863 = vunpack.c.l.b16 %v592
          %v864 = vunpack.c.l.b16 %v593
          %v865 = vunpack.c.l.b16 %v594
          %v866 = vunpack.c.l.b16 %v595
          %v867 = vunpack.c.l.b16 %v596
          %v868 = vpack.c.b16 %v853, %v852
          %v869 = vpack.c.b16 %v855, %v854
          %v870 = vpack.c.b16 %v857, %v856
          %v871 = vpack.c.b16 %v859, %v858
          %v872 = vpack.c.b16 %v861, %v860
          %v873 = vpack.c.b16 %v863, %v862
          %v874 = vpack.c.b16 %v865, %v864
          %v875 = vpack.c.b16 %v867, %v866
          %v900 = vunpack.c.l.b16 %v813
          %v901 = vunpack.c.l.b16 %v814
          %v902 = vunpack.c.l.b16 %v815
          %v903 = vunpack.c.l.b16 %v816
          %v904 = vunpack.c.l.b16 %v817
          %v905 = vunpack.c.l.b16 %v818
          %v906 = vunpack.c.l.b16 %v819
          %v907 = vunpack.c.l.b16 %v820
          %v908 = vunpack.c.l.b16 %v821
          %v909 = vunpack.c.l.b16 %v822
          %v910 = vunpack.c.l.b16 %v823
          %v911 = vunpack.c.l.b16 %v824
          %v912 = vunpack.c.l.b16 %v825
          %v913 = vunpack.c.l.b16 %v826
          %v914 = vunpack.c.l.b16 %v827
          %v915 = vunpack.c.l.b16 %v828
          %v916 = vpack.c.b16 %v901, %v900
          %v917 = vpack.c.b16 %v903, %v902
          %v918 = vpack.c.b16 %v905, %v904
          %v919 = vpack.c.b16 %v907, %v906
          %v920 = vpack.c.b16 %v909, %v908
          %v921 = vpack.c.b16 %v911, %v910
          %v922 = vpack.c.b16 %v913, %v912
          %v923 = vpack.c.b16 %v915, %v914
          %932 = vmatprep.subr.bf16.mxu0 0
          %933 = vmatpush1.bf16.msra.mxu0 %v916
          %934 = vmatprep.subr.bf16.mxu0 0
          %935 = vmatpush1.bf16.msra.mxu0 %v917
          %936 = vmatprep.subr.bf16.mxu0 0
          %937 = vmatpush1.bf16.msra.mxu0 %v918
          %938 = vmatprep.subr.bf16.mxu0 0
          %939 = vmatpush1.bf16.msra.mxu0 %v919
          %940 = vmatprep.subr.bf16.mxu0 0
          %941 = vmatpush1.bf16.msra.mxu0 %v920
          %942 = vmatprep.subr.bf16.mxu0 0
          %943 = vmatpush1.bf16.msra.mxu0 %v921
          %944 = vmatprep.subr.bf16.mxu0 0
          %945 = vmatpush1.bf16.msra.mxu0 %v922
          %946 = vmatprep.subr.bf16.mxu0 0
          %947 = vmatpush1.bf16.msra.mxu0 %v923
          %948 = vmatprep.subr.bf16.mxu0 0
          %949 = vmatpush1.bf16.msra.mxu0 0
          %950 = vmatprep.subr.bf16.mxu0 0
          %951 = vmatpush1.bf16.msra.mxu0 0
          %952 = vmatprep.subr.bf16.mxu0 0
          %953 = vmatpush1.bf16.msra.mxu0 0
          %954 = vmatprep.subr.bf16.mxu0 0
          %955 = vmatpush1.bf16.msra.mxu0 0
          %956 = vmatprep.subr.bf16.mxu0 0
          %957 = vmatpush1.bf16.msra.mxu0 0
          %958 = vmatprep.subr.bf16.mxu0 0
          %959 = vmatpush1.bf16.msra.mxu0 0
          %960 = vmatprep.subr.bf16.mxu0 0
          %961 = vmatpush1.bf16.msra.mxu0 0
          %962 = vmatprep.subr.bf16.mxu0 0
          %963 = vmatpush1.bf16.msra.mxu0 0
          %964 = vmatprep.mubr.bf16.mxu0 0
          %965 = vmatmul.mubr.bf16.gmra.mrb[0].mxu0 %v868
          %v966 = vpop.f32.mrb[0].mxu0
          %v967 = vadd.f32 %v834, %v966
          %v968 = vpop.f32.mrb[0].mxu0
          %v969 = vpop.f32.mrb[0].mxu0
          %v970 = vadd.f32 %v834, %v969
          %v971 = vpop.f32.mrb[0].mxu0
          %972 = vmatprep.mubr.bf16.mxu0 0
          %973 = vmatmul.mubr.bf16.gmra.mrb[0].mxu0 %v869
          %v974 = vpop.f32.mrb[0].mxu0
          %v975 = vadd.f32 %v834, %v974
          %v976 = vpop.f32.mrb[0].mxu0
          %v977 = vpop.f32.mrb[0].mxu0
          %v978 = vadd.f32 %v834, %v977
          %v979 = vpop.f32.mrb[0].mxu0
          %980 = vmatprep.mubr.bf16.mxu0 0
          %981 = vmatmul.mubr.bf16.gmra.mrb[0].mxu0 %v870
          %v982 = vpop.f32.mrb[0].mxu0
          %v983 = vadd.f32 %v834, %v982
          %v984 = vpop.f32.mrb[0].mxu0
          %v985 = vpop.f32.mrb[0].mxu0
          %v986 = vadd.f32 %v834, %v985
          %v987 = vpop.f32.mrb[0].mxu0
          %988 = vmatprep.mubr.bf16.mxu0 0
          %989 = vmatmul.mubr.bf16.gmra.mrb[0].mxu0 %v871
          %v990 = vpop.f32.mrb[0].mxu0
          %v991 = vadd.f32 %v834, %v990
          %v992 = vpop.f32.mrb[0].mxu0
          %v993 = vpop.f32.mrb[0].mxu0
          %v994 = vadd.f32 %v834, %v993
          %v995 = vpop.f32.mrb[0].mxu0
          %996 = vmatprep.mubr.bf16.mxu0 0
          %997 = vmatmul.mubr.bf16.gmra.mrb[0].mxu0 %v872
          %v998 = vpop.f32.mrb[0].mxu0
          %v999 = vadd.f32 %v834, %v998
          %v1000 = vpop.f32.mrb[0].mxu0
          %v1001 = vpop.f32.mrb[0].mxu0
          %v1002 = vadd.f32 %v834, %v1001
          %v1003 = vpop.f32.mrb[0].mxu0
          %1004 = vmatprep.mubr.bf16.mxu0 0
          %1005 = vmatmul.mubr.bf16.gmra.mrb[0].mxu0 %v873
          %v1006 = vpop.f32.mrb[0].mxu0
          %v1007 = vadd.f32 %v834, %v1006
          %v1008 = vpop.f32.mrb[0].mxu0
          %v1009 = vpop.f32.mrb[0].mxu0
          %v1010 = vadd.f32 %v834, %v1009
          %v1011 = vpop.f32.mrb[0].mxu0
          %1012 = vmatprep.mubr.bf16.mxu0 0
          %1013 = vmatmul.mubr.bf16.gmra.mrb[0].mxu0 %v874
          %v1014 = vpop.f32.mrb[0].mxu0
          %v1015 = vadd.f32 %v834, %v1014
          %v1016 = vpop.f32.mrb[0].mxu0
          %v1017 = vpop.f32.mrb[0].mxu0
          %v1018 = vadd.f32 %v834, %v1017
          %v1019 = vpop.f32.mrb[0].mxu0
          %1020 = vmatprep.mubr.bf16.mxu0 0
          %1021 = vmatmul.mubr.bf16.gmra.mrb[0].mxu0 %v875
          %v1022 = vpop.f32.mrb[0].mxu0
          %v1023 = vadd.f32 %v834, %v1022
          %v1024 = vpop.f32.mrb[0].mxu0
          %v1025 = vpop.f32.mrb[0].mxu0
          %v1026 = vadd.f32 %v834, %v1025
          %v1027 = vpop.f32.mrb[0].mxu0
          %1028 = vdwg.mxu0
          %v1029 = vpack.c.bf16 %v754, %v751
          %v1030 = vpack.c.bf16 %v762, %v759
          %v1031 = vpack.c.bf16 %v770, %v767
          %v1032 = vpack.c.bf16 %v778, %v775
          %v1033 = vpack.c.bf16 %v786, %v783
          %v1034 = vpack.c.bf16 %v794, %v791
          %v1035 = vpack.c.bf16 %v802, %v799
          %v1036 = vpack.c.bf16 %v810, %v807
          %1037 = vst [vmem:[#allocation2] sm:$0xff] %v1029
          %1038 = vst [vmem:[#allocation2 + $0x8] sm:$0xff] %v1030
          %1039 = vst [vmem:[#allocation2 + $0x10] sm:$0xff] %v1031
          %1040 = vst [vmem:[#allocation2 + $0x18] sm:$0xff] %v1032
          %1041 = vst [vmem:[#allocation2 + $0x20] sm:$0xff] %v1033
          %1042 = vst [vmem:[#allocation2 + $0x28] sm:$0xff] %v1034
          %1043 = vst [vmem:[#allocation2 + $0x30] sm:$0xff] %v1035
          %1044 = vst [vmem:[#allocation2 + $0x38] sm:$0xff] %v1036
          %v1045 = vpack.c.bf16 %v970, %v967
          %v1046 = vpack.c.bf16 %v978, %v975
          %v1047 = vpack.c.bf16 %v986, %v983
          %v1048 = vpack.c.bf16 %v994, %v991
          %v1049 = vpack.c.bf16 %v1002, %v999
          %v1050 = vpack.c.bf16 %v1010, %v1007
          %v1051 = vpack.c.bf16 %v1018, %v1015
          %v1052 = vpack.c.bf16 %v1026, %v1023
          %1053 = vst [vmem:[#allocation3] sm:$0xff] %v1045
          %1054 = vst [vmem:[#allocation3 + $0x8] sm:$0xff] %v1046
          %1055 = vst [vmem:[#allocation3 + $0x10] sm:$0xff] %v1047
          %1056 = vst [vmem:[#allocation3 + $0x18] sm:$0xff] %v1048
          %1057 = vst [vmem:[#allocation3 + $0x20] sm:$0xff] %v1049
          %1058 = vst [vmem:[#allocation3 + $0x28] sm:$0xff] %v1050
          %1059 = vst [vmem:[#allocation3 + $0x30] sm:$0xff] %v1051
          %1060 = vst [vmem:[#allocation3 + $0x38] sm:$0xff] %v1052
        $region96: #{tpu_custom_call.1} parent=63 // pred_fallthru
          _
        %v1061 = vld [vmem:[%s475] sm:$0xf]
        %v1062 = vld [vmem:[%s475 + $0x4] sm:$0xf]
        %v1063 = vld [vmem:[%s475 + $0x8] sm:$0xf]
        %v1064 = vld [vmem:[%s475 + $0xc] sm:$0xf]
        %v1065 = vld [vmem:[%s475 + $0x10] sm:$0xf]
        %v1066 = vld [vmem:[%s475 + $0x14] sm:$0xf]
        %v1067 = vld [vmem:[%s475 + $0x18] sm:$0xf]
        %v1068 = vld [vmem:[%s475 + $0x1c] sm:$0xf]
        %v1069 = vld [vmem:[%s475 + $0x20] sm:$0xf]
        %v1070 = vld [vmem:[%s475 + $0x24] sm:$0xf]
        %v1071 = vld [vmem:[%s475 + $0x28] sm:$0xf]
        %v1072 = vld [vmem:[%s475 + $0x2c] sm:$0xf]
        %v1073 = vld [vmem:[%s475 + $0x30] sm:$0xf]
        %v1074 = vld [vmem:[%s475 + $0x34] sm:$0xf]
        %v1075 = vld [vmem:[%s475 + $0x38] sm:$0xf]
        %v1076 = vld [vmem:[%s475 + $0x3c] sm:$0xf]
        %v1077 = vld [vmem:[#allocation11] sm:$0xf]
        %v1078 = vld [vmem:[#allocation11 + $0x4] sm:$0xf]
        %v1079 = vld [vmem:[#allocation11 + $0x8] sm:$0xf]
        %v1080 = vld [vmem:[#allocation11 + $0xc] sm:$0xf]
        %v1081 = vld [vmem:[#allocation11 + $0x10] sm:$0xf]
        %v1082 = vld [vmem:[#allocation11 + $0x14] sm:$0xf]
        %v1083 = vld [vmem:[#allocation11 + $0x18] sm:$0xf]
        %v1084 = vld [vmem:[#allocation11 + $0x1c] sm:$0xf]
        %v1085 = vld [vmem:[#allocation11 + $0x20] sm:$0xf]
        %v1086 = vld [vmem:[#allocation11 + $0x24] sm:$0xf]
        %v1087 = vld [vmem:[#allocation11 + $0x28] sm:$0xf]
        %v1088 = vld [vmem:[#allocation11 + $0x2c] sm:$0xf]
        %v1089 = vld [vmem:[#allocation11 + $0x30] sm:$0xf]
        %v1090 = vld [vmem:[#allocation11 + $0x34] sm:$0xf]
        %v1091 = vld [vmem:[#allocation11 + $0x38] sm:$0xf]
        %v1092 = vld [vmem:[#allocation11 + $0x3c] sm:$0xf]
        %v1093 = vld [vmem:[%s4] sm:$0x1]
        %v1095 = vlaneseq
        %v1096 = vshrl.u32 %v1095, 7
        %v1097 = vsub.s32 0, %v1096
        %v1098 = vrot.slane %v1093, %v1097
        %v1116 = vunpack.c.l.b16 %v1061
        %v1117 = vunpack.c.l.b16 %v1062
        %v1118 = vunpack.c.l.b16 %v1063
        %v1119 = vunpack.c.l.b16 %v1064
        %v1120 = vunpack.c.l.b16 %v1065
        %v1121 = vunpack.c.l.b16 %v1066
        %v1122 = vunpack.c.l.b16 %v1067
        %v1123 = vunpack.c.l.b16 %v1068
        %v1124 = vunpack.c.l.b16 %v1069
        %v1125 = vunpack.c.l.b16 %v1070
        %v1126 = vunpack.c.l.b16 %v1071
        %v1127 = vunpack.c.l.b16 %v1072
        %v1128 = vunpack.c.l.b16 %v1073
        %v1129 = vunpack.c.l.b16 %v1074
        %v1130 = vunpack.c.l.b16 %v1075
        %v1131 = vunpack.c.l.b16 %v1076
        %v1132 = vpack.c.b16 %v1117, %v1116
        %v1133 = vpack.c.b16 %v1119, %v1118
        %v1134 = vpack.c.b16 %v1121, %v1120
        %v1135 = vpack.c.b16 %v1123, %v1122
        %v1136 = vpack.c.b16 %v1125, %v1124
        %v1137 = vpack.c.b16 %v1127, %v1126
        %v1138 = vpack.c.b16 %v1129, %v1128
        %v1139 = vpack.c.b16 %v1131, %v1130
        %v1164 = vunpack.c.l.b16 %v1077
        %v1165 = vunpack.c.l.b16 %v1078
        %v1166 = vunpack.c.l.b16 %v1079
        %v1167 = vunpack.c.l.b16 %v1080
        %v1168 = vunpack.c.l.b16 %v1081
        %v1169 = vunpack.c.l.b16 %v1082
        %v1170 = vunpack.c.l.b16 %v1083
        %v1171 = vunpack.c.l.b16 %v1084
        %v1172 = vunpack.c.l.b16 %v1085
        %v1173 = vunpack.c.l.b16 %v1086
        %v1174 = vunpack.c.l.b16 %v1087
        %v1175 = vunpack.c.l.b16 %v1088
        %v1176 = vunpack.c.l.b16 %v1089
        %v1177 = vunpack.c.l.b16 %v1090
        %v1178 = vunpack.c.l.b16 %v1091
        %v1179 = vunpack.c.l.b16 %v1092
        %v1180 = vpack.c.b16 %v1165, %v1164
        %v1181 = vpack.c.b16 %v1167, %v1166
        %v1182 = vpack.c.b16 %v1169, %v1168
        %v1183 = vpack.c.b16 %v1171, %v1170
        %v1184 = vpack.c.b16 %v1173, %v1172
        %v1185 = vpack.c.b16 %v1175, %v1174
        %v1186 = vpack.c.b16 %v1177, %v1176
        %v1187 = vpack.c.b16 %v1179, %v1178
        %1196 = vmatprep.subr.bf16.mxu0 0
        %1197 = vmatpush1.bf16.msra.mxu0 %v1180
        %1198 = vmatprep.subr.bf16.mxu0 0
        %1199 = vmatpush1.bf16.msra.mxu0 %v1181
        %1200 = vmatprep.subr.bf16.mxu0 0
        %1201 = vmatpush1.bf16.msra.mxu0 %v1182
        %1202 = vmatprep.subr.bf16.mxu0 0
        %1203 = vmatpush1.bf16.msra.mxu0 %v1183
        %1204 = vmatprep.subr.bf16.mxu0 0
        %1205 = vmatpush1.bf16.msra.mxu0 %v1184
        %1206 = vmatprep.subr.bf16.mxu0 0
        %1207 = vmatpush1.bf16.msra.mxu0 %v1185
        %1208 = vmatprep.subr.bf16.mxu0 0
        %1209 = vmatpush1.bf16.msra.mxu0 %v1186
        %1210 = vmatprep.subr.bf16.mxu0 0
        %1211 = vmatpush1.bf16.msra.mxu0 %v1187
        %1212 = vmatprep.subr.bf16.mxu0 0
        %1213 = vmatpush1.bf16.msra.mxu0 0
        %1214 = vmatprep.subr.bf16.mxu0 0
        %1215 = vmatpush1.bf16.msra.mxu0 0
        %1216 = vmatprep.subr.bf16.mxu0 0
        %1217 = vmatpush1.bf16.msra.mxu0 0
        %1218 = vmatprep.subr.bf16.mxu0 0
        %1219 = vmatpush1.bf16.msra.mxu0 0
        %1220 = vmatprep.subr.bf16.mxu0 0
        %1221 = vmatpush1.bf16.msra.mxu0 0
        %1222 = vmatprep.subr.bf16.mxu0 0
        %1223 = vmatpush1.bf16.msra.mxu0 0
        %1224 = vmatprep.subr.bf16.mxu0 0
        %1225 = vmatpush1.bf16.msra.mxu0 0
        %1226 = vmatprep.subr.bf16.mxu0 0
        %1227 = vmatpush1.bf16.msra.mxu0 0
        %1228 = vmatprep.mubr.bf16.mxu0 0
        %1229 = vmatmul.mubr.bf16.gmra.mrb[0].mxu0 %v1132
        %v1230 = vpop.f32.mrb[0].mxu0
        %v1231 = vadd.f32 %v1098, %v1230
        %v1232 = vpop.f32.mrb[0].mxu0
        %v1233 = vpop.f32.mrb[0].mxu0
        %v1234 = vadd.f32 %v1098, %v1233
        %v1235 = vpop.f32.mrb[0].mxu0
        %1236 = vmatprep.mubr.bf16.mxu0 0
        %1237 = vmatmul.mubr.bf16.gmra.mrb[0].mxu0 %v1133
        %v1238 = vpop.f32.mrb[0].mxu0
        %v1239 = vadd.f32 %v1098, %v1238
        %v1240 = vpop.f32.mrb[0].mxu0
        %v1241 = vpop.f32.mrb[0].mxu0
        %v1242 = vadd.f32 %v1098, %v1241
        %v1243 = vpop.f32.mrb[0].mxu0
        %1244 = vmatprep.mubr.bf16.mxu0 0
        %1245 = vmatmul.mubr.bf16.gmra.mrb[0].mxu0 %v1134
        %v1246 = vpop.f32.mrb[0].mxu0
        %v1247 = vadd.f32 %v1098, %v1246
        %v1248 = vpop.f32.mrb[0].mxu0
        %v1249 = vpop.f32.mrb[0].mxu0
        %v1250 = vadd.f32 %v1098, %v1249
        %v1251 = vpop.f32.mrb[0].mxu0
        %1252 = vmatprep.mubr.bf16.mxu0 0
        %1253 = vmatmul.mubr.bf16.gmra.mrb[0].mxu0 %v1135
        %v1254 = vpop.f32.mrb[0].mxu0
        %v1255 = vadd.f32 %v1098, %v1254
        %v1256 = vpop.f32.mrb[0].mxu0
        %v1257 = vpop.f32.mrb[0].mxu0
        %v1258 = vadd.f32 %v1098, %v1257
        %v1259 = vpop.f32.mrb[0].mxu0
        %1260 = vmatprep.mubr.bf16.mxu0 0
        %1261 = vmatmul.mubr.bf16.gmra.mrb[0].mxu0 %v1136
        %v1262 = vpop.f32.mrb[0].mxu0
        %v1263 = vadd.f32 %v1098, %v1262
        %v1264 = vpop.f32.mrb[0].mxu0
        %v1265 = vpop.f32.mrb[0].mxu0
        %v1266 = vadd.f32 %v1098, %v1265
        %v1267 = vpop.f32.mrb[0].mxu0
        %1268 = vmatprep.mubr.bf16.mxu0 0
        %1269 = vmatmul.mubr.bf16.gmra.mrb[0].mxu0 %v1137
        %v1270 = vpop.f32.mrb[0].mxu0
        %v1271 = vadd.f32 %v1098, %v1270
        %v1272 = vpop.f32.mrb[0].mxu0
        %v1273 = vpop.f32.mrb[0].mxu0
        %v1274 = vadd.f32 %v1098, %v1273
        %v1275 = vpop.f32.mrb[0].mxu0
        %1276 = vmatprep.mubr.bf16.mxu0 0
        %1277 = vmatmul.mubr.bf16.gmra.mrb[0].mxu0 %v1138
        %v1278 = vpop.f32.mrb[0].mxu0
        %v1279 = vadd.f32 %v1098, %v1278
        %v1280 = vpop.f32.mrb[0].mxu0
        %v1281 = vpop.f32.mrb[0].mxu0
        %v1282 = vadd.f32 %v1098, %v1281
        %v1283 = vpop.f32.mrb[0].mxu0
        %1284 = vmatprep.mubr.bf16.mxu0 0
        %1285 = vmatmul.mubr.bf16.gmra.mrb[0].mxu0 %v1139
        %v1286 = vpop.f32.mrb[0].mxu0
        %v1287 = vadd.f32 %v1098, %v1286
        %v1288 = vpop.f32.mrb[0].mxu0
        %v1289 = vpop.f32.mrb[0].mxu0
        %v1290 = vadd.f32 %v1098, %v1289
        %v1291 = vpop.f32.mrb[0].mxu0
        %1292 = vdwg.mxu0
        %v1293 = vmul.f32 %v1231, 0.17677669
        %v1294 = vmul.f32 %v1234, 0.17677669
        %v1295 = vmul.f32 %v1239, 0.17677669
        %v1296 = vmul.f32 %v1242, 0.17677669
        %v1297 = vmul.f32 %v1247, 0.17677669
        %v1298 = vmul.f32 %v1250, 0.17677669
        %v1299 = vmul.f32 %v1255, 0.17677669
        %v1300 = vmul.f32 %v1258, 0.17677669
        %v1301 = vmul.f32 %v1263, 0.17677669
        %v1302 = vmul.f32 %v1266, 0.17677669
        %v1303 = vmul.f32 %v1271, 0.17677669
        %v1304 = vmul.f32 %v1274, 0.17677669
        %v1305 = vmul.f32 %v1279, 0.17677669
        %v1306 = vmul.f32 %v1282, 0.17677669
        %v1307 = vmul.f32 %v1287, 0.17677669
        %v1308 = vmul.f32 %v1290, 0.17677669
        %v1309 = vpack.c.bf16 %v1294, %v1293
        %v1310 = vpack.c.bf16 %v1296, %v1295
        %v1311 = vpack.c.bf16 %v1298, %v1297
        %v1312 = vpack.c.bf16 %v1300, %v1299
        %v1313 = vpack.c.bf16 %v1302, %v1301
        %v1314 = vpack.c.bf16 %v1304, %v1303
        %v1315 = vpack.c.bf16 %v1306, %v1305
        %v1316 = vpack.c.bf16 %v1308, %v1307
        %v1317 = vld [vmem:[#allocation2] sm:$0xff]
        %v1318 = vld [vmem:[#allocation2 + $0x8] sm:$0xff]
        %v1319 = vld [vmem:[#allocation2 + $0x10] sm:$0xff]
        %v1320 = vld [vmem:[#allocation2 + $0x18] sm:$0xff]
        %v1321 = vld [vmem:[#allocation2 + $0x20] sm:$0xff]
        %v1322 = vld [vmem:[#allocation2 + $0x28] sm:$0xff]
        %v1323 = vld [vmem:[#allocation2 + $0x30] sm:$0xff]
        %v1324 = vld [vmem:[#allocation2 + $0x38] sm:$0xff]
        %v1325 = vld [vmem:[#allocation3] sm:$0xff]
        %v1326 = vld [vmem:[#allocation3 + $0x8] sm:$0xff]
        %v1327 = vld [vmem:[#allocation3 + $0x10] sm:$0xff]
        %v1328 = vld [vmem:[#allocation3 + $0x18] sm:$0xff]
        %v1329 = vld [vmem:[#allocation3 + $0x20] sm:$0xff]
        %v1330 = vld [vmem:[#allocation3 + $0x28] sm:$0xff]
        %v1331 = vld [vmem:[#allocation3 + $0x30] sm:$0xff]
        %v1332 = vld [vmem:[#allocation3 + $0x38] sm:$0xff]
        %vm1333 = vcmask 261120
        %v1335 = vsel %vm1333, %v1309, 0
        %v1338 = vsel %vm1333, %v1310, 0
        %v1341 = vsel %vm1333, %v1311, 0
        %v1344 = vsel %vm1333, %v1312, 0
        %v1347 = vsel %vm1333, %v1313, 0
        %v1350 = vsel %vm1333, %v1314, 0
        %v1353 = vsel %vm1333, %v1315, 0
        %v1356 = vsel %vm1333, %v1316, 0
        %v1359 = vsel %vm1333, %v1317, 0
        %v1362 = vsel %vm1333, %v1318, 0
        %v1365 = vsel %vm1333, %v1319, 0
        %v1368 = vsel %vm1333, %v1320, 0
        %v1371 = vsel %vm1333, %v1321, 0
        %v1374 = vsel %vm1333, %v1322, 0
        %v1377 = vsel %vm1333, %v1323, 0
        %v1380 = vsel %vm1333, %v1324, 0
        %1382 = vmatprep.subr.bf16.mxu0 0
        %1383 = vmatpush1.bf16.xpose.msra.mxu0 %v1359
        %1384 = vmatprep.subr.bf16.mxu0 0
        %1385 = vmatpush1.bf16.xpose.msra.mxu0 %v1362
        %1386 = vmatprep.subr.bf16.mxu0 0
        %1387 = vmatpush1.bf16.xpose.msra.mxu0 %v1365
        %1388 = vmatprep.subr.bf16.mxu0 0
        %1389 = vmatpush1.bf16.xpose.msra.mxu0 %v1368
        %1390 = vmatprep.subr.bf16.mxu0 0
        %1391 = vmatpush1.bf16.xpose.msra.mxu0 %v1371
        %1392 = vmatprep.subr.bf16.mxu0 0
        %1393 = vmatpush1.bf16.xpose.msra.mxu0 %v1374
        %1394 = vmatprep.subr.bf16.mxu0 0
        %1395 = vmatpush1.bf16.xpose.msra.mxu0 %v1377
        %1396 = vmatprep.subr.bf16.mxu0 0
        %1397 = vmatpush1.bf16.xpose.msra.mxu0 %v1380
        %1398 = vmatprep.subr.bf16.mxu0 0
        %1399 = vmatpush1.bf16.xpose.msra.mxu0 0
        %1400 = vmatprep.subr.bf16.mxu0 0
        %1401 = vmatpush1.bf16.xpose.msra.mxu0 0
        %1402 = vmatprep.subr.bf16.mxu0 0
        %1403 = vmatpush1.bf16.xpose.msra.mxu0 0
        %1404 = vmatprep.subr.bf16.mxu0 0
        %1405 = vmatpush1.bf16.xpose.msra.mxu0 0
        %1406 = vmatprep.subr.bf16.mxu0 0
        %1407 = vmatpush1.bf16.xpose.msra.mxu0 0
        %1408 = vmatprep.subr.bf16.mxu0 0
        %1409 = vmatpush1.bf16.xpose.msra.mxu0 0
        %1410 = vmatprep.subr.bf16.mxu0 0
        %1411 = vmatpush1.bf16.xpose.msra.mxu0 0
        %1412 = vmatprep.subr.bf16.mxu0 0
        %1413 = vmatpush1.bf16.xpose.msra.mxu0 0
        %1414 = vmatprep.mubr.bf16.mxu0 0
        %1415 = vmatmul.mubr.bf16.gmra.mrb[0].mxu0 %v1335
        %v1416 = vpop.f32.mrb[0].mxu0
        %v1417 = vadd.f32 0.0, %v1416
        %v1418 = vpop.f32.mrb[0].mxu0
        %v1419 = vpop.f32.mrb[0].mxu0
        %v1420 = vadd.f32 0.0, %v1419
        %v1421 = vpop.f32.mrb[0].mxu0
        %1422 = vmatprep.mubr.bf16.mxu0 0
        %1423 = vmatmul.mubr.bf16.gmra.mrb[0].mxu0 %v1338
        %v1424 = vpop.f32.mrb[0].mxu0
        %v1425 = vadd.f32 0.0, %v1424
        %v1426 = vpop.f32.mrb[0].mxu0
        %v1427 = vpop.f32.mrb[0].mxu0
        %v1428 = vadd.f32 0.0, %v1427
        %v1429 = vpop.f32.mrb[0].mxu0
        %1430 = vmatprep.mubr.bf16.mxu0 0
        %1431 = vmatmul.mubr.bf16.gmra.mrb[0].mxu0 %v1341
        %v1432 = vpop.f32.mrb[0].mxu0
        %v1433 = vadd.f32 0.0, %v1432
        %v1434 = vpop.f32.mrb[0].mxu0
        %v1435 = vpop.f32.mrb[0].mxu0
        %v1436 = vadd.f32 0.0, %v1435
        %v1437 = vpop.f32.mrb[0].mxu0
        %1438 = vmatprep.mubr.bf16.mxu0 0
        %1439 = vmatmul.mubr.bf16.gmra.mrb[0].mxu0 %v1344
        %v1440 = vpop.f32.mrb[0].mxu0
        %v1441 = vadd.f32 0.0, %v1440
        %v1442 = vpop.f32.mrb[0].mxu0
        %v1443 = vpop.f32.mrb[0].mxu0
        %v1444 = vadd.f32 0.0, %v1443
        %v1445 = vpop.f32.mrb[0].mxu0
        %1446 = vmatprep.mubr.bf16.mxu0 0
        %1447 = vmatmul.mubr.bf16.gmra.mrb[0].mxu0 %v1347
        %v1448 = vpop.f32.mrb[0].mxu0
        %v1449 = vadd.f32 0.0, %v1448
        %v1450 = vpop.f32.mrb[0].mxu0
        %v1451 = vpop.f32.mrb[0].mxu0
        %v1452 = vadd.f32 0.0, %v1451
        %v1453 = vpop.f32.mrb[0].mxu0
        %1454 = vmatprep.mubr.bf16.mxu0 0
        %1455 = vmatmul.mubr.bf16.gmra.mrb[0].mxu0 %v1350
        %v1456 = vpop.f32.mrb[0].mxu0
        %v1457 = vadd.f32 0.0, %v1456
        %v1458 = vpop.f32.mrb[0].mxu0
        %v1459 = vpop.f32.mrb[0].mxu0
        %v1460 = vadd.f32 0.0, %v1459
        %v1461 = vpop.f32.mrb[0].mxu0
        %1462 = vmatprep.mubr.bf16.mxu0 0
        %1463 = vmatmul.mubr.bf16.gmra.mrb[0].mxu0 %v1353
        %v1464 = vpop.f32.mrb[0].mxu0
        %v1465 = vadd.f32 0.0, %v1464
        %v1466 = vpop.f32.mrb[0].mxu0
        %v1467 = vpop.f32.mrb[0].mxu0
        %v1468 = vadd.f32 0.0, %v1467
        %v1469 = vpop.f32.mrb[0].mxu0
        %1470 = vmatprep.mubr.bf16.mxu0 0
        %1471 = vmatmul.mubr.bf16.gmra.mrb[0].mxu0 %v1356
        %v1472 = vpop.f32.mrb[0].mxu0
        %v1473 = vadd.f32 0.0, %v1472
        %v1474 = vpop.f32.mrb[0].mxu0
        %v1475 = vpop.f32.mrb[0].mxu0
        %v1476 = vadd.f32 0.0, %v1475
        %v1477 = vpop.f32.mrb[0].mxu0
        %1478 = vdwg.mxu0
        %1479 = vmax.xlane.f32.xlu0 %v1417
        %v1480 = vpop.xlane.xlu0 %1479
        %1481 = vmax.xlane.f32.xlu0 %v1420
        %v1482 = vpop.xlane.xlu0 %1481
        %1483 = vmax.xlane.f32.xlu0 %v1425
        %v1484 = vpop.xlane.xlu0 %1483
        %1485 = vmax.xlane.f32.xlu0 %v1428
        %v1486 = vpop.xlane.xlu0 %1485
        %1487 = vmax.xlane.f32.xlu0 %v1433
        %v1488 = vpop.xlane.xlu0 %1487
        %1489 = vmax.xlane.f32.xlu0 %v1436
        %v1490 = vpop.xlane.xlu0 %1489
        %1491 = vmax.xlane.f32.xlu0 %v1441
        %v1492 = vpop.xlane.xlu0 %1491
        %1493 = vmax.xlane.f32.xlu0 %v1444
        %v1494 = vpop.xlane.xlu0 %1493
        %1495 = vmax.xlane.f32.xlu0 %v1449
        %v1496 = vpop.xlane.xlu0 %1495
        %1497 = vmax.xlane.f32.xlu0 %v1452
        %v1498 = vpop.xlane.xlu0 %1497
        %1499 = vmax.xlane.f32.xlu0 %v1457
        %v1500 = vpop.xlane.xlu0 %1499
        %1501 = vmax.xlane.f32.xlu0 %v1460
        %v1502 = vpop.xlane.xlu0 %1501
        %1503 = vmax.xlane.f32.xlu0 %v1465
        %v1504 = vpop.xlane.xlu0 %1503
        %1505 = vmax.xlane.f32.xlu0 %v1468
        %v1506 = vpop.xlane.xlu0 %1505
        %1507 = vmax.xlane.f32.xlu0 %v1473
        %v1508 = vpop.xlane.xlu0 %1507
        %1509 = vmax.xlane.f32.xlu0 %v1476
        %v1510 = vpop.xlane.xlu0 %1509
        %v1511 = vsub.f32 %v1417, %v1480
        %v1512 = vsub.f32 %v1420, %v1482
        %v1513 = vsub.f32 %v1425, %v1484
        %v1514 = vsub.f32 %v1428, %v1486
        %v1515 = vsub.f32 %v1433, %v1488
        %v1516 = vsub.f32 %v1436, %v1490
        %v1517 = vsub.f32 %v1441, %v1492
        %v1518 = vsub.f32 %v1444, %v1494
        %v1519 = vsub.f32 %v1449, %v1496
        %v1520 = vsub.f32 %v1452, %v1498
        %v1521 = vsub.f32 %v1457, %v1500
        %v1522 = vsub.f32 %v1460, %v1502
        %v1523 = vsub.f32 %v1465, %v1504
        %v1524 = vsub.f32 %v1468, %v1506
        %v1525 = vsub.f32 %v1473, %v1508
        %v1526 = vsub.f32 %v1476, %v1510
        %v1527 = vmul.f32 %v1511, 1.442695
        %v1528 = vpow.pop %v1527
        %v1529 = vmul.f32 %v1512, 1.442695
        %v1530 = vpow.pop %v1529
        %v1531 = vmul.f32 %v1513, 1.442695
        %v1532 = vpow.pop %v1531
        %v1533 = vmul.f32 %v1514, 1.442695
        %v1534 = vpow.pop %v1533
        %v1535 = vmul.f32 %v1515, 1.442695
        %v1536 = vpow.pop %v1535
        %v1537 = vmul.f32 %v1516, 1.442695
        %v1538 = vpow.pop %v1537
        %v1539 = vmul.f32 %v1517, 1.442695
        %v1540 = vpow.pop %v1539
        %v1541 = vmul.f32 %v1518, 1.442695
        %v1542 = vpow.pop %v1541
        %v1543 = vmul.f32 %v1519, 1.442695
        %v1544 = vpow.pop %v1543
        %v1545 = vmul.f32 %v1520, 1.442695
        %v1546 = vpow.pop %v1545
        %v1547 = vmul.f32 %v1521, 1.442695
        %v1548 = vpow.pop %v1547
        %v1549 = vmul.f32 %v1522, 1.442695
        %v1550 = vpow.pop %v1549
        %v1551 = vmul.f32 %v1523, 1.442695
        %v1552 = vpow.pop %v1551
        %v1553 = vmul.f32 %v1524, 1.442695
        %v1554 = vpow.pop %v1553
        %v1555 = vmul.f32 %v1525, 1.442695
        %v1556 = vpow.pop %v1555
        %v1557 = vmul.f32 %v1526, 1.442695
        %v1558 = vpow.pop %v1557
        %1559 = vadd.xlane.f32.xlu0 %v1528
        %v1560 = vpop.xlane.xlu0 %1559
        %1561 = vadd.xlane.f32.xlu0 %v1530
        %v1562 = vpop.xlane.xlu0 %1561
        %1563 = vadd.xlane.f32.xlu0 %v1532
        %v1564 = vpop.xlane.xlu0 %1563
        %1565 = vadd.xlane.f32.xlu0 %v1534
        %v1566 = vpop.xlane.xlu0 %1565
        %1567 = vadd.xlane.f32.xlu0 %v1536
        %v1568 = vpop.xlane.xlu0 %1567
        %1569 = vadd.xlane.f32.xlu0 %v1538
        %v1570 = vpop.xlane.xlu0 %1569
        %1571 = vadd.xlane.f32.xlu0 %v1540
        %v1572 = vpop.xlane.xlu0 %1571
        %1573 = vadd.xlane.f32.xlu0 %v1542
        %v1574 = vpop.xlane.xlu0 %1573
        %1575 = vadd.xlane.f32.xlu0 %v1544
        %v1576 = vpop.xlane.xlu0 %1575
        %1577 = vadd.xlane.f32.xlu0 %v1546
        %v1578 = vpop.xlane.xlu0 %1577
        %1579 = vadd.xlane.f32.xlu0 %v1548
        %v1580 = vpop.xlane.xlu0 %1579
        %1581 = vadd.xlane.f32.xlu0 %v1550
        %v1582 = vpop.xlane.xlu0 %1581
        %1583 = vadd.xlane.f32.xlu0 %v1552
        %v1584 = vpop.xlane.xlu0 %1583
        %1585 = vadd.xlane.f32.xlu0 %v1554
        %v1586 = vpop.xlane.xlu0 %1585
        %1587 = vadd.xlane.f32.xlu0 %v1556
        %v1588 = vpop.xlane.xlu0 %1587
        %1589 = vadd.xlane.f32.xlu0 %v1558
        %v1590 = vpop.xlane.xlu0 %1589
        %v1591 = vpack.c.bf16 %v1530, %v1528
        %v1592 = vpack.c.bf16 %v1534, %v1532
        %v1593 = vpack.c.bf16 %v1538, %v1536
        %v1594 = vpack.c.bf16 %v1542, %v1540
        %v1595 = vpack.c.bf16 %v1546, %v1544
        %v1596 = vpack.c.bf16 %v1550, %v1548
        %v1597 = vpack.c.bf16 %v1554, %v1552
        %v1598 = vpack.c.bf16 %v1558, %v1556
        %1599 = vmatprep.subr.bf16.mxu0 0
        %1600 = vmatpush1.bf16.msra.mxu0 %v1325
        %1601 = vmatprep.subr.bf16.mxu0 0
        %1602 = vmatpush1.bf16.msra.mxu0 %v1326
        %1603 = vmatprep.subr.bf16.mxu0 0
        %1604 = vmatpush1.bf16.msra.mxu0 %v1327
        %1605 = vmatprep.subr.bf16.mxu0 0
        %1606 = vmatpush1.bf16.msra.mxu0 %v1328
        %1607 = vmatprep.subr.bf16.mxu0 0
        %1608 = vmatpush1.bf16.msra.mxu0 %v1329
        %1609 = vmatprep.subr.bf16.mxu0 0
        %1610 = vmatpush1.bf16.msra.mxu0 %v1330
        %1611 = vmatprep.subr.bf16.mxu0 0
        %1612 = vmatpush1.bf16.msra.mxu0 %v1331
        %1613 = vmatprep.subr.bf16.mxu0 0
        %1614 = vmatpush1.bf16.msra.mxu0 %v1332
        %1615 = vmatprep.subr.bf16.mxu0 0
        %1616 = vmatpush1.bf16.msra.mxu0 0
        %1617 = vmatprep.subr.bf16.mxu0 0
        %1618 = vmatpush1.bf16.msra.mxu0 0
        %1619 = vmatprep.subr.bf16.mxu0 0
        %1620 = vmatpush1.bf16.msra.mxu0 0
        %1621 = vmatprep.subr.bf16.mxu0 0
        %1622 = vmatpush1.bf16.msra.mxu0 0
        %1623 = vmatprep.subr.bf16.mxu0 0
        %1624 = vmatpush1.bf16.msra.mxu0 0
        %1625 = vmatprep.subr.bf16.mxu0 0
        %1626 = vmatpush1.bf16.msra.mxu0 0
        %1627 = vmatprep.subr.bf16.mxu0 0
        %1628 = vmatpush1.bf16.msra.mxu0 0
        %1629 = vmatprep.subr.bf16.mxu0 0
        %1630 = vmatpush1.bf16.msra.mxu0 0
        %1631 = vmatprep.mubr.bf16.mxu0 0
        %1632 = vmatmul.mubr.bf16.gmra.mrb[0].mxu0 %v1591
        %v1633 = vpop.f32.mrb[0].mxu0
        %v1634 = vadd.f32 0.0, %v1633
        %v1635 = vpop.f32.mrb[0].mxu0
        %v1636 = vpop.f32.mrb[0].mxu0
        %v1637 = vadd.f32 0.0, %v1636
        %v1638 = vpop.f32.mrb[0].mxu0
        %1639 = vmatprep.mubr.bf16.mxu0 0
        %1640 = vmatmul.mubr.bf16.gmra.mrb[0].mxu0 %v1592
        %v1641 = vpop.f32.mrb[0].mxu0
        %v1642 = vadd.f32 0.0, %v1641
        %v1643 = vpop.f32.mrb[0].mxu0
        %v1644 = vpop.f32.mrb[0].mxu0
        %v1645 = vadd.f32 0.0, %v1644
        %v1646 = vpop.f32.mrb[0].mxu0
        %1647 = vmatprep.mubr.bf16.mxu0 0
        %1648 = vmatmul.mubr.bf16.gmra.mrb[0].mxu0 %v1593
        %v1649 = vpop.f32.mrb[0].mxu0
        %v1650 = vadd.f32 0.0, %v1649
        %v1651 = vpop.f32.mrb[0].mxu0
        %v1652 = vpop.f32.mrb[0].mxu0
        %v1653 = vadd.f32 0.0, %v1652
        %v1654 = vpop.f32.mrb[0].mxu0
        %1655 = vmatprep.mubr.bf16.mxu0 0
        %1656 = vmatmul.mubr.bf16.gmra.mrb[0].mxu0 %v1594
        %v1657 = vpop.f32.mrb[0].mxu0
        %v1658 = vadd.f32 0.0, %v1657
        %v1659 = vpop.f32.mrb[0].mxu0
        %v1660 = vpop.f32.mrb[0].mxu0
        %v1661 = vadd.f32 0.0, %v1660
        %v1662 = vpop.f32.mrb[0].mxu0
        %1663 = vmatprep.mubr.bf16.mxu0 0
        %1664 = vmatmul.mubr.bf16.gmra.mrb[0].mxu0 %v1595
        %v1665 = vpop.f32.mrb[0].mxu0
        %v1666 = vadd.f32 0.0, %v1665
        %v1667 = vpop.f32.mrb[0].mxu0
        %v1668 = vpop.f32.mrb[0].mxu0
        %v1669 = vadd.f32 0.0, %v1668
        %v1670 = vpop.f32.mrb[0].mxu0
        %1671 = vmatprep.mubr.bf16.mxu0 0
        %1672 = vmatmul.mubr.bf16.gmra.mrb[0].mxu0 %v1596
        %v1673 = vpop.f32.mrb[0].mxu0
        %v1674 = vadd.f32 0.0, %v1673
        %v1675 = vpop.f32.mrb[0].mxu0
        %v1676 = vpop.f32.mrb[0].mxu0
        %v1677 = vadd.f32 0.0, %v1676
        %v1678 = vpop.f32.mrb[0].mxu0
        %1679 = vmatprep.mubr.bf16.mxu0 0
        %1680 = vmatmul.mubr.bf16.gmra.mrb[0].mxu0 %v1597
        %v1681 = vpop.f32.mrb[0].mxu0
        %v1682 = vadd.f32 0.0, %v1681
        %v1683 = vpop.f32.mrb[0].mxu0
        %v1684 = vpop.f32.mrb[0].mxu0
        %v1685 = vadd.f32 0.0, %v1684
        %v1686 = vpop.f32.mrb[0].mxu0
        %1687 = vmatprep.mubr.bf16.mxu0 0
        %1688 = vmatmul.mubr.bf16.gmra.mrb[0].mxu0 %v1598
        %v1689 = vpop.f32.mrb[0].mxu0
        %v1690 = vadd.f32 0.0, %v1689
        %v1691 = vpop.f32.mrb[0].mxu0
        %v1692 = vpop.f32.mrb[0].mxu0
        %v1693 = vadd.f32 0.0, %v1692
        %v1694 = vpop.f32.mrb[0].mxu0
        %1695 = vdwg.mxu0
        %v1696 = vrcp.pop %v1560
        %v1697 = vrcp.pop %v1562
        %v1698 = vrcp.pop %v1564
        %v1699 = vrcp.pop %v1566
        %v1700 = vrcp.pop %v1568
        %v1701 = vrcp.pop %v1570
        %v1702 = vrcp.pop %v1572
        %v1703 = vrcp.pop %v1574
        %v1704 = vrcp.pop %v1576
        %v1705 = vrcp.pop %v1578
        %v1706 = vrcp.pop %v1580
        %v1707 = vrcp.pop %v1582
        %v1708 = vrcp.pop %v1584
        %v1709 = vrcp.pop %v1586
        %v1710 = vrcp.pop %v1588
        %v1711 = vrcp.pop %v1590
        %v1712 = vmul.f32 %v1634, %v1696
        %v1713 = vmul.f32 %v1637, %v1697
        %v1714 = vmul.f32 %v1642, %v1698
        %v1715 = vmul.f32 %v1645, %v1699
        %v1716 = vmul.f32 %v1650, %v1700
        %v1717 = vmul.f32 %v1653, %v1701
        %v1718 = vmul.f32 %v1658, %v1702
        %v1719 = vmul.f32 %v1661, %v1703
        %v1720 = vmul.f32 %v1666, %v1704
        %v1721 = vmul.f32 %v1669, %v1705
        %v1722 = vmul.f32 %v1674, %v1706
        %v1723 = vmul.f32 %v1677, %v1707
        %v1724 = vmul.f32 %v1682, %v1708
        %v1725 = vmul.f32 %v1685, %v1709
        %v1726 = vmul.f32 %v1690, %v1710
        %v1727 = vmul.f32 %v1693, %v1711
        %v1728 = vpack.c.bf16 %v1713, %v1712
        %v1729 = vpack.c.bf16 %v1715, %v1714
        %v1730 = vpack.c.bf16 %v1717, %v1716
        %v1731 = vpack.c.bf16 %v1719, %v1718
        %v1732 = vpack.c.bf16 %v1721, %v1720
        %v1733 = vpack.c.bf16 %v1723, %v1722
        %v1734 = vpack.c.bf16 %v1725, %v1724
        %v1735 = vpack.c.bf16 %v1727, %v1726
        %1736 = vst.msk [vmem:[#allocation4] sm:$0xff] %vm1333, %v1728
        %1737 = vst.msk [vmem:[#allocation4 + $0x8] sm:$0xff] %vm1333, %v1729
        %1738 = vst.msk [vmem:[#allocation4 + $0x10] sm:$0xff] %vm1333, %v1730
        %1739 = vst.msk [vmem:[#allocation4 + $0x18] sm:$0xff] %vm1333, %v1731
        %1740 = vst.msk [vmem:[#allocation4 + $0x20] sm:$0xff] %vm1333, %v1732
        %1741 = vst.msk [vmem:[#allocation4 + $0x28] sm:$0xff] %vm1333, %v1733
        %1742 = vst.msk [vmem:[#allocation4 + $0x30] sm:$0xff] %vm1333, %v1734
        %1743 = vst.msk [vmem:[#allocation4 + $0x38] sm:$0xff] %vm1333, %v1735
        %1752 = vrot.lane.b32.xlu0 %v1309, 96
        %v1753 = vpop.permute.xlu0 %1752
        %1754 = vrot.lane.b32.xlu0 %v1310, 96
        %v1755 = vpop.permute.xlu0 %1754
        %1756 = vrot.lane.b32.xlu0 %v1311, 96
        %v1757 = vpop.permute.xlu0 %1756
        %1758 = vrot.lane.b32.xlu0 %v1312, 96
        %v1759 = vpop.permute.xlu0 %1758
        %1760 = vrot.lane.b32.xlu0 %v1313, 96
        %v1761 = vpop.permute.xlu0 %1760
        %1762 = vrot.lane.b32.xlu0 %v1314, 96
        %v1763 = vpop.permute.xlu0 %1762
        %1764 = vrot.lane.b32.xlu0 %v1315, 96
        %v1765 = vpop.permute.xlu0 %1764
        %1766 = vrot.lane.b32.xlu0 %v1316, 96
        %v1767 = vpop.permute.xlu0 %1766
        %1776 = vrot.lane.b32.xlu0 %v1317, 96
        %v1777 = vpop.permute.xlu0 %1776
        %1778 = vrot.lane.b32.xlu0 %v1318, 96
        %v1779 = vpop.permute.xlu0 %1778
        %1780 = vrot.lane.b32.xlu0 %v1319, 96
        %v1781 = vpop.permute.xlu0 %1780
        %1782 = vrot.lane.b32.xlu0 %v1320, 96
        %v1783 = vpop.permute.xlu0 %1782
        %1784 = vrot.lane.b32.xlu0 %v1321, 96
        %v1785 = vpop.permute.xlu0 %1784
        %1786 = vrot.lane.b32.xlu0 %v1322, 96
        %v1787 = vpop.permute.xlu0 %1786
        %1788 = vrot.lane.b32.xlu0 %v1323, 96
        %v1789 = vpop.permute.xlu0 %1788
        %1790 = vrot.lane.b32.xlu0 %v1324, 96
        %v1791 = vpop.permute.xlu0 %1790
        %v1793 = vsel %vm1333, %v1753, 0
        %v1796 = vsel %vm1333, %v1755, 0
        %v1799 = vsel %vm1333, %v1757, 0
        %v1802 = vsel %vm1333, %v1759, 0
        %v1805 = vsel %vm1333, %v1761, 0
        %v1808 = vsel %vm1333, %v1763, 0
        %v1811 = vsel %vm1333, %v1765, 0
        %v1814 = vsel %vm1333, %v1767, 0
        %v1817 = vsel %vm1333, %v1777, 0
        %v1820 = vsel %vm1333, %v1779, 0
        %v1823 = vsel %vm1333, %v1781, 0
        %v1826 = vsel %vm1333, %v1783, 0
        %v1829 = vsel %vm1333, %v1785, 0
        %v1832 = vsel %vm1333, %v1787, 0
        %v1835 = vsel %vm1333, %v1789, 0
        %v1838 = vsel %vm1333, %v1791, 0
        %1840 = vmatprep.subr.bf16.mxu0 0
        %1841 = vmatpush1.bf16.xpose.msra.mxu0 %v1817
        %1842 = vmatprep.subr.bf16.mxu0 0
        %1843 = vmatpush1.bf16.xpose.msra.mxu0 %v1820
        %1844 = vmatprep.subr.bf16.mxu0 0
        %1845 = vmatpush1.bf16.xpose.msra.mxu0 %v1823
        %1846 = vmatprep.subr.bf16.mxu0 0
        %1847 = vmatpush1.bf16.xpose.msra.mxu0 %v1826
        %1848 = vmatprep.subr.bf16.mxu0 0
        %1849 = vmatpush1.bf16.xpose.msra.mxu0 %v1829
        %1850 = vmatprep.subr.bf16.mxu0 0
        %1851 = vmatpush1.bf16.xpose.msra.mxu0 %v1832
        %1852 = vmatprep.subr.bf16.mxu0 0
        %1853 = vmatpush1.bf16.xpose.msra.mxu0 %v1835
        %1854 = vmatprep.subr.bf16.mxu0 0
        %1855 = vmatpush1.bf16.xpose.msra.mxu0 %v1838
        %1856 = vmatprep.subr.bf16.mxu0 0
        %1857 = vmatpush1.bf16.xpose.msra.mxu0 0
        %1858 = vmatprep.subr.bf16.mxu0 0
        %1859 = vmatpush1.bf16.xpose.msra.mxu0 0
        %1860 = vmatprep.subr.bf16.mxu0 0
        %1861 = vmatpush1.bf16.xpose.msra.mxu0 0
        %1862 = vmatprep.subr.bf16.mxu0 0
        %1863 = vmatpush1.bf16.xpose.msra.mxu0 0
        %1864 = vmatprep.subr.bf16.mxu0 0
        %1865 = vmatpush1.bf16.xpose.msra.mxu0 0
        %1866 = vmatprep.subr.bf16.mxu0 0
        %1867 = vmatpush1.bf16.xpose.msra.mxu0 0
        %1868 = vmatprep.subr.bf16.mxu0 0
        %1869 = vmatpush1.bf16.xpose.msra.mxu0 0
        %1870 = vmatprep.subr.bf16.mxu0 0
        %1871 = vmatpush1.bf16.xpose.msra.mxu0 0
        %1872 = vmatprep.mubr.bf16.mxu0 0
        %1873 = vmatmul.mubr.bf16.gmra.mrb[0].mxu0 %v1793
        %v1874 = vpop.f32.mrb[0].mxu0
        %v1875 = vadd.f32 0.0, %v1874
        %v1876 = vpop.f32.mrb[0].mxu0
        %v1877 = vpop.f32.mrb[0].mxu0
        %v1878 = vadd.f32 0.0, %v1877
        %v1879 = vpop.f32.mrb[0].mxu0
        %1880 = vmatprep.mubr.bf16.mxu0 0
        %1881 = vmatmul.mubr.bf16.gmra.mrb[0].mxu0 %v1796
        %v1882 = vpop.f32.mrb[0].mxu0
        %v1883 = vadd.f32 0.0, %v1882
        %v1884 = vpop.f32.mrb[0].mxu0
        %v1885 = vpop.f32.mrb[0].mxu0
        %v1886 = vadd.f32 0.0, %v1885
        %v1887 = vpop.f32.mrb[0].mxu0
        %1888 = vmatprep.mubr.bf16.mxu0 0
        %1889 = vmatmul.mubr.bf16.gmra.mrb[0].mxu0 %v1799
        %v1890 = vpop.f32.mrb[0].mxu0
        %v1891 = vadd.f32 0.0, %v1890
        %v1892 = vpop.f32.mrb[0].mxu0
        %v1893 = vpop.f32.mrb[0].mxu0
        %v1894 = vadd.f32 0.0, %v1893
        %v1895 = vpop.f32.mrb[0].mxu0
        %1896 = vmatprep.mubr.bf16.mxu0 0
        %1897 = vmatmul.mubr.bf16.gmra.mrb[0].mxu0 %v1802
        %v1898 = vpop.f32.mrb[0].mxu0
        %v1899 = vadd.f32 0.0, %v1898
        %v1900 = vpop.f32.mrb[0].mxu0
        %v1901 = vpop.f32.mrb[0].mxu0
        %v1902 = vadd.f32 0.0, %v1901
        %v1903 = vpop.f32.mrb[0].mxu0
        %1904 = vmatprep.mubr.bf16.mxu0 0
        %1905 = vmatmul.mubr.bf16.gmra.mrb[0].mxu0 %v1805
        %v1906 = vpop.f32.mrb[0].mxu0
        %v1907 = vadd.f32 0.0, %v1906
        %v1908 = vpop.f32.mrb[0].mxu0
        %v1909 = vpop.f32.mrb[0].mxu0
        %v1910 = vadd.f32 0.0, %v1909
        %v1911 = vpop.f32.mrb[0].mxu0
        %1912 = vmatprep.mubr.bf16.mxu0 0
        %1913 = vmatmul.mubr.bf16.gmra.mrb[0].mxu0 %v1808
        %v1914 = vpop.f32.mrb[0].mxu0
        %v1915 = vadd.f32 0.0, %v1914
        %v1916 = vpop.f32.mrb[0].mxu0
        %v1917 = vpop.f32.mrb[0].mxu0
        %v1918 = vadd.f32 0.0, %v1917
        %v1919 = vpop.f32.mrb[0].mxu0
        %1920 = vmatprep.mubr.bf16.mxu0 0
        %1921 = vmatmul.mubr.bf16.gmra.mrb[0].mxu0 %v1811
        %v1922 = vpop.f32.mrb[0].mxu0
        %v1923 = vadd.f32 0.0, %v1922
        %v1924 = vpop.f32.mrb[0].mxu0
        %v1925 = vpop.f32.mrb[0].mxu0
        %v1926 = vadd.f32 0.0, %v1925
        %v1927 = vpop.f32.mrb[0].mxu0
        %1928 = vmatprep.mubr.bf16.mxu0 0
        %1929 = vmatmul.mubr.bf16.gmra.mrb[0].mxu0 %v1814
        %v1930 = vpop.f32.mrb[0].mxu0
        %v1931 = vadd.f32 0.0, %v1930
        %v1932 = vpop.f32.mrb[0].mxu0
        %v1933 = vpop.f32.mrb[0].mxu0
        %v1934 = vadd.f32 0.0, %v1933
        %v1935 = vpop.f32.mrb[0].mxu0
        %1936 = vdwg.mxu0
        %1937 = vmax.xlane.f32.xlu0 %v1875
        %v1938 = vpop.xlane.xlu0 %1937
        %1939 = vmax.xlane.f32.xlu0 %v1878
        %v1940 = vpop.xlane.xlu0 %1939
        %1941 = vmax.xlane.f32.xlu0 %v1883
        %v1942 = vpop.xlane.xlu0 %1941
        %1943 = vmax.xlane.f32.xlu0 %v1886
        %v1944 = vpop.xlane.xlu0 %1943
        %1945 = vmax.xlane.f32.xlu0 %v1891
        %v1946 = vpop.xlane.xlu0 %1945
        %1947 = vmax.xlane.f32.xlu0 %v1894
        %v1948 = vpop.xlane.xlu0 %1947
        %1949 = vmax.xlane.f32.xlu0 %v1899
        %v1950 = vpop.xlane.xlu0 %1949
        %1951 = vmax.xlane.f32.xlu0 %v1902
        %v1952 = vpop.xlane.xlu0 %1951
        %1953 = vmax.xlane.f32.xlu0 %v1907
        %v1954 = vpop.xlane.xlu0 %1953
        %1955 = vmax.xlane.f32.xlu0 %v1910
        %v1956 = vpop.xlane.xlu0 %1955
        %1957 = vmax.xlane.f32.xlu0 %v1915
        %v1958 = vpop.xlane.xlu0 %1957
        %1959 = vmax.xlane.f32.xlu0 %v1918
        %v1960 = vpop.xlane.xlu0 %1959
        %1961 = vmax.xlane.f32.xlu0 %v1923
        %v1962 = vpop.xlane.xlu0 %1961
        %1963 = vmax.xlane.f32.xlu0 %v1926
        %v1964 = vpop.xlane.xlu0 %1963
        %1965 = vmax.xlane.f32.xlu0 %v1931
        %v1966 = vpop.xlane.xlu0 %1965
        %1967 = vmax.xlane.f32.xlu0 %v1934
        %v1968 = vpop.xlane.xlu0 %1967
        %v1969 = vsub.f32 %v1875, %v1938
        %v1970 = vsub.f32 %v1878, %v1940
        %v1971 = vsub.f32 %v1883, %v1942
        %v1972 = vsub.f32 %v1886, %v1944
        %v1973 = vsub.f32 %v1891, %v1946
        %v1974 = vsub.f32 %v1894, %v1948
        %v1975 = vsub.f32 %v1899, %v1950
        %v1976 = vsub.f32 %v1902, %v1952
        %v1977 = vsub.f32 %v1907, %v1954
        %v1978 = vsub.f32 %v1910, %v1956
        %v1979 = vsub.f32 %v1915, %v1958
        %v1980 = vsub.f32 %v1918, %v1960
        %v1981 = vsub.f32 %v1923, %v1962
        %v1982 = vsub.f32 %v1926, %v1964
        %v1983 = vsub.f32 %v1931, %v1966
        %v1984 = vsub.f32 %v1934, %v1968
        %v1985 = vmul.f32 %v1969, 1.442695
        %v1986 = vpow.pop %v1985
        %v1987 = vmul.f32 %v1970, 1.442695
        %v1988 = vpow.pop %v1987
        %v1989 = vmul.f32 %v1971, 1.442695
        %v1990 = vpow.pop %v1989
        %v1991 = vmul.f32 %v1972, 1.442695
        %v1992 = vpow.pop %v1991
        %v1993 = vmul.f32 %v1973, 1.442695
        %v1994 = vpow.pop %v1993
        %v1995 = vmul.f32 %v1974, 1.442695
        %v1996 = vpow.pop %v1995
        %v1997 = vmul.f32 %v1975, 1.442695
        %v1998 = vpow.pop %v1997
        %v1999 = vmul.f32 %v1976, 1.442695
        %v2000 = vpow.pop %v1999
        %v2001 = vmul.f32 %v1977, 1.442695
        %v2002 = vpow.pop %v2001
        %v2003 = vmul.f32 %v1978, 1.442695
        %v2004 = vpow.pop %v2003
        %v2005 = vmul.f32 %v1979, 1.442695
        %v2006 = vpow.pop %v2005
        %v2007 = vmul.f32 %v1980, 1.442695
        %v2008 = vpow.pop %v2007
        %v2009 = vmul.f32 %v1981, 1.442695
        %v2010 = vpow.pop %v2009
        %v2011 = vmul.f32 %v1982, 1.442695
        %v2012 = vpow.pop %v2011
        %v2013 = vmul.f32 %v1983, 1.442695
        %v2014 = vpow.pop %v2013
        %v2015 = vmul.f32 %v1984, 1.442695
        %v2016 = vpow.pop %v2015
        %2017 = vadd.xlane.f32.xlu0 %v1986
        %v2018 = vpop.xlane.xlu0 %2017
        %2019 = vadd.xlane.f32.xlu0 %v1988
        %v2020 = vpop.xlane.xlu0 %2019
        %2021 = vadd.xlane.f32.xlu0 %v1990
        %v2022 = vpop.xlane.xlu0 %2021
        %2023 = vadd.xlane.f32.xlu0 %v1992
        %v2024 = vpop.xlane.xlu0 %2023
        %2025 = vadd.xlane.f32.xlu0 %v1994
        %v2026 = vpop.xlane.xlu0 %2025
        %2027 = vadd.xlane.f32.xlu0 %v1996
        %v2028 = vpop.xlane.xlu0 %2027
        %2029 = vadd.xlane.f32.xlu0 %v1998
        %v2030 = vpop.xlane.xlu0 %2029
        %2031 = vadd.xlane.f32.xlu0 %v2000
        %v2032 = vpop.xlane.xlu0 %2031
        %2033 = vadd.xlane.f32.xlu0 %v2002
        %v2034 = vpop.xlane.xlu0 %2033
        %2035 = vadd.xlane.f32.xlu0 %v2004
        %v2036 = vpop.xlane.xlu0 %2035
        %2037 = vadd.xlane.f32.xlu0 %v2006
        %v2038 = vpop.xlane.xlu0 %2037
        %2039 = vadd.xlane.f32.xlu0 %v2008
        %v2040 = vpop.xlane.xlu0 %2039
        %2041 = vadd.xlane.f32.xlu0 %v2010
        %v2042 = vpop.xlane.xlu0 %2041
        %2043 = vadd.xlane.f32.xlu0 %v2012
        %v2044 = vpop.xlane.xlu0 %2043
        %2045 = vadd.xlane.f32.xlu0 %v2014
        %v2046 = vpop.xlane.xlu0 %2045
        %2047 = vadd.xlane.f32.xlu0 %v2016
        %v2048 = vpop.xlane.xlu0 %2047
        %v2049 = vpack.c.bf16 %v1988, %v1986
        %v2050 = vpack.c.bf16 %v1992, %v1990
        %v2051 = vpack.c.bf16 %v1996, %v1994
        %v2052 = vpack.c.bf16 %v2000, %v1998
        %v2053 = vpack.c.bf16 %v2004, %v2002
        %v2054 = vpack.c.bf16 %v2008, %v2006
        %v2055 = vpack.c.bf16 %v2012, %v2010
        %v2056 = vpack.c.bf16 %v2016, %v2014
        %2065 = vrot.lane.b32.xlu0 %v1325, 96
        %v2066 = vpop.permute.xlu0 %2065
        %2067 = vrot.lane.b32.xlu0 %v1326, 96
        %v2068 = vpop.permute.xlu0 %2067
        %2069 = vrot.lane.b32.xlu0 %v1327, 96
        %v2070 = vpop.permute.xlu0 %2069
        %2071 = vrot.lane.b32.xlu0 %v1328, 96
        %v2072 = vpop.permute.xlu0 %2071
        %2073 = vrot.lane.b32.xlu0 %v1329, 96
        %v2074 = vpop.permute.xlu0 %2073
        %2075 = vrot.lane.b32.xlu0 %v1330, 96
        %v2076 = vpop.permute.xlu0 %2075
        %2077 = vrot.lane.b32.xlu0 %v1331, 96
        %v2078 = vpop.permute.xlu0 %2077
        %2079 = vrot.lane.b32.xlu0 %v1332, 96
        %v2080 = vpop.permute.xlu0 %2079
        %2089 = vmatprep.subr.bf16.mxu0 0
        %2090 = vmatpush1.bf16.msra.mxu0 %v2066
        %2091 = vmatprep.subr.bf16.mxu0 0
        %2092 = vmatpush1.bf16.msra.mxu0 %v2068
        %2093 = vmatprep.subr.bf16.mxu0 0
        %2094 = vmatpush1.bf16.msra.mxu0 %v2070
        %2095 = vmatprep.subr.bf16.mxu0 0
        %2096 = vmatpush1.bf16.msra.mxu0 %v2072
        %2097 = vmatprep.subr.bf16.mxu0 0
        %2098 = vmatpush1.bf16.msra.mxu0 %v2074
        %2099 = vmatprep.subr.bf16.mxu0 0
        %2100 = vmatpush1.bf16.msra.mxu0 %v2076
        %2101 = vmatprep.subr.bf16.mxu0 0
        %2102 = vmatpush1.bf16.msra.mxu0 %v2078
        %2103 = vmatprep.subr.bf16.mxu0 0
        %2104 = vmatpush1.bf16.msra.mxu0 %v2080
        %2105 = vmatprep.subr.bf16.mxu0 0
        %2106 = vmatpush1.bf16.msra.mxu0 0
        %2107 = vmatprep.subr.bf16.mxu0 0
        %2108 = vmatpush1.bf16.msra.mxu0 0
        %2109 = vmatprep.subr.bf16.mxu0 0
        %2110 = vmatpush1.bf16.msra.mxu0 0
        %2111 = vmatprep.subr.bf16.mxu0 0
        %2112 = vmatpush1.bf16.msra.mxu0 0
        %2113 = vmatprep.subr.bf16.mxu0 0
        %2114 = vmatpush1.bf16.msra.mxu0 0
        %2115 = vmatprep.subr.bf16.mxu0 0
        %2116 = vmatpush1.bf16.msra.mxu0 0
        %2117 = vmatprep.subr.bf16.mxu0 0
        %2118 = vmatpush1.bf16.msra.mxu0 0
        %2119 = vmatprep.subr.bf16.mxu0 0
        %2120 = vmatpush1.bf16.msra.mxu0 0
        %2121 = vmatprep.mubr.bf16.mxu0 0
        %2122 = vmatmul.mubr.bf16.gmra.mrb[0].mxu0 %v2049
        %v2123 = vpop.f32.mrb[0].mxu0
        %v2124 = vadd.f32 0.0, %v2123
        %v2125 = vpop.f32.mrb[0].mxu0
        %v2126 = vpop.f32.mrb[0].mxu0
        %v2127 = vadd.f32 0.0, %v2126
        %v2128 = vpop.f32.mrb[0].mxu0
        %2129 = vmatprep.mubr.bf16.mxu0 0
        %2130 = vmatmul.mubr.bf16.gmra.mrb[0].mxu0 %v2050
        %v2131 = vpop.f32.mrb[0].mxu0
        %v2132 = vadd.f32 0.0, %v2131
        %v2133 = vpop.f32.mrb[0].mxu0
        %v2134 = vpop.f32.mrb[0].mxu0
        %v2135 = vadd.f32 0.0, %v2134
        %v2136 = vpop.f32.mrb[0].mxu0
        %2137 = vmatprep.mubr.bf16.mxu0 0
        %2138 = vmatmul.mubr.bf16.gmra.mrb[0].mxu0 %v2051
        %v2139 = vpop.f32.mrb[0].mxu0
        %v2140 = vadd.f32 0.0, %v2139
        %v2141 = vpop.f32.mrb[0].mxu0
        %v2142 = vpop.f32.mrb[0].mxu0
        %v2143 = vadd.f32 0.0, %v2142
        %v2144 = vpop.f32.mrb[0].mxu0
        %2145 = vmatprep.mubr.bf16.mxu0 0
        %2146 = vmatmul.mubr.bf16.gmra.mrb[0].mxu0 %v2052
        %v2147 = vpop.f32.mrb[0].mxu0
        %v2148 = vadd.f32 0.0, %v2147
        %v2149 = vpop.f32.mrb[0].mxu0
        %v2150 = vpop.f32.mrb[0].mxu0
        %v2151 = vadd.f32 0.0, %v2150
        %v2152 = vpop.f32.mrb[0].mxu0
        %2153 = vmatprep.mubr.bf16.mxu0 0
        %2154 = vmatmul.mubr.bf16.gmra.mrb[0].mxu0 %v2053
        %v2155 = vpop.f32.mrb[0].mxu0
        %v2156 = vadd.f32 0.0, %v2155
        %v2157 = vpop.f32.mrb[0].mxu0
        %v2158 = vpop.f32.mrb[0].mxu0
        %v2159 = vadd.f32 0.0, %v2158
        %v2160 = vpop.f32.mrb[0].mxu0
        %2161 = vmatprep.mubr.bf16.mxu0 0
        %2162 = vmatmul.mubr.bf16.gmra.mrb[0].mxu0 %v2054
        %v2163 = vpop.f32.mrb[0].mxu0
        %v2164 = vadd.f32 0.0, %v2163
        %v2165 = vpop.f32.mrb[0].mxu0
        %v2166 = vpop.f32.mrb[0].mxu0
        %v2167 = vadd.f32 0.0, %v2166
        %v2168 = vpop.f32.mrb[0].mxu0
        %2169 = vmatprep.mubr.bf16.mxu0 0
        %2170 = vmatmul.mubr.bf16.gmra.mrb[0].mxu0 %v2055
        %v2171 = vpop.f32.mrb[0].mxu0
        %v2172 = vadd.f32 0.0, %v2171
        %v2173 = vpop.f32.mrb[0].mxu0
        %v2174 = vpop.f32.mrb[0].mxu0
        %v2175 = vadd.f32 0.0, %v2174
        %v2176 = vpop.f32.mrb[0].mxu0
        %2177 = vmatprep.mubr.bf16.mxu0 0
        %2178 = vmatmul.mubr.bf16.gmra.mrb[0].mxu0 %v2056
        %v2179 = vpop.f32.mrb[0].mxu0
        %v2180 = vadd.f32 0.0, %v2179
        %v2181 = vpop.f32.mrb[0].mxu0
        %v2182 = vpop.f32.mrb[0].mxu0
        %v2183 = vadd.f32 0.0, %v2182
        %v2184 = vpop.f32.mrb[0].mxu0
        %2185 = vdwg.mxu0
        %v2186 = vrcp.pop %v2018
        %v2187 = vrcp.pop %v2020
        %v2188 = vrcp.pop %v2022
        %v2189 = vrcp.pop %v2024
        %v2190 = vrcp.pop %v2026
        %v2191 = vrcp.pop %v2028
        %v2192 = vrcp.pop %v2030
        %v2193 = vrcp.pop %v2032
        %v2194 = vrcp.pop %v2034
        %v2195 = vrcp.pop %v2036
        %v2196 = vrcp.pop %v2038
        %v2197 = vrcp.pop %v2040
        %v2198 = vrcp.pop %v2042
        %v2199 = vrcp.pop %v2044
        %v2200 = vrcp.pop %v2046
        %v2201 = vrcp.pop %v2048
        %v2202 = vmul.f32 %v2124, %v2186
        %v2203 = vmul.f32 %v2127, %v2187
        %v2204 = vmul.f32 %v2132, %v2188
        %v2205 = vmul.f32 %v2135, %v2189
        %v2206 = vmul.f32 %v2140, %v2190
        %v2207 = vmul.f32 %v2143, %v2191
        %v2208 = vmul.f32 %v2148, %v2192
        %v2209 = vmul.f32 %v2151, %v2193
        %v2210 = vmul.f32 %v2156, %v2194
        %v2211 = vmul.f32 %v2159, %v2195
        %v2212 = vmul.f32 %v2164, %v2196
        %v2213 = vmul.f32 %v2167, %v2197
        %v2214 = vmul.f32 %v2172, %v2198
        %v2215 = vmul.f32 %v2175, %v2199
        %v2216 = vmul.f32 %v2180, %v2200
        %v2217 = vmul.f32 %v2183, %v2201
        %v2218 = vpack.c.bf16 %v2203, %v2202
        %v2219 = vpack.c.bf16 %v2205, %v2204
        %v2220 = vpack.c.bf16 %v2207, %v2206
        %v2221 = vpack.c.bf16 %v2209, %v2208
        %v2222 = vpack.c.bf16 %v2211, %v2210
        %v2223 = vpack.c.bf16 %v2213, %v2212
        %v2224 = vpack.c.bf16 %v2215, %v2214
        %v2225 = vpack.c.bf16 %v2217, %v2216
        %2234 = vrot.lane.b32.xlu0 %v2218, 32
        %v2235 = vpop.permute.xlu0 %2234
        %2236 = vrot.lane.b32.xlu0 %v2219, 32
        %v2237 = vpop.permute.xlu0 %2236
        %2238 = vrot.lane.b32.xlu0 %v2220, 32
        %v2239 = vpop.permute.xlu0 %2238
        %2240 = vrot.lane.b32.xlu0 %v2221, 32
        %v2241 = vpop.permute.xlu0 %2240
        %2242 = vrot.lane.b32.xlu0 %v2222, 32
        %v2243 = vpop.permute.xlu0 %2242
        %2244 = vrot.lane.b32.xlu0 %v2223, 32
        %v2245 = vpop.permute.xlu0 %2244
        %2246 = vrot.lane.b32.xlu0 %v2224, 32
        %v2247 = vpop.permute.xlu0 %2246
        %2248 = vrot.lane.b32.xlu0 %v2225, 32
        %v2249 = vpop.permute.xlu0 %2248
        %vm2258 = vcmask 523520
        %2259 = vst.msk [vmem:[#allocation4] sm:$0xff] %vm2258, %v2235
        %2260 = vst.msk [vmem:[#allocation4 + $0x8] sm:$0xff] %vm2258, %v2237
        %2261 = vst.msk [vmem:[#allocation4 + $0x10] sm:$0xff] %vm2258, %v2239
        %2262 = vst.msk [vmem:[#allocation4 + $0x18] sm:$0xff] %vm2258, %v2241
        %2263 = vst.msk [vmem:[#allocation4 + $0x20] sm:$0xff] %vm2258, %v2243
        %2264 = vst.msk [vmem:[#allocation4 + $0x28] sm:$0xff] %vm2258, %v2245
        %2265 = vst.msk [vmem:[#allocation4 + $0x30] sm:$0xff] %vm2258, %v2247
        %2266 = vst.msk [vmem:[#allocation4 + $0x38] sm:$0xff] %vm2258, %v2249
        %2267 = vrot.lane.b32.xlu0 %v1309, 64
        %v2268 = vpop.permute.xlu0 %2267
        %2269 = vrot.lane.b32.xlu0 %v1310, 64
        %v2270 = vpop.permute.xlu0 %2269
        %2271 = vrot.lane.b32.xlu0 %v1311, 64
        %v2272 = vpop.permute.xlu0 %2271
        %2273 = vrot.lane.b32.xlu0 %v1312, 64
        %v2274 = vpop.permute.xlu0 %2273
        %2275 = vrot.lane.b32.xlu0 %v1313, 64
        %v2276 = vpop.permute.xlu0 %2275
        %2277 = vrot.lane.b32.xlu0 %v1314, 64
        %v2278 = vpop.permute.xlu0 %2277
        %2279 = vrot.lane.b32.xlu0 %v1315, 64
        %v2280 = vpop.permute.xlu0 %2279
        %2281 = vrot.lane.b32.xlu0 %v1316, 64
        %v2282 = vpop.permute.xlu0 %2281
        %2283 = vrot.lane.b32.xlu0 %v1317, 64
        %v2284 = vpop.permute.xlu0 %2283
        %2285 = vrot.lane.b32.xlu0 %v1318, 64
        %v2286 = vpop.permute.xlu0 %2285
        %2287 = vrot.lane.b32.xlu0 %v1319, 64
        %v2288 = vpop.permute.xlu0 %2287
        %2289 = vrot.lane.b32.xlu0 %v1320, 64
        %v2290 = vpop.permute.xlu0 %2289
        %2291 = vrot.lane.b32.xlu0 %v1321, 64
        %v2292 = vpop.permute.xlu0 %2291
        %2293 = vrot.lane.b32.xlu0 %v1322, 64
        %v2294 = vpop.permute.xlu0 %2293
        %2295 = vrot.lane.b32.xlu0 %v1323, 64
        %v2296 = vpop.permute.xlu0 %2295
        %2297 = vrot.lane.b32.xlu0 %v1324, 64
        %v2298 = vpop.permute.xlu0 %2297
        %v2300 = vsel %vm1333, %v2268, 0
        %v2303 = vsel %vm1333, %v2270, 0
        %v2306 = vsel %vm1333, %v2272, 0
        %v2309 = vsel %vm1333, %v2274, 0
        %v2312 = vsel %vm1333, %v2276, 0
        %v2315 = vsel %vm1333, %v2278, 0
        %v2318 = vsel %vm1333, %v2280, 0
        %v2321 = vsel %vm1333, %v2282, 0
        %v2324 = vsel %vm1333, %v2284, 0
        %v2327 = vsel %vm1333, %v2286, 0
        %v2330 = vsel %vm1333, %v2288, 0
        %v2333 = vsel %vm1333, %v2290, 0
        %v2336 = vsel %vm1333, %v2292, 0
        %v2339 = vsel %vm1333, %v2294, 0
        %v2342 = vsel %vm1333, %v2296, 0
        %v2345 = vsel %vm1333, %v2298, 0
        %2347 = vmatprep.subr.bf16.mxu0 0
        %2348 = vmatpush1.bf16.xpose.msra.mxu0 %v2324
        %2349 = vmatprep.subr.bf16.mxu0 0
        %2350 = vmatpush1.bf16.xpose.msra.mxu0 %v2327
        %2351 = vmatprep.subr.bf16.mxu0 0
        %2352 = vmatpush1.bf16.xpose.msra.mxu0 %v2330
        %2353 = vmatprep.subr.bf16.mxu0 0
        %2354 = vmatpush1.bf16.xpose.msra.mxu0 %v2333
        %2355 = vmatprep.subr.bf16.mxu0 0
        %2356 = vmatpush1.bf16.xpose.msra.mxu0 %v2336
        %2357 = vmatprep.subr.bf16.mxu0 0
        %2358 = vmatpush1.bf16.xpose.msra.mxu0 %v2339
        %2359 = vmatprep.subr.bf16.mxu0 0
        %2360 = vmatpush1.bf16.xpose.msra.mxu0 %v2342
        %2361 = vmatprep.subr.bf16.mxu0 0
        %2362 = vmatpush1.bf16.xpose.msra.mxu0 %v2345
        %2363 = vmatprep.subr.bf16.mxu0 0
        %2364 = vmatpush1.bf16.xpose.msra.mxu0 0
        %2365 = vmatprep.subr.bf16.mxu0 0
        %2366 = vmatpush1.bf16.xpose.msra.mxu0 0
        %2367 = vmatprep.subr.bf16.mxu0 0
        %2368 = vmatpush1.bf16.xpose.msra.mxu0 0
        %2369 = vmatprep.subr.bf16.mxu0 0
        %2370 = vmatpush1.bf16.xpose.msra.mxu0 0
        %2371 = vmatprep.subr.bf16.mxu0 0
        %2372 = vmatpush1.bf16.xpose.msra.mxu0 0
        %2373 = vmatprep.subr.bf16.mxu0 0
        %2374 = vmatpush1.bf16.xpose.msra.mxu0 0
        %2375 = vmatprep.subr.bf16.mxu0 0
        %2376 = vmatpush1.bf16.xpose.msra.mxu0 0
        %2377 = vmatprep.subr.bf16.mxu0 0
        %2378 = vmatpush1.bf16.xpose.msra.mxu0 0
        %2379 = vmatprep.mubr.bf16.mxu0 0
        %2380 = vmatmul.mubr.bf16.gmra.mrb[0].mxu0 %v2300
        %v2381 = vpop.f32.mrb[0].mxu0
        %v2382 = vadd.f32 0.0, %v2381
        %v2383 = vpop.f32.mrb[0].mxu0
        %v2384 = vpop.f32.mrb[0].mxu0
        %v2385 = vadd.f32 0.0, %v2384
        %v2386 = vpop.f32.mrb[0].mxu0
        %2387 = vmatprep.mubr.bf16.mxu0 0
        %2388 = vmatmul.mubr.bf16.gmra.mrb[0].mxu0 %v2303
        %v2389 = vpop.f32.mrb[0].mxu0
        %v2390 = vadd.f32 0.0, %v2389
        %v2391 = vpop.f32.mrb[0].mxu0
        %v2392 = vpop.f32.mrb[0].mxu0
        %v2393 = vadd.f32 0.0, %v2392
        %v2394 = vpop.f32.mrb[0].mxu0
        %2395 = vmatprep.mubr.bf16.mxu0 0
        %2396 = vmatmul.mubr.bf16.gmra.mrb[0].mxu0 %v2306
        %v2397 = vpop.f32.mrb[0].mxu0
        %v2398 = vadd.f32 0.0, %v2397
        %v2399 = vpop.f32.mrb[0].mxu0
        %v2400 = vpop.f32.mrb[0].mxu0
        %v2401 = vadd.f32 0.0, %v2400
        %v2402 = vpop.f32.mrb[0].mxu0
        %2403 = vmatprep.mubr.bf16.mxu0 0
        %2404 = vmatmul.mubr.bf16.gmra.mrb[0].mxu0 %v2309
        %v2405 = vpop.f32.mrb[0].mxu0
        %v2406 = vadd.f32 0.0, %v2405
        %v2407 = vpop.f32.mrb[0].mxu0
        %v2408 = vpop.f32.mrb[0].mxu0
        %v2409 = vadd.f32 0.0, %v2408
        %v2410 = vpop.f32.mrb[0].mxu0
        %2411 = vmatprep.mubr.bf16.mxu0 0
        %2412 = vmatmul.mubr.bf16.gmra.mrb[0].mxu0 %v2312
        %v2413 = vpop.f32.mrb[0].mxu0
        %v2414 = vadd.f32 0.0, %v2413
        %v2415 = vpop.f32.mrb[0].mxu0
        %v2416 = vpop.f32.mrb[0].mxu0
        %v2417 = vadd.f32 0.0, %v2416
        %v2418 = vpop.f32.mrb[0].mxu0
        %2419 = vmatprep.mubr.bf16.mxu0 0
        %2420 = vmatmul.mubr.bf16.gmra.mrb[0].mxu0 %v2315
        %v2421 = vpop.f32.mrb[0].mxu0
        %v2422 = vadd.f32 0.0, %v2421
        %v2423 = vpop.f32.mrb[0].mxu0
        %v2424 = vpop.f32.mrb[0].mxu0
        %v2425 = vadd.f32 0.0, %v2424
        %v2426 = vpop.f32.mrb[0].mxu0
        %2427 = vmatprep.mubr.bf16.mxu0 0
        %2428 = vmatmul.mubr.bf16.gmra.mrb[0].mxu0 %v2318
        %v2429 = vpop.f32.mrb[0].mxu0
        %v2430 = vadd.f32 0.0, %v2429
        %v2431 = vpop.f32.mrb[0].mxu0
        %v2432 = vpop.f32.mrb[0].mxu0
        %v2433 = vadd.f32 0.0, %v2432
        %v2434 = vpop.f32.mrb[0].mxu0
        %2435 = vmatprep.mubr.bf16.mxu0 0
        %2436 = vmatmul.mubr.bf16.gmra.mrb[0].mxu0 %v2321
        %v2437 = vpop.f32.mrb[0].mxu0
        %v2438 = vadd.f32 0.0, %v2437
        %v2439 = vpop.f32.mrb[0].mxu0
        %v2440 = vpop.f32.mrb[0].mxu0
        %v2441 = vadd.f32 0.0, %v2440
        %v2442 = vpop.f32.mrb[0].mxu0
        %2443 = vdwg.mxu0
        %2444 = vmax.xlane.f32.xlu0 %v2382
        %v2445 = vpop.xlane.xlu0 %2444
        %2446 = vmax.xlane.f32.xlu0 %v2385
        %v2447 = vpop.xlane.xlu0 %2446
        %2448 = vmax.xlane.f32.xlu0 %v2390
        %v2449 = vpop.xlane.xlu0 %2448
        %2450 = vmax.xlane.f32.xlu0 %v2393
        %v2451 = vpop.xlane.xlu0 %2450
        %2452 = vmax.xlane.f32.xlu0 %v2398
        %v2453 = vpop.xlane.xlu0 %2452
        %2454 = vmax.xlane.f32.xlu0 %v2401
        %v2455 = vpop.xlane.xlu0 %2454
        %2456 = vmax.xlane.f32.xlu0 %v2406
        %v2457 = vpop.xlane.xlu0 %2456
        %2458 = vmax.xlane.f32.xlu0 %v2409
        %v2459 = vpop.xlane.xlu0 %2458
        %2460 = vmax.xlane.f32.xlu0 %v2414
        %v2461 = vpop.xlane.xlu0 %2460
        %2462 = vmax.xlane.f32.xlu0 %v2417
        %v2463 = vpop.xlane.xlu0 %2462
        %2464 = vmax.xlane.f32.xlu0 %v2422
        %v2465 = vpop.xlane.xlu0 %2464
        %2466 = vmax.xlane.f32.xlu0 %v2425
        %v2467 = vpop.xlane.xlu0 %2466
        %2468 = vmax.xlane.f32.xlu0 %v2430
        %v2469 = vpop.xlane.xlu0 %2468
        %2470 = vmax.xlane.f32.xlu0 %v2433
        %v2471 = vpop.xlane.xlu0 %2470
        %2472 = vmax.xlane.f32.xlu0 %v2438
        %v2473 = vpop.xlane.xlu0 %2472
        %2474 = vmax.xlane.f32.xlu0 %v2441
        %v2475 = vpop.xlane.xlu0 %2474
        %v2476 = vsub.f32 %v2382, %v2445
        %v2477 = vsub.f32 %v2385, %v2447
        %v2478 = vsub.f32 %v2390, %v2449
        %v2479 = vsub.f32 %v2393, %v2451
        %v2480 = vsub.f32 %v2398, %v2453
        %v2481 = vsub.f32 %v2401, %v2455
        %v2482 = vsub.f32 %v2406, %v2457
        %v2483 = vsub.f32 %v2409, %v2459
        %v2484 = vsub.f32 %v2414, %v2461
        %v2485 = vsub.f32 %v2417, %v2463
        %v2486 = vsub.f32 %v2422, %v2465
        %v2487 = vsub.f32 %v2425, %v2467
        %v2488 = vsub.f32 %v2430, %v2469
        %v2489 = vsub.f32 %v2433, %v2471
        %v2490 = vsub.f32 %v2438, %v2473
        %v2491 = vsub.f32 %v2441, %v2475
        %v2492 = vmul.f32 %v2476, 1.442695
        %v2493 = vpow.pop %v2492
        %v2494 = vmul.f32 %v2477, 1.442695
        %v2495 = vpow.pop %v2494
        %v2496 = vmul.f32 %v2478, 1.442695
        %v2497 = vpow.pop %v2496
        %v2498 = vmul.f32 %v2479, 1.442695
        %v2499 = vpow.pop %v2498
        %v2500 = vmul.f32 %v2480, 1.442695
        %v2501 = vpow.pop %v2500
        %v2502 = vmul.f32 %v2481, 1.442695
        %v2503 = vpow.pop %v2502
        %v2504 = vmul.f32 %v2482, 1.442695
        %v2505 = vpow.pop %v2504
        %v2506 = vmul.f32 %v2483, 1.442695
        %v2507 = vpow.pop %v2506
        %v2508 = vmul.f32 %v2484, 1.442695
        %v2509 = vpow.pop %v2508
        %v2510 = vmul.f32 %v2485, 1.442695
        %v2511 = vpow.pop %v2510
        %v2512 = vmul.f32 %v2486, 1.442695
        %v2513 = vpow.pop %v2512
        %v2514 = vmul.f32 %v2487, 1.442695
        %v2515 = vpow.pop %v2514
        %v2516 = vmul.f32 %v2488, 1.442695
        %v2517 = vpow.pop %v2516
        %v2518 = vmul.f32 %v2489, 1.442695
        %v2519 = vpow.pop %v2518
        %v2520 = vmul.f32 %v2490, 1.442695
        %v2521 = vpow.pop %v2520
        %v2522 = vmul.f32 %v2491, 1.442695
        %v2523 = vpow.pop %v2522
        %2524 = vadd.xlane.f32.xlu0 %v2493
        %v2525 = vpop.xlane.xlu0 %2524
        %2526 = vadd.xlane.f32.xlu0 %v2495
        %v2527 = vpop.xlane.xlu0 %2526
        %2528 = vadd.xlane.f32.xlu0 %v2497
        %v2529 = vpop.xlane.xlu0 %2528
        %2530 = vadd.xlane.f32.xlu0 %v2499
        %v2531 = vpop.xlane.xlu0 %2530
        %2532 = vadd.xlane.f32.xlu0 %v2501
        %v2533 = vpop.xlane.xlu0 %2532
        %2534 = vadd.xlane.f32.xlu0 %v2503
        %v2535 = vpop.xlane.xlu0 %2534
        %2536 = vadd.xlane.f32.xlu0 %v2505
        %v2537 = vpop.xlane.xlu0 %2536
        %2538 = vadd.xlane.f32.xlu0 %v2507
        %v2539 = vpop.xlane.xlu0 %2538
        %2540 = vadd.xlane.f32.xlu0 %v2509
        %v2541 = vpop.xlane.xlu0 %2540
        %2542 = vadd.xlane.f32.xlu0 %v2511
        %v2543 = vpop.xlane.xlu0 %2542
        %2544 = vadd.xlane.f32.xlu0 %v2513
        %v2545 = vpop.xlane.xlu0 %2544
        %2546 = vadd.xlane.f32.xlu0 %v2515
        %v2547 = vpop.xlane.xlu0 %2546
        %2548 = vadd.xlane.f32.xlu0 %v2517
        %v2549 = vpop.xlane.xlu0 %2548
        %2550 = vadd.xlane.f32.xlu0 %v2519
        %v2551 = vpop.xlane.xlu0 %2550
        %2552 = vadd.xlane.f32.xlu0 %v2521
        %v2553 = vpop.xlane.xlu0 %2552
        %2554 = vadd.xlane.f32.xlu0 %v2523
        %v2555 = vpop.xlane.xlu0 %2554
        %v2556 = vpack.c.bf16 %v2495, %v2493
        %v2557 = vpack.c.bf16 %v2499, %v2497
        %v2558 = vpack.c.bf16 %v2503, %v2501
        %v2559 = vpack.c.bf16 %v2507, %v2505
        %v2560 = vpack.c.bf16 %v2511, %v2509
        %v2561 = vpack.c.bf16 %v2515, %v2513
        %v2562 = vpack.c.bf16 %v2519, %v2517
        %v2563 = vpack.c.bf16 %v2523, %v2521
        %2564 = vrot.lane.b32.xlu0 %v1325, 64
        %v2565 = vpop.permute.xlu0 %2564
        %2566 = vrot.lane.b32.xlu0 %v1326, 64
        %v2567 = vpop.permute.xlu0 %2566
        %2568 = vrot.lane.b32.xlu0 %v1327, 64
        %v2569 = vpop.permute.xlu0 %2568
        %2570 = vrot.lane.b32.xlu0 %v1328, 64
        %v2571 = vpop.permute.xlu0 %2570
        %2572 = vrot.lane.b32.xlu0 %v1329, 64
        %v2573 = vpop.permute.xlu0 %2572
        %2574 = vrot.lane.b32.xlu0 %v1330, 64
        %v2575 = vpop.permute.xlu0 %2574
        %2576 = vrot.lane.b32.xlu0 %v1331, 64
        %v2577 = vpop.permute.xlu0 %2576
        %2578 = vrot.lane.b32.xlu0 %v1332, 64
        %v2579 = vpop.permute.xlu0 %2578
        %2588 = vmatprep.subr.bf16.mxu0 0
        %2589 = vmatpush1.bf16.msra.mxu0 %v2565
        %2590 = vmatprep.subr.bf16.mxu0 0
        %2591 = vmatpush1.bf16.msra.mxu0 %v2567
        %2592 = vmatprep.subr.bf16.mxu0 0
        %2593 = vmatpush1.bf16.msra.mxu0 %v2569
        %2594 = vmatprep.subr.bf16.mxu0 0
        %2595 = vmatpush1.bf16.msra.mxu0 %v2571
        %2596 = vmatprep.subr.bf16.mxu0 0
        %2597 = vmatpush1.bf16.msra.mxu0 %v2573
        %2598 = vmatprep.subr.bf16.mxu0 0
        %2599 = vmatpush1.bf16.msra.mxu0 %v2575
        %2600 = vmatprep.subr.bf16.mxu0 0
        %2601 = vmatpush1.bf16.msra.mxu0 %v2577
        %2602 = vmatprep.subr.bf16.mxu0 0
        %2603 = vmatpush1.bf16.msra.mxu0 %v2579
        %2604 = vmatprep.subr.bf16.mxu0 0
        %2605 = vmatpush1.bf16.msra.mxu0 0
        %2606 = vmatprep.subr.bf16.mxu0 0
        %2607 = vmatpush1.bf16.msra.mxu0 0
        %2608 = vmatprep.subr.bf16.mxu0 0
        %2609 = vmatpush1.bf16.msra.mxu0 0
        %2610 = vmatprep.subr.bf16.mxu0 0
        %2611 = vmatpush1.bf16.msra.mxu0 0
        %2612 = vmatprep.subr.bf16.mxu0 0
        %2613 = vmatpush1.bf16.msra.mxu0 0
        %2614 = vmatprep.subr.bf16.mxu0 0
        %2615 = vmatpush1.bf16.msra.mxu0 0
        %2616 = vmatprep.subr.bf16.mxu0 0
        %2617 = vmatpush1.bf16.msra.mxu0 0
        %2618 = vmatprep.subr.bf16.mxu0 0
        %2619 = vmatpush1.bf16.msra.mxu0 0
        %2620 = vmatprep.mubr.bf16.mxu0 0
        %2621 = vmatmul.mubr.bf16.gmra.mrb[0].mxu0 %v2556
        %v2622 = vpop.f32.mrb[0].mxu0
        %v2623 = vadd.f32 0.0, %v2622
        %v2624 = vpop.f32.mrb[0].mxu0
        %v2625 = vpop.f32.mrb[0].mxu0
        %v2626 = vadd.f32 0.0, %v2625
        %v2627 = vpop.f32.mrb[0].mxu0
        %2628 = vmatprep.mubr.bf16.mxu0 0
        %2629 = vmatmul.mubr.bf16.gmra.mrb[0].mxu0 %v2557
        %v2630 = vpop.f32.mrb[0].mxu0
        %v2631 = vadd.f32 0.0, %v2630
        %v2632 = vpop.f32.mrb[0].mxu0
        %v2633 = vpop.f32.mrb[0].mxu0
        %v2634 = vadd.f32 0.0, %v2633
        %v2635 = vpop.f32.mrb[0].mxu0
        %2636 = vmatprep.mubr.bf16.mxu0 0
        %2637 = vmatmul.mubr.bf16.gmra.mrb[0].mxu0 %v2558
        %v2638 = vpop.f32.mrb[0].mxu0
        %v2639 = vadd.f32 0.0, %v2638
        %v2640 = vpop.f32.mrb[0].mxu0
        %v2641 = vpop.f32.mrb[0].mxu0
        %v2642 = vadd.f32 0.0, %v2641
        %v2643 = vpop.f32.mrb[0].mxu0
        %2644 = vmatprep.mubr.bf16.mxu0 0
        %2645 = vmatmul.mubr.bf16.gmra.mrb[0].mxu0 %v2559
        %v2646 = vpop.f32.mrb[0].mxu0
        %v2647 = vadd.f32 0.0, %v2646
        %v2648 = vpop.f32.mrb[0].mxu0
        %v2649 = vpop.f32.mrb[0].mxu0
        %v2650 = vadd.f32 0.0, %v2649
        %v2651 = vpop.f32.mrb[0].mxu0
        %2652 = vmatprep.mubr.bf16.mxu0 0
        %2653 = vmatmul.mubr.bf16.gmra.mrb[0].mxu0 %v2560
        %v2654 = vpop.f32.mrb[0].mxu0
        %v2655 = vadd.f32 0.0, %v2654
        %v2656 = vpop.f32.mrb[0].mxu0
        %v2657 = vpop.f32.mrb[0].mxu0
        %v2658 = vadd.f32 0.0, %v2657
        %v2659 = vpop.f32.mrb[0].mxu0
        %2660 = vmatprep.mubr.bf16.mxu0 0
        %2661 = vmatmul.mubr.bf16.gmra.mrb[0].mxu0 %v2561
        %v2662 = vpop.f32.mrb[0].mxu0
        %v2663 = vadd.f32 0.0, %v2662
        %v2664 = vpop.f32.mrb[0].mxu0
        %v2665 = vpop.f32.mrb[0].mxu0
        %v2666 = vadd.f32 0.0, %v2665
        %v2667 = vpop.f32.mrb[0].mxu0
        %2668 = vmatprep.mubr.bf16.mxu0 0
        %2669 = vmatmul.mubr.bf16.gmra.mrb[0].mxu0 %v2562
        %v2670 = vpop.f32.mrb[0].mxu0
        %v2671 = vadd.f32 0.0, %v2670
        %v2672 = vpop.f32.mrb[0].mxu0
        %v2673 = vpop.f32.mrb[0].mxu0
        %v2674 = vadd.f32 0.0, %v2673
        %v2675 = vpop.f32.mrb[0].mxu0
        %2676 = vmatprep.mubr.bf16.mxu0 0
        %2677 = vmatmul.mubr.bf16.gmra.mrb[0].mxu0 %v2563
        %v2678 = vpop.f32.mrb[0].mxu0
        %v2679 = vadd.f32 0.0, %v2678
        %v2680 = vpop.f32.mrb[0].mxu0
        %v2681 = vpop.f32.mrb[0].mxu0
        %v2682 = vadd.f32 0.0, %v2681
        %v2683 = vpop.f32.mrb[0].mxu0
        %2684 = vdwg.mxu0
        %v2685 = vrcp.pop %v2525
        %v2686 = vrcp.pop %v2527
        %v2687 = vrcp.pop %v2529
        %v2688 = vrcp.pop %v2531
        %v2689 = vrcp.pop %v2533
        %v2690 = vrcp.pop %v2535
        %v2691 = vrcp.pop %v2537
        %v2692 = vrcp.pop %v2539
        %v2693 = vrcp.pop %v2541
        %v2694 = vrcp.pop %v2543
        %v2695 = vrcp.pop %v2545
        %v2696 = vrcp.pop %v2547
        %v2697 = vrcp.pop %v2549
        %v2698 = vrcp.pop %v2551
        %v2699 = vrcp.pop %v2553
        %v2700 = vrcp.pop %v2555
        %v2701 = vmul.f32 %v2623, %v2685
        %v2702 = vmul.f32 %v2626, %v2686
        %v2703 = vmul.f32 %v2631, %v2687
        %v2704 = vmul.f32 %v2634, %v2688
        %v2705 = vmul.f32 %v2639, %v2689
        %v2706 = vmul.f32 %v2642, %v2690
        %v2707 = vmul.f32 %v2647, %v2691
        %v2708 = vmul.f32 %v2650, %v2692
        %v2709 = vmul.f32 %v2655, %v2693
        %v2710 = vmul.f32 %v2658, %v2694
        %v2711 = vmul.f32 %v2663, %v2695
        %v2712 = vmul.f32 %v2666, %v2696
        %v2713 = vmul.f32 %v2671, %v2697
        %v2714 = vmul.f32 %v2674, %v2698
        %v2715 = vmul.f32 %v2679, %v2699
        %v2716 = vmul.f32 %v2682, %v2700
        %v2717 = vpack.c.bf16 %v2702, %v2701
        %v2718 = vpack.c.bf16 %v2704, %v2703
        %v2719 = vpack.c.bf16 %v2706, %v2705
        %v2720 = vpack.c.bf16 %v2708, %v2707
        %v2721 = vpack.c.bf16 %v2710, %v2709
        %v2722 = vpack.c.bf16 %v2712, %v2711
        %v2723 = vpack.c.bf16 %v2714, %v2713
        %v2724 = vpack.c.bf16 %v2716, %v2715
        %2733 = vrot.lane.b32.xlu0 %v2717, 64
        %v2734 = vpop.permute.xlu0 %2733
        %2735 = vrot.lane.b32.xlu0 %v2718, 64
        %v2736 = vpop.permute.xlu0 %2735
        %2737 = vrot.lane.b32.xlu0 %v2719, 64
        %v2738 = vpop.permute.xlu0 %2737
        %2739 = vrot.lane.b32.xlu0 %v2720, 64
        %v2740 = vpop.permute.xlu0 %2739
        %2741 = vrot.lane.b32.xlu0 %v2721, 64
        %v2742 = vpop.permute.xlu0 %2741
        %2743 = vrot.lane.b32.xlu0 %v2722, 64
        %v2744 = vpop.permute.xlu0 %2743
        %2745 = vrot.lane.b32.xlu0 %v2723, 64
        %v2746 = vpop.permute.xlu0 %2745
        %2747 = vrot.lane.b32.xlu0 %v2724, 64
        %v2748 = vpop.permute.xlu0 %2747
        %vm2757 = vcmask 785920
        %2758 = vst.msk [vmem:[#allocation4] sm:$0xff] %vm2757, %v2734
        %2759 = vst.msk [vmem:[#allocation4 + $0x8] sm:$0xff] %vm2757, %v2736
        %2760 = vst.msk [vmem:[#allocation4 + $0x10] sm:$0xff] %vm2757, %v2738
        %2761 = vst.msk [vmem:[#allocation4 + $0x18] sm:$0xff] %vm2757, %v2740
        %2762 = vst.msk [vmem:[#allocation4 + $0x20] sm:$0xff] %vm2757, %v2742
        %2763 = vst.msk [vmem:[#allocation4 + $0x28] sm:$0xff] %vm2757, %v2744
        %2764 = vst.msk [vmem:[#allocation4 + $0x30] sm:$0xff] %vm2757, %v2746
        %2765 = vst.msk [vmem:[#allocation4 + $0x38] sm:$0xff] %vm2757, %v2748
        %2766 = vrot.lane.b32.xlu0 %v1309, 32
        %v2767 = vpop.permute.xlu0 %2766
        %2768 = vrot.lane.b32.xlu0 %v1310, 32
        %v2769 = vpop.permute.xlu0 %2768
        %2770 = vrot.lane.b32.xlu0 %v1311, 32
        %v2771 = vpop.permute.xlu0 %2770
        %2772 = vrot.lane.b32.xlu0 %v1312, 32
        %v2773 = vpop.permute.xlu0 %2772
        %2774 = vrot.lane.b32.xlu0 %v1313, 32
        %v2775 = vpop.permute.xlu0 %2774
        %2776 = vrot.lane.b32.xlu0 %v1314, 32
        %v2777 = vpop.permute.xlu0 %2776
        %2778 = vrot.lane.b32.xlu0 %v1315, 32
        %v2779 = vpop.permute.xlu0 %2778
        %2780 = vrot.lane.b32.xlu0 %v1316, 32
        %v2781 = vpop.permute.xlu0 %2780
        %2782 = vrot.lane.b32.xlu0 %v1317, 32
        %v2783 = vpop.permute.xlu0 %2782
        %2784 = vrot.lane.b32.xlu0 %v1318, 32
        %v2785 = vpop.permute.xlu0 %2784
        %2786 = vrot.lane.b32.xlu0 %v1319, 32
        %v2787 = vpop.permute.xlu0 %2786
        %2788 = vrot.lane.b32.xlu0 %v1320, 32
        %v2789 = vpop.permute.xlu0 %2788
        %2790 = vrot.lane.b32.xlu0 %v1321, 32
        %v2791 = vpop.permute.xlu0 %2790
        %2792 = vrot.lane.b32.xlu0 %v1322, 32
        %v2793 = vpop.permute.xlu0 %2792
        %2794 = vrot.lane.b32.xlu0 %v1323, 32
        %v2795 = vpop.permute.xlu0 %2794
        %2796 = vrot.lane.b32.xlu0 %v1324, 32
        %v2797 = vpop.permute.xlu0 %2796
        %v2799 = vsel %vm1333, %v2767, 0
        %v2802 = vsel %vm1333, %v2769, 0
        %v2805 = vsel %vm1333, %v2771, 0
        %v2808 = vsel %vm1333, %v2773, 0
        %v2811 = vsel %vm1333, %v2775, 0
        %v2814 = vsel %vm1333, %v2777, 0
        %v2817 = vsel %vm1333, %v2779, 0
        %v2820 = vsel %vm1333, %v2781, 0
        %v2823 = vsel %vm1333, %v2783, 0
        %v2826 = vsel %vm1333, %v2785, 0
        %v2829 = vsel %vm1333, %v2787, 0
        %v2832 = vsel %vm1333, %v2789, 0
        %v2835 = vsel %vm1333, %v2791, 0
        %v2838 = vsel %vm1333, %v2793, 0
        %v2841 = vsel %vm1333, %v2795, 0
        %v2844 = vsel %vm1333, %v2797, 0
        %2846 = vmatprep.subr.bf16.mxu0 0
        %2847 = vmatpush1.bf16.xpose.msra.mxu0 %v2823
        %2848 = vmatprep.subr.bf16.mxu0 0
        %2849 = vmatpush1.bf16.xpose.msra.mxu0 %v2826
        %2850 = vmatprep.subr.bf16.mxu0 0
        %2851 = vmatpush1.bf16.xpose.msra.mxu0 %v2829
        %2852 = vmatprep.subr.bf16.mxu0 0
        %2853 = vmatpush1.bf16.xpose.msra.mxu0 %v2832
        %2854 = vmatprep.subr.bf16.mxu0 0
        %2855 = vmatpush1.bf16.xpose.msra.mxu0 %v2835
        %2856 = vmatprep.subr.bf16.mxu0 0
        %2857 = vmatpush1.bf16.xpose.msra.mxu0 %v2838
        %2858 = vmatprep.subr.bf16.mxu0 0
        %2859 = vmatpush1.bf16.xpose.msra.mxu0 %v2841
        %2860 = vmatprep.subr.bf16.mxu0 0
        %2861 = vmatpush1.bf16.xpose.msra.mxu0 %v2844
        %2862 = vmatprep.subr.bf16.mxu0 0
        %2863 = vmatpush1.bf16.xpose.msra.mxu0 0
        %2864 = vmatprep.subr.bf16.mxu0 0
        %2865 = vmatpush1.bf16.xpose.msra.mxu0 0
        %2866 = vmatprep.subr.bf16.mxu0 0
        %2867 = vmatpush1.bf16.xpose.msra.mxu0 0
        %2868 = vmatprep.subr.bf16.mxu0 0
        %2869 = vmatpush1.bf16.xpose.msra.mxu0 0
        %2870 = vmatprep.subr.bf16.mxu0 0
        %2871 = vmatpush1.bf16.xpose.msra.mxu0 0
        %2872 = vmatprep.subr.bf16.mxu0 0
        %2873 = vmatpush1.bf16.xpose.msra.mxu0 0
        %2874 = vmatprep.subr.bf16.mxu0 0
        %2875 = vmatpush1.bf16.xpose.msra.mxu0 0
        %2876 = vmatprep.subr.bf16.mxu0 0
        %2877 = vmatpush1.bf16.xpose.msra.mxu0 0
        %2878 = vmatprep.mubr.bf16.mxu0 0
        %2879 = vmatmul.mubr.bf16.gmra.mrb[0].mxu0 %v2799
        %v2880 = vpop.f32.mrb[0].mxu0
        %v2881 = vadd.f32 0.0, %v2880
        %v2882 = vpop.f32.mrb[0].mxu0
        %v2883 = vpop.f32.mrb[0].mxu0
        %v2884 = vadd.f32 0.0, %v2883
        %v2885 = vpop.f32.mrb[0].mxu0
        %2886 = vmatprep.mubr.bf16.mxu0 0
        %2887 = vmatmul.mubr.bf16.gmra.mrb[0].mxu0 %v2802
        %v2888 = vpop.f32.mrb[0].mxu0
        %v2889 = vadd.f32 0.0, %v2888
        %v2890 = vpop.f32.mrb[0].mxu0
        %v2891 = vpop.f32.mrb[0].mxu0
        %v2892 = vadd.f32 0.0, %v2891
        %v2893 = vpop.f32.mrb[0].mxu0
        %2894 = vmatprep.mubr.bf16.mxu0 0
        %2895 = vmatmul.mubr.bf16.gmra.mrb[0].mxu0 %v2805
        %v2896 = vpop.f32.mrb[0].mxu0
        %v2897 = vadd.f32 0.0, %v2896
        %v2898 = vpop.f32.mrb[0].mxu0
        %v2899 = vpop.f32.mrb[0].mxu0
        %v2900 = vadd.f32 0.0, %v2899
        %v2901 = vpop.f32.mrb[0].mxu0
        %2902 = vmatprep.mubr.bf16.mxu0 0
        %2903 = vmatmul.mubr.bf16.gmra.mrb[0].mxu0 %v2808
        %v2904 = vpop.f32.mrb[0].mxu0
        %v2905 = vadd.f32 0.0, %v2904
        %v2906 = vpop.f32.mrb[0].mxu0
        %v2907 = vpop.f32.mrb[0].mxu0
        %v2908 = vadd.f32 0.0, %v2907
        %v2909 = vpop.f32.mrb[0].mxu0
        %2910 = vmatprep.mubr.bf16.mxu0 0
        %2911 = vmatmul.mubr.bf16.gmra.mrb[0].mxu0 %v2811
        %v2912 = vpop.f32.mrb[0].mxu0
        %v2913 = vadd.f32 0.0, %v2912
        %v2914 = vpop.f32.mrb[0].mxu0
        %v2915 = vpop.f32.mrb[0].mxu0
        %v2916 = vadd.f32 0.0, %v2915
        %v2917 = vpop.f32.mrb[0].mxu0
        %2918 = vmatprep.mubr.bf16.mxu0 0
        %2919 = vmatmul.mubr.bf16.gmra.mrb[0].mxu0 %v2814
        %v2920 = vpop.f32.mrb[0].mxu0
        %v2921 = vadd.f32 0.0, %v2920
        %v2922 = vpop.f32.mrb[0].mxu0
        %v2923 = vpop.f32.mrb[0].mxu0
        %v2924 = vadd.f32 0.0, %v2923
        %v2925 = vpop.f32.mrb[0].mxu0
        %2926 = vmatprep.mubr.bf16.mxu0 0
        %2927 = vmatmul.mubr.bf16.gmra.mrb[0].mxu0 %v2817
        %v2928 = vpop.f32.mrb[0].mxu0
        %v2929 = vadd.f32 0.0, %v2928
        %v2930 = vpop.f32.mrb[0].mxu0
        %v2931 = vpop.f32.mrb[0].mxu0
        %v2932 = vadd.f32 0.0, %v2931
        %v2933 = vpop.f32.mrb[0].mxu0
        %2934 = vmatprep.mubr.bf16.mxu0 0
        %2935 = vmatmul.mubr.bf16.gmra.mrb[0].mxu0 %v2820
        %v2936 = vpop.f32.mrb[0].mxu0
        %v2937 = vadd.f32 0.0, %v2936
        %v2938 = vpop.f32.mrb[0].mxu0
        %v2939 = vpop.f32.mrb[0].mxu0
        %v2940 = vadd.f32 0.0, %v2939
        %v2941 = vpop.f32.mrb[0].mxu0
        %2942 = vdwg.mxu0
        %2943 = vmax.xlane.f32.xlu0 %v2881
        %v2944 = vpop.xlane.xlu0 %2943
        %2945 = vmax.xlane.f32.xlu0 %v2884
        %v2946 = vpop.xlane.xlu0 %2945
        %2947 = vmax.xlane.f32.xlu0 %v2889
        %v2948 = vpop.xlane.xlu0 %2947
        %2949 = vmax.xlane.f32.xlu0 %v2892
        %v2950 = vpop.xlane.xlu0 %2949
        %2951 = vmax.xlane.f32.xlu0 %v2897
        %v2952 = vpop.xlane.xlu0 %2951
        %2953 = vmax.xlane.f32.xlu0 %v2900
        %v2954 = vpop.xlane.xlu0 %2953
        %2955 = vmax.xlane.f32.xlu0 %v2905
        %v2956 = vpop.xlane.xlu0 %2955
        %2957 = vmax.xlane.f32.xlu0 %v2908
        %v2958 = vpop.xlane.xlu0 %2957
        %2959 = vmax.xlane.f32.xlu0 %v2913
        %v2960 = vpop.xlane.xlu0 %2959
        %2961 = vmax.xlane.f32.xlu0 %v2916
        %v2962 = vpop.xlane.xlu0 %2961
        %2963 = vmax.xlane.f32.xlu0 %v2921
        %v2964 = vpop.xlane.xlu0 %2963
        %2965 = vmax.xlane.f32.xlu0 %v2924
        %v2966 = vpop.xlane.xlu0 %2965
        %2967 = vmax.xlane.f32.xlu0 %v2929
        %v2968 = vpop.xlane.xlu0 %2967
        %2969 = vmax.xlane.f32.xlu0 %v2932
        %v2970 = vpop.xlane.xlu0 %2969
        %2971 = vmax.xlane.f32.xlu0 %v2937
        %v2972 = vpop.xlane.xlu0 %2971
        %2973 = vmax.xlane.f32.xlu0 %v2940
        %v2974 = vpop.xlane.xlu0 %2973
        %v2975 = vsub.f32 %v2881, %v2944
        %v2976 = vsub.f32 %v2884, %v2946
        %v2977 = vsub.f32 %v2889, %v2948
        %v2978 = vsub.f32 %v2892, %v2950
        %v2979 = vsub.f32 %v2897, %v2952
        %v2980 = vsub.f32 %v2900, %v2954
        %v2981 = vsub.f32 %v2905, %v2956
        %v2982 = vsub.f32 %v2908, %v2958
        %v2983 = vsub.f32 %v2913, %v2960
        %v2984 = vsub.f32 %v2916, %v2962
        %v2985 = vsub.f32 %v2921, %v2964
        %v2986 = vsub.f32 %v2924, %v2966
        %v2987 = vsub.f32 %v2929, %v2968
        %v2988 = vsub.f32 %v2932, %v2970
        %v2989 = vsub.f32 %v2937, %v2972
        %v2990 = vsub.f32 %v2940, %v2974
        %v2991 = vmul.f32 %v2975, 1.442695
        %v2992 = vpow.pop %v2991
        %v2993 = vmul.f32 %v2976, 1.442695
        %v2994 = vpow.pop %v2993
        %v2995 = vmul.f32 %v2977, 1.442695
        %v2996 = vpow.pop %v2995
        %v2997 = vmul.f32 %v2978, 1.442695
        %v2998 = vpow.pop %v2997
        %v2999 = vmul.f32 %v2979, 1.442695
        %v3000 = vpow.pop %v2999
        %v3001 = vmul.f32 %v2980, 1.442695
        %v3002 = vpow.pop %v3001
        %v3003 = vmul.f32 %v2981, 1.442695
        %v3004 = vpow.pop %v3003
        %v3005 = vmul.f32 %v2982, 1.442695
        %v3006 = vpow.pop %v3005
        %v3007 = vmul.f32 %v2983, 1.442695
        %v3008 = vpow.pop %v3007
        %v3009 = vmul.f32 %v2984, 1.442695
        %v3010 = vpow.pop %v3009
        %v3011 = vmul.f32 %v2985, 1.442695
        %v3012 = vpow.pop %v3011
        %v3013 = vmul.f32 %v2986, 1.442695
        %v3014 = vpow.pop %v3013
        %v3015 = vmul.f32 %v2987, 1.442695
        %v3016 = vpow.pop %v3015
        %v3017 = vmul.f32 %v2988, 1.442695
        %v3018 = vpow.pop %v3017
        %v3019 = vmul.f32 %v2989, 1.442695
        %v3020 = vpow.pop %v3019
        %v3021 = vmul.f32 %v2990, 1.442695
        %v3022 = vpow.pop %v3021
        %3023 = vadd.xlane.f32.xlu0 %v2992
        %v3024 = vpop.xlane.xlu0 %3023
        %3025 = vadd.xlane.f32.xlu0 %v2994
        %v3026 = vpop.xlane.xlu0 %3025
        %3027 = vadd.xlane.f32.xlu0 %v2996
        %v3028 = vpop.xlane.xlu0 %3027
        %3029 = vadd.xlane.f32.xlu0 %v2998
        %v3030 = vpop.xlane.xlu0 %3029
        %3031 = vadd.xlane.f32.xlu0 %v3000
        %v3032 = vpop.xlane.xlu0 %3031
        %3033 = vadd.xlane.f32.xlu0 %v3002
        %v3034 = vpop.xlane.xlu0 %3033
        %3035 = vadd.xlane.f32.xlu0 %v3004
        %v3036 = vpop.xlane.xlu0 %3035
        %3037 = vadd.xlane.f32.xlu0 %v3006
        %v3038 = vpop.xlane.xlu0 %3037
        %3039 = vadd.xlane.f32.xlu0 %v3008
        %v3040 = vpop.xlane.xlu0 %3039
        %3041 = vadd.xlane.f32.xlu0 %v3010
        %v3042 = vpop.xlane.xlu0 %3041
        %3043 = vadd.xlane.f32.xlu0 %v3012
        %v3044 = vpop.xlane.xlu0 %3043
        %3045 = vadd.xlane.f32.xlu0 %v3014
        %v3046 = vpop.xlane.xlu0 %3045
        %3047 = vadd.xlane.f32.xlu0 %v3016
        %v3048 = vpop.xlane.xlu0 %3047
        %3049 = vadd.xlane.f32.xlu0 %v3018
        %v3050 = vpop.xlane.xlu0 %3049
        %3051 = vadd.xlane.f32.xlu0 %v3020
        %v3052 = vpop.xlane.xlu0 %3051
        %3053 = vadd.xlane.f32.xlu0 %v3022
        %v3054 = vpop.xlane.xlu0 %3053
        %v3055 = vpack.c.bf16 %v2994, %v2992
        %v3056 = vpack.c.bf16 %v2998, %v2996
        %v3057 = vpack.c.bf16 %v3002, %v3000
        %v3058 = vpack.c.bf16 %v3006, %v3004
        %v3059 = vpack.c.bf16 %v3010, %v3008
        %v3060 = vpack.c.bf16 %v3014, %v3012
        %v3061 = vpack.c.bf16 %v3018, %v3016
        %v3062 = vpack.c.bf16 %v3022, %v3020
        %3063 = vrot.lane.b32.xlu0 %v1325, 32
        %v3064 = vpop.permute.xlu0 %3063
        %3065 = vrot.lane.b32.xlu0 %v1326, 32
        %v3066 = vpop.permute.xlu0 %3065
        %3067 = vrot.lane.b32.xlu0 %v1327, 32
        %v3068 = vpop.permute.xlu0 %3067
        %3069 = vrot.lane.b32.xlu0 %v1328, 32
        %v3070 = vpop.permute.xlu0 %3069
        %3071 = vrot.lane.b32.xlu0 %v1329, 32
        %v3072 = vpop.permute.xlu0 %3071
        %3073 = vrot.lane.b32.xlu0 %v1330, 32
        %v3074 = vpop.permute.xlu0 %3073
        %3075 = vrot.lane.b32.xlu0 %v1331, 32
        %v3076 = vpop.permute.xlu0 %3075
        %3077 = vrot.lane.b32.xlu0 %v1332, 32
        %v3078 = vpop.permute.xlu0 %3077
        %3087 = vmatprep.subr.bf16.mxu0 0
        %3088 = vmatpush1.bf16.msra.mxu0 %v3064
        %3089 = vmatprep.subr.bf16.mxu0 0
        %3090 = vmatpush1.bf16.msra.mxu0 %v3066
        %3091 = vmatprep.subr.bf16.mxu0 0
        %3092 = vmatpush1.bf16.msra.mxu0 %v3068
        %3093 = vmatprep.subr.bf16.mxu0 0
        %3094 = vmatpush1.bf16.msra.mxu0 %v3070
        %3095 = vmatprep.subr.bf16.mxu0 0
        %3096 = vmatpush1.bf16.msra.mxu0 %v3072
        %3097 = vmatprep.subr.bf16.mxu0 0
        %3098 = vmatpush1.bf16.msra.mxu0 %v3074
        %3099 = vmatprep.subr.bf16.mxu0 0
        %3100 = vmatpush1.bf16.msra.mxu0 %v3076
        %3101 = vmatprep.subr.bf16.mxu0 0
        %3102 = vmatpush1.bf16.msra.mxu0 %v3078
        %3103 = vmatprep.subr.bf16.mxu0 0
        %3104 = vmatpush1.bf16.msra.mxu0 0
        %3105 = vmatprep.subr.bf16.mxu0 0
        %3106 = vmatpush1.bf16.msra.mxu0 0
        %3107 = vmatprep.subr.bf16.mxu0 0
        %3108 = vmatpush1.bf16.msra.mxu0 0
        %3109 = vmatprep.subr.bf16.mxu0 0
        %3110 = vmatpush1.bf16.msra.mxu0 0
        %3111 = vmatprep.subr.bf16.mxu0 0
        %3112 = vmatpush1.bf16.msra.mxu0 0
        %3113 = vmatprep.subr.bf16.mxu0 0
        %3114 = vmatpush1.bf16.msra.mxu0 0
        %3115 = vmatprep.subr.bf16.mxu0 0
        %3116 = vmatpush1.bf16.msra.mxu0 0
        %3117 = vmatprep.subr.bf16.mxu0 0
        %3118 = vmatpush1.bf16.msra.mxu0 0
        %3119 = vmatprep.mubr.bf16.mxu0 0
        %3120 = vmatmul.mubr.bf16.gmra.mrb[0].mxu0 %v3055
        %v3121 = vpop.f32.mrb[0].mxu0
        %v3122 = vadd.f32 0.0, %v3121
        %v3123 = vpop.f32.mrb[0].mxu0
        %v3124 = vpop.f32.mrb[0].mxu0
        %v3125 = vadd.f32 0.0, %v3124
        %v3126 = vpop.f32.mrb[0].mxu0
        %3127 = vmatprep.mubr.bf16.mxu0 0
        %3128 = vmatmul.mubr.bf16.gmra.mrb[0].mxu0 %v3056
        %v3129 = vpop.f32.mrb[0].mxu0
        %v3130 = vadd.f32 0.0, %v3129
        %v3131 = vpop.f32.mrb[0].mxu0
        %v3132 = vpop.f32.mrb[0].mxu0
        %v3133 = vadd.f32 0.0, %v3132
        %v3134 = vpop.f32.mrb[0].mxu0
        %3135 = vmatprep.mubr.bf16.mxu0 0
        %3136 = vmatmul.mubr.bf16.gmra.mrb[0].mxu0 %v3057
        %v3137 = vpop.f32.mrb[0].mxu0
        %v3138 = vadd.f32 0.0, %v3137
        %v3139 = vpop.f32.mrb[0].mxu0
        %v3140 = vpop.f32.mrb[0].mxu0
        %v3141 = vadd.f32 0.0, %v3140
        %v3142 = vpop.f32.mrb[0].mxu0
        %3143 = vmatprep.mubr.bf16.mxu0 0
        %3144 = vmatmul.mubr.bf16.gmra.mrb[0].mxu0 %v3058
        %v3145 = vpop.f32.mrb[0].mxu0
        %v3146 = vadd.f32 0.0, %v3145
        %v3147 = vpop.f32.mrb[0].mxu0
        %v3148 = vpop.f32.mrb[0].mxu0
        %v3149 = vadd.f32 0.0, %v3148
        %v3150 = vpop.f32.mrb[0].mxu0
        %3151 = vmatprep.mubr.bf16.mxu0 0
        %3152 = vmatmul.mubr.bf16.gmra.mrb[0].mxu0 %v3059
        %v3153 = vpop.f32.mrb[0].mxu0
        %v3154 = vadd.f32 0.0, %v3153
        %v3155 = vpop.f32.mrb[0].mxu0
        %v3156 = vpop.f32.mrb[0].mxu0
        %v3157 = vadd.f32 0.0, %v3156
        %v3158 = vpop.f32.mrb[0].mxu0
        %3159 = vmatprep.mubr.bf16.mxu0 0
        %3160 = vmatmul.mubr.bf16.gmra.mrb[0].mxu0 %v3060
        %v3161 = vpop.f32.mrb[0].mxu0
        %v3162 = vadd.f32 0.0, %v3161
        %v3163 = vpop.f32.mrb[0].mxu0
        %v3164 = vpop.f32.mrb[0].mxu0
        %v3165 = vadd.f32 0.0, %v3164
        %v3166 = vpop.f32.mrb[0].mxu0
        %3167 = vmatprep.mubr.bf16.mxu0 0
        %3168 = vmatmul.mubr.bf16.gmra.mrb[0].mxu0 %v3061
        %v3169 = vpop.f32.mrb[0].mxu0
        %v3170 = vadd.f32 0.0, %v3169
        %v3171 = vpop.f32.mrb[0].mxu0
        %v3172 = vpop.f32.mrb[0].mxu0
        %v3173 = vadd.f32 0.0, %v3172
        %v3174 = vpop.f32.mrb[0].mxu0
        %3175 = vmatprep.mubr.bf16.mxu0 0
        %3176 = vmatmul.mubr.bf16.gmra.mrb[0].mxu0 %v3062
        %v3177 = vpop.f32.mrb[0].mxu0
        %v3178 = vadd.f32 0.0, %v3177
        %v3179 = vpop.f32.mrb[0].mxu0
        %v3180 = vpop.f32.mrb[0].mxu0
        %v3181 = vadd.f32 0.0, %v3180
        %v3182 = vpop.f32.mrb[0].mxu0
        %3183 = vdwg.mxu0
        %v3184 = vrcp.pop %v3024
        %v3185 = vrcp.pop %v3026
        %v3186 = vrcp.pop %v3028
        %v3187 = vrcp.pop %v3030
        %v3188 = vrcp.pop %v3032
        %v3189 = vrcp.pop %v3034
        %v3190 = vrcp.pop %v3036
        %v3191 = vrcp.pop %v3038
        %v3192 = vrcp.pop %v3040
        %v3193 = vrcp.pop %v3042
        %v3194 = vrcp.pop %v3044
        %v3195 = vrcp.pop %v3046
        %v3196 = vrcp.pop %v3048
        %v3197 = vrcp.pop %v3050
        %v3198 = vrcp.pop %v3052
        %v3199 = vrcp.pop %v3054
        %v3200 = vmul.f32 %v3122, %v3184
        %v3201 = vmul.f32 %v3125, %v3185
        %v3202 = vmul.f32 %v3130, %v3186
        %v3203 = vmul.f32 %v3133, %v3187
        %v3204 = vmul.f32 %v3138, %v3188
        %v3205 = vmul.f32 %v3141, %v3189
        %v3206 = vmul.f32 %v3146, %v3190
        %v3207 = vmul.f32 %v3149, %v3191
        %v3208 = vmul.f32 %v3154, %v3192
        %v3209 = vmul.f32 %v3157, %v3193
        %v3210 = vmul.f32 %v3162, %v3194
        %v3211 = vmul.f32 %v3165, %v3195
        %v3212 = vmul.f32 %v3170, %v3196
        %v3213 = vmul.f32 %v3173, %v3197
        %v3214 = vmul.f32 %v3178, %v3198
        %v3215 = vmul.f32 %v3181, %v3199
        %v3216 = vpack.c.bf16 %v3201, %v3200
        %v3217 = vpack.c.bf16 %v3203, %v3202
        %v3218 = vpack.c.bf16 %v3205, %v3204
        %v3219 = vpack.c.bf16 %v3207, %v3206
        %v3220 = vpack.c.bf16 %v3209, %v3208
        %v3221 = vpack.c.bf16 %v3211, %v3210
        %v3222 = vpack.c.bf16 %v3213, %v3212
        %v3223 = vpack.c.bf16 %v3215, %v3214
        %3232 = vrot.lane.b32.xlu0 %v3216, 96
        %v3233 = vpop.permute.xlu0 %3232
        %3234 = vrot.lane.b32.xlu0 %v3217, 96
        %v3235 = vpop.permute.xlu0 %3234
        %3236 = vrot.lane.b32.xlu0 %v3218, 96
        %v3237 = vpop.permute.xlu0 %3236
        %3238 = vrot.lane.b32.xlu0 %v3219, 96
        %v3239 = vpop.permute.xlu0 %3238
        %3240 = vrot.lane.b32.xlu0 %v3220, 96
        %v3241 = vpop.permute.xlu0 %3240
        %3242 = vrot.lane.b32.xlu0 %v3221, 96
        %v3243 = vpop.permute.xlu0 %3242
        %3244 = vrot.lane.b32.xlu0 %v3222, 96
        %v3245 = vpop.permute.xlu0 %3244
        %3246 = vrot.lane.b32.xlu0 %v3223, 96
        %v3247 = vpop.permute.xlu0 %3246
        %vm3256 = vcmask 1048320
        %3257 = vst.msk [vmem:[#allocation4] sm:$0xff] %vm3256, %v3233
        %3258 = vst.msk [vmem:[#allocation4 + $0x8] sm:$0xff] %vm3256, %v3235
        %3259 = vst.msk [vmem:[#allocation4 + $0x10] sm:$0xff] %vm3256, %v3237
        %3260 = vst.msk [vmem:[#allocation4 + $0x18] sm:$0xff] %vm3256, %v3239
        %3261 = vst.msk [vmem:[#allocation4 + $0x20] sm:$0xff] %vm3256, %v3241
        %3262 = vst.msk [vmem:[#allocation4 + $0x28] sm:$0xff] %vm3256, %v3243
        %3263 = vst.msk [vmem:[#allocation4 + $0x30] sm:$0xff] %vm3256, %v3245
        %3264 = vst.msk [vmem:[#allocation4 + $0x38] sm:$0xff] %vm3256, %v3247
        %v3265 = vld [vmem:[#allocation4] sm:$0xff]
        %v3266 = vld [vmem:[#allocation4 + $0x8] sm:$0xff]
        %v3267 = vld [vmem:[#allocation4 + $0x10] sm:$0xff]
        %v3268 = vld [vmem:[#allocation4 + $0x18] sm:$0xff]
        %v3269 = vld [vmem:[#allocation4 + $0x20] sm:$0xff]
        %v3270 = vld [vmem:[#allocation4 + $0x28] sm:$0xff]
        %v3271 = vld [vmem:[#allocation4 + $0x30] sm:$0xff]
        %v3272 = vld [vmem:[#allocation4 + $0x38] sm:$0xff]
        %v3273 = vld [vmem:[#allocation16] sm:$0xf]
        %v3274 = vld [vmem:[#allocation16 + $0x4] sm:$0xf]
        %v3275 = vld [vmem:[#allocation16 + $0x8] sm:$0xf]
        %v3276 = vld [vmem:[#allocation16 + $0xc] sm:$0xf]
        %v3277 = vld [vmem:[#allocation16 + $0x10] sm:$0xf]
        %v3278 = vld [vmem:[#allocation16 + $0x14] sm:$0xf]
        %v3279 = vld [vmem:[#allocation16 + $0x18] sm:$0xf]
        %v3280 = vld [vmem:[#allocation16 + $0x1c] sm:$0xf]
        %v3281 = vld [vmem:[#allocation16 + $0x20] sm:$0xf]
        %v3282 = vld [vmem:[#allocation16 + $0x24] sm:$0xf]
        %v3283 = vld [vmem:[#allocation16 + $0x28] sm:$0xf]
        %v3284 = vld [vmem:[#allocation16 + $0x2c] sm:$0xf]
        %v3285 = vld [vmem:[#allocation16 + $0x30] sm:$0xf]
        %v3286 = vld [vmem:[#allocation16 + $0x34] sm:$0xf]
        %v3287 = vld [vmem:[#allocation16 + $0x38] sm:$0xf]
        %v3288 = vld [vmem:[#allocation16 + $0x3c] sm:$0xf]
        %v3289 = vld [vmem:[%s10] sm:$0x1]
        %v3291 = vlaneseq
        %v3292 = vshrl.u32 %v3291, 7
        %v3293 = vsub.s32 0, %v3292
        %v3294 = vrot.slane %v3289, %v3293
        %v3312 = vunpack.c.l.b16 %v3273
        %v3313 = vunpack.c.l.b16 %v3274
        %v3314 = vunpack.c.l.b16 %v3275
        %v3315 = vunpack.c.l.b16 %v3276
        %v3316 = vunpack.c.l.b16 %v3277
        %v3317 = vunpack.c.l.b16 %v3278
        %v3318 = vunpack.c.l.b16 %v3279
        %v3319 = vunpack.c.l.b16 %v3280
        %v3320 = vunpack.c.l.b16 %v3281
        %v3321 = vunpack.c.l.b16 %v3282
        %v3322 = vunpack.c.l.b16 %v3283
        %v3323 = vunpack.c.l.b16 %v3284
        %v3324 = vunpack.c.l.b16 %v3285
        %v3325 = vunpack.c.l.b16 %v3286
        %v3326 = vunpack.c.l.b16 %v3287
        %v3327 = vunpack.c.l.b16 %v3288
        %v3328 = vpack.c.b16 %v3313, %v3312
        %v3329 = vpack.c.b16 %v3315, %v3314
        %v3330 = vpack.c.b16 %v3317, %v3316
        %v3331 = vpack.c.b16 %v3319, %v3318
        %v3332 = vpack.c.b16 %v3321, %v3320
        %v3333 = vpack.c.b16 %v3323, %v3322
        %v3334 = vpack.c.b16 %v3325, %v3324
        %v3335 = vpack.c.b16 %v3327, %v3326
        %3344 = vmatprep.subr.bf16.mxu0 0
        %3345 = vmatpush1.bf16.msra.mxu0 %v3328
        %3346 = vmatprep.subr.bf16.mxu0 0
        %3347 = vmatpush1.bf16.msra.mxu0 %v3329
        %3348 = vmatprep.subr.bf16.mxu0 0
        %3349 = vmatpush1.bf16.msra.mxu0 %v3330
        %3350 = vmatprep.subr.bf16.mxu0 0
        %3351 = vmatpush1.bf16.msra.mxu0 %v3331
        %3352 = vmatprep.subr.bf16.mxu0 0
        %3353 = vmatpush1.bf16.msra.mxu0 %v3332
        %3354 = vmatprep.subr.bf16.mxu0 0
        %3355 = vmatpush1.bf16.msra.mxu0 %v3333
        %3356 = vmatprep.subr.bf16.mxu0 0
        %3357 = vmatpush1.bf16.msra.mxu0 %v3334
        %3358 = vmatprep.subr.bf16.mxu0 0
        %3359 = vmatpush1.bf16.msra.mxu0 %v3335
        %3360 = vmatprep.subr.bf16.mxu0 0
        %3361 = vmatpush1.bf16.msra.mxu0 0
        %3362 = vmatprep.subr.bf16.mxu0 0
        %3363 = vmatpush1.bf16.msra.mxu0 0
        %3364 = vmatprep.subr.bf16.mxu0 0
        %3365 = vmatpush1.bf16.msra.mxu0 0
        %3366 = vmatprep.subr.bf16.mxu0 0
        %3367 = vmatpush1.bf16.msra.mxu0 0
        %3368 = vmatprep.subr.bf16.mxu0 0
        %3369 = vmatpush1.bf16.msra.mxu0 0
        %3370 = vmatprep.subr.bf16.mxu0 0
        %3371 = vmatpush1.bf16.msra.mxu0 0
        %3372 = vmatprep.subr.bf16.mxu0 0
        %3373 = vmatpush1.bf16.msra.mxu0 0
        %3374 = vmatprep.subr.bf16.mxu0 0
        %3375 = vmatpush1.bf16.msra.mxu0 0
        %3376 = vmatprep.mubr.bf16.mxu0 0
        %3377 = vmatmul.mubr.bf16.gmra.mrb[0].mxu0 %v3265
        %v3378 = vpop.f32.mrb[0].mxu0
        %v3379 = vadd.f32 %v3294, %v3378
        %v3380 = vpop.f32.mrb[0].mxu0
        %v3381 = vpop.f32.mrb[0].mxu0
        %v3382 = vadd.f32 %v3294, %v3381
        %v3383 = vpop.f32.mrb[0].mxu0
        %3384 = vmatprep.mubr.bf16.mxu0 0
        %3385 = vmatmul.mubr.bf16.gmra.mrb[0].mxu0 %v3266
        %v3386 = vpop.f32.mrb[0].mxu0
        %v3387 = vadd.f32 %v3294, %v3386
        %v3388 = vpop.f32.mrb[0].mxu0
        %v3389 = vpop.f32.mrb[0].mxu0
        %v3390 = vadd.f32 %v3294, %v3389
        %v3391 = vpop.f32.mrb[0].mxu0
        %3392 = vmatprep.mubr.bf16.mxu0 0
        %3393 = vmatmul.mubr.bf16.gmra.mrb[0].mxu0 %v3267
        %v3394 = vpop.f32.mrb[0].mxu0
        %v3395 = vadd.f32 %v3294, %v3394
        %v3396 = vpop.f32.mrb[0].mxu0
        %v3397 = vpop.f32.mrb[0].mxu0
        %v3398 = vadd.f32 %v3294, %v3397
        %v3399 = vpop.f32.mrb[0].mxu0
        %3400 = vmatprep.mubr.bf16.mxu0 0
        %3401 = vmatmul.mubr.bf16.gmra.mrb[0].mxu0 %v3268
        %v3402 = vpop.f32.mrb[0].mxu0
        %v3403 = vadd.f32 %v3294, %v3402
        %v3404 = vpop.f32.mrb[0].mxu0
        %v3405 = vpop.f32.mrb[0].mxu0
        %v3406 = vadd.f32 %v3294, %v3405
        %v3407 = vpop.f32.mrb[0].mxu0
        %3408 = vmatprep.mubr.bf16.mxu0 0
        %3409 = vmatmul.mubr.bf16.gmra.mrb[0].mxu0 %v3269
        %v3410 = vpop.f32.mrb[0].mxu0
        %v3411 = vadd.f32 %v3294, %v3410
        %v3412 = vpop.f32.mrb[0].mxu0
        %v3413 = vpop.f32.mrb[0].mxu0
        %v3414 = vadd.f32 %v3294, %v3413
        %v3415 = vpop.f32.mrb[0].mxu0
        %3416 = vmatprep.mubr.bf16.mxu0 0
        %3417 = vmatmul.mubr.bf16.gmra.mrb[0].mxu0 %v3270
        %v3418 = vpop.f32.mrb[0].mxu0
        %v3419 = vadd.f32 %v3294, %v3418
        %v3420 = vpop.f32.mrb[0].mxu0
        %v3421 = vpop.f32.mrb[0].mxu0
        %v3422 = vadd.f32 %v3294, %v3421
        %v3423 = vpop.f32.mrb[0].mxu0
        %3424 = vmatprep.mubr.bf16.mxu0 0
        %3425 = vmatmul.mubr.bf16.gmra.mrb[0].mxu0 %v3271
        %v3426 = vpop.f32.mrb[0].mxu0
        %v3427 = vadd.f32 %v3294, %v3426
        %v3428 = vpop.f32.mrb[0].mxu0
        %v3429 = vpop.f32.mrb[0].mxu0
        %v3430 = vadd.f32 %v3294, %v3429
        %v3431 = vpop.f32.mrb[0].mxu0
        %3432 = vmatprep.mubr.bf16.mxu0 0
        %3433 = vmatmul.mubr.bf16.gmra.mrb[0].mxu0 %v3272
        %v3434 = vpop.f32.mrb[0].mxu0
        %v3435 = vadd.f32 %v3294, %v3434
        %v3436 = vpop.f32.mrb[0].mxu0
        %v3437 = vpop.f32.mrb[0].mxu0
        %v3438 = vadd.f32 %v3294, %v3437
        %v3439 = vpop.f32.mrb[0].mxu0
        %3440 = vdwg.mxu0
        %3441 = vst [vmem:[%s557] sm:$0xff] %v3379
        %3442 = vst [vmem:[%s557 + $0x8] sm:$0xff] %v3382
        %3443 = vst [vmem:[%s557 + $0x10] sm:$0xff] %v3387
        %3444 = vst [vmem:[%s557 + $0x18] sm:$0xff] %v3390
        %3445 = vst [vmem:[%s557 + $0x20] sm:$0xff] %v3395
        %3446 = vst [vmem:[%s557 + $0x28] sm:$0xff] %v3398
        %3447 = vst [vmem:[%s557 + $0x30] sm:$0xff] %v3403
        %3448 = vst [vmem:[%s557 + $0x38] sm:$0xff] %v3406
        %3449 = vst [vmem:[%s557 + $0x40] sm:$0xff] %v3411
        %3450 = vst [vmem:[%s557 + $0x48] sm:$0xff] %v3414
        %3451 = vst [vmem:[%s557 + $0x50] sm:$0xff] %v3419
        %3452 = vst [vmem:[%s557 + $0x58] sm:$0xff] %v3422
        %3453 = vst [vmem:[%s557 + $0x60] sm:$0xff] %v3427
        %3454 = vst [vmem:[%s557 + $0x68] sm:$0xff] %v3430
        %3455 = vst [vmem:[%s557 + $0x70] sm:$0xff] %v3435
        %3456 = vst [vmem:[%s557 + $0x78] sm:$0xff] %v3438
        %s3457 = sand.u32 %s303, 1
        %s3458 = scalar_lea.sflag [#allocation7], %s3457
        %s3459 = sand.u32 %s303, 1
        %s3460 = smul.addr %s3459, 128
        %s3461 = scalar_lea.vmem [#allocation17], %s3460
        // Predicated region
        $region97: #{tpu_custom_call.1} parent=63 // pred_check
          %p3462 = pneg %p313
        $region98: #{tpu_custom_call.1} parent=63 // pred_check_branch
          %3464 = sbr.rel (%p3462) target = $region100
        $region99: #{tpu_custom_call.1} parent=63 // pred_region
          %s3465 = smul.u32 16, %s38
          %s3467 = ssub.s32 2048, 2048
          %3468 = vsyncadd %s3458, %s3467
          %s3469 = smul.addr %s37, 16
          %s3470 = sadd.s32 %s3465, %s3469
          %s3471 = smul.addr %s3470, 128
          %s3472 = scalar_lea.hbm %s11, %s3471
          %s3473 = sshll.u32 %s3461, 4
          %s3474 = int_to_ptr.vmem [resolvable:$true] %s3473
          %3479 = dma.vmem_to_hbm [thread:$0]  %s3474, 2048, %s3472, %s3458, 128, 128, 8
        $region100: #{tpu_custom_call.1} parent=63 // pred_fallthru
          _
      $region64: #{tpu_custom_call.1} parent=5 // pred_fallthru
        _
      %p3480 = scmp.le.s32.totalorder 2, %s28
      // Predicated region
      $region101: #{tpu_custom_call.1} parent=5 // pred_check
        %p3481 = pneg %p3480
      $region102: #{tpu_custom_call.1} parent=5 // pred_check_branch
        %3483 = sbr.rel (%p3481) target = $region104
      $region103: #{tpu_custom_call.1} parent=5 // pred_region
        %s3484 = ssub.s32 %s28, 2
        // Predicated region
        $region105: #{tpu_custom_call.1} parent=103 // pred_check
          %p3485 = pneg %p319
        $region106: #{tpu_custom_call.1} parent=103 // pred_check_branch
          %3487 = sbr.rel (%p3485) target = $region108
        $region107: #{tpu_custom_call.1} parent=103 // pred_region
          %s3488 = sand.u32 %s304, 1
          %s3489 = scalar_lea.sflag [#allocation7], %s3488
          %s3490 = sand.u32 %s304, 1
          %s3491 = smul.addr %s3490, 128
          %s3492 = scalar_lea.vmem [#allocation17], %s3491
          %3493 = dma.done %s3489, 2048
        $region108: #{tpu_custom_call.1} parent=103 // pred_fallthru
          _
      $region104: #{tpu_custom_call.1} parent=5 // pred_fallthru
        _
    $region6: #{tpu_custom_call.1} parent=1 // loop_footer
      %s32 = sadd.s32 1, %s28
    $region7: #{tpu_custom_call.1} parent=1 // loop_footer_branch
      %27 = sbr.rel target = $region3
    $region8: #{tpu_custom_call.1} parent=1 // loop_exit
      _
    %3494 = vsyncpa [#allocation6], 1
    %s3495 = scalar_lea.sflag [#allocation6], 1
    %3496 = vsyncpa %s3495, 1
    %3497 = vsyncpa [#allocation9], 1
    %s3498 = scalar_lea.sflag [#allocation9], 1
    %3499 = vsyncpa %s3498, 1
    %3500 = vsyncpa [#allocation12], 1
    %3501 = vsyncpa [#allocation15], 1
    %3502 = vsyncpa [#allocation7], 1
    %s3503 = scalar_lea.sflag [#allocation7], 1
    %3504 = vsyncpa %s3503, 1

</llo_original>
